<compile_context>
chip_gen: v7x
topology: tpu7x:2x2x1
jax: 0.10.0
libtpu: 0.0.40
codegen_flags: <defaults>
</compile_context>

<pallas_src>
import numpy as np

import jax
import jax.numpy as jnp
from jax.experimental import pallas as pl
from jax.experimental.pallas import tpu as pltpu


# ----------------------------------------------------------------------------
# Fused kernel: entire LeNet forward for one batch tile.
# ----------------------------------------------------------------------------
def _lenet_fused_kernel(x_ref, w1m_ref, b1_ref, s1e_ref, s1o_ref,
                        w2m_ref, b2_ref, s2e_ref, s2o_ref,
                        w1f_ref, b1f_ref, w2f_ref, b2f_ref, w3f_ref, b3f_ref,
                        out_ref):
    f32 = jnp.float32
    tb = x_ref.shape[0]
    x = x_ref[...]                                           # (TB, 28, 28)

    # ---- conv1 (1->6, 5x5) + bias + ReLU ------------------------------------
    # rows = (b, out_row) -> TB*24 ; lanes = (channel, out_col) -> 6*24 = 144
    out1 = jnp.dot(x[:, 0:24, :].reshape(tb * 24, 28), w1m_ref[0],
                   preferred_element_type=f32)
    for di in range(1, 5):
        out1 = out1 + jnp.dot(x[:, di:di + 24, :].reshape(tb * 24, 28),
                              w1m_ref[di], preferred_element_type=f32)
    out1 = jnp.maximum(out1 + b1_ref[...], 0.0)              # (TB*24, 144)

    # ---- 2x2/2 max pool (fused epilogue) ------------------------------------
    # columns: even/odd lane selection via 0/1 matmuls; rows: parity max.
    wcols = jnp.maximum(
        jnp.dot(out1, s1e_ref[...], preferred_element_type=f32),
        jnp.dot(out1, s1o_ref[...], preferred_element_type=f32))   # (TB*24, 72)
    wr = wcols.reshape(tb, 12, 2, 72)
    p1 = jnp.maximum(wr[:, :, 0, :], wr[:, :, 1, :])         # (TB, 12, 72)

    # ---- conv2 (6->16, 5x5) + bias + ReLU -----------------------------------
    # rows = (b, out_row) -> TB*8 ; lanes = (channel, out_col) -> 16*8 = 128
    out2 = jnp.dot(p1[:, 0:8, :].reshape(tb * 8, 72), w2m_ref[0],
                   preferred_element_type=f32)
    for di in range(1, 5):
        out2 = out2 + jnp.dot(p1[:, di:di + 8, :].reshape(tb * 8, 72),
                              w2m_ref[di], preferred_element_type=f32)
    out2 = jnp.maximum(out2 + b2_ref[...], 0.0)              # (TB*8, 128)

    # ---- 2x2/2 max pool ------------------------------------------------------
    wcols2 = jnp.maximum(
        jnp.dot(out2, s2e_ref[...], preferred_element_type=f32),
        jnp.dot(out2, s2o_ref[...], preferred_element_type=f32))   # (TB*8, 64)
    wr2 = wcols2.reshape(tb, 4, 2, 64)
    p2 = jnp.maximum(wr2[:, :, 0, :], wr2[:, :, 1, :])       # (TB, 4, 64)

    # ---- fc1 (NCHW flatten folded into per-row weight groups) + ReLU --------
    h = jnp.dot(p2[:, 0, :], w1f_ref[0], preferred_element_type=f32)
    for r in range(1, 4):
        h = h + jnp.dot(p2[:, r, :], w1f_ref[r], preferred_element_type=f32)
    h = jnp.maximum(h + b1f_ref[...], 0.0)                   # (TB, 120)

    # ---- fc2 + ReLU, fc3 (lane-padded to 128 for a dense store) -------------
    h = jnp.maximum(jnp.dot(h, w2f_ref[...], preferred_element_type=f32)
                    + b2f_ref[...], 0.0)                     # (TB, 84)
    out = jnp.dot(h, w3f_ref[...], preferred_element_type=f32) + b3f_ref[...]
    out_ref[...] = out.astype(out_ref.dtype)                 # (TB, 128)


# ----------------------------------------------------------------------------
# Trace-time weight preprocessing (im2col / flatten folded into weights).
# ----------------------------------------------------------------------------
def _conv1_lane_maps(w1):
    """w1 (6,1,5,5) -> (5, 28, 144): per-kernel-row lane-mapping matrices."""
    w1 = w1.astype(jnp.float32)
    m = jnp.zeros((5, 28, 6 * 24), jnp.float32)
    c = np.arange(6)
    wo = np.arange(24)
    cols = c[:, None] * 24 + wo[None, :]                     # (6, 24)
    for di in range(5):
        for dj in range(5):
            rows = (wo + dj)[None, :]                        # (1, 24)
            vals = jnp.broadcast_to(w1[:, 0, di, dj][:, None], (6, 24))
            m = m.at[di, rows, cols].set(vals)
    return m


def _conv2_lane_maps(w2):
    """w2 (16,6,5,5) -> (5, 72, 128)."""
    w2 = w2.astype(jnp.float32)
    m = jnp.zeros((5, 6 * 12, 16 * 8), jnp.float32)
    ci = np.arange(6)
    co = np.arange(16)
    wo = np.arange(8)
    cols = (co[:, None] * 8 + wo[None, :])[:, None, :]       # (16, 1, 8)
    for di in range(5):
        for dj in range(5):
            rows = (ci[:, None] * 12 + wo[None, :] + dj)[None, :, :]  # (1,6,8)
            vals = jnp.broadcast_to(w2[:, :, di, dj][:, :, None], (16, 6, 8))
            m = m.at[di, rows, cols].set(vals)
    return m


def _pool_selectors(groups, width):
    """Even/odd column selectors (groups*width, groups*width//2) as 0/1 mats."""
    half = width // 2
    se = np.zeros((groups * width, groups * half), np.float32)
    so = np.zeros((groups * width, groups * half), np.float32)
    g = np.repeat(np.arange(groups), half)
    w = np.tile(np.arange(half), groups)
    se[g * width + 2 * w, g * half + w] = 1.0
    so[g * width + 2 * w + 1, g * half + w] = 1.0
    return jnp.asarray(se), jnp.asarray(so)


def _fc1_grouped(fc1_w):
    """fc1_w (120,256) with NCHW (c,h,w) input order -> (4, 64, 120) groups."""
    wt = fc1_w.astype(jnp.float32).T                         # (256, 120)
    co = np.arange(16)
    w = np.arange(4)
    groups = []
    for h in range(4):
        idx = (co[:, None] * 16 + h * 4 + w[None, :]).reshape(-1)   # (64,)
        groups.append(wt[idx])                               # (64, 120)
    return jnp.stack(groups, axis=0)                         # (4, 64, 120)


# ----------------------------------------------------------------------------
# Forward wrapper: one fused pallas_call, batch tiled over the grid.
# ----------------------------------------------------------------------------
def lenet_forward(x_nchw, params, *, batch_tile=8, num_classes=10):
    B = x_nchw.shape[0]
    assert x_nchw.shape[1:] == (1, 28, 28)
    tb = min(batch_tile, B)
    assert B % tb == 0, "batch must be divisible by the batch tile"

    x = x_nchw.reshape(B, 28, 28).astype(jnp.float32)

    w1m = _conv1_lane_maps(params['conv1_w'])                        # (5,28,144)
    b1v = jnp.repeat(params['conv1_b'].astype(jnp.float32), 24).reshape(1, 144)
    s1e, s1o = _pool_selectors(6, 24)                                # (144,72)
    w2m = _conv2_lane_maps(params['conv2_w'])                        # (5,72,128)
    b2v = jnp.repeat(params['conv2_b'].astype(jnp.float32), 8).reshape(1, 128)
    s2e, s2o = _pool_selectors(16, 8)                                # (128,64)
    w1f = _fc1_grouped(params['fc1_w'])                              # (4,64,120)
    b1f = params['fc1_b'].astype(jnp.float32).reshape(1, 120)
    w2f = params['fc2_w'].astype(jnp.float32).T                      # (120,84)
    b2f = params['fc2_b'].astype(jnp.float32).reshape(1, 84)
    w3f = jnp.zeros((84, 128), jnp.float32).at[:, :num_classes].set(
        params['fc3_w'].astype(jnp.float32).T)
    b3f = jnp.zeros((1, 128), jnp.float32).at[:, :num_classes].set(
        params['fc3_b'].astype(jnp.float32).reshape(1, -1))

    consts = (w1m, b1v, s1e, s1o, w2m, b2v, s2e, s2o,
              w1f, b1f, w2f, b2f, w3f, b3f)

    def _resident(a):
        nd = a.ndim
        return pl.BlockSpec(a.shape, lambda i, nd=nd: (0,) * nd)

    out = pl.pallas_call(
        _lenet_fused_kernel,
        out_shape=jax.ShapeDtypeStruct((B, 128), jnp.float32),
        grid=(B // tb,),
        in_specs=[pl.BlockSpec((tb, 28, 28), lambda i: (i, 0, 0))]
                 + [_resident(a) for a in consts],
        out_specs=pl.BlockSpec((tb, 128), lambda i: (i, 0)),
        compiler_params=pltpu.CompilerParams(
            dimension_semantics=("parallel",)),
    )(x, *consts)
    return out[:, :num_classes]


# ----------------------------------------------------------------------------
# Pure-JAX reference (correctness check only).
# ----------------------------------------------------------------------------
def lenet_ref(x, p):
    def conv(x, w, b):
        y = jax.lax.conv_general_dilated(
            x, w, (1, 1), 'VALID', dimension_numbers=('NCHW', 'OIHW', 'NCHW'))
        return y + b[None, :, None, None]

    def pool(x):
        return jax.lax.reduce_window(x, -jnp.inf, jax.lax.max,
                                     (1, 1, 2, 2), (1, 1, 2, 2), 'VALID')

    y = pool(jax.nn.relu(conv(x, p['conv1_w'], p['conv1_b'])))
    y = pool(jax.nn.relu(conv(y, p['conv2_w'], p['conv2_b'])))
    y = y.reshape(y.shape[0], -1)
    y = jax.nn.relu(y @ p['fc1_w'].T + p['fc1_b'])
    y = jax.nn.relu(y @ p['fc2_w'].T + p['fc2_b'])
    return y @ p['fc3_w'].T + p['fc3_b']


# ----------------------------------------------------------------------------
# main
# ----------------------------------------------------------------------------
if __name__ == "__main__":
    num_classes = 10
    B = 16                      # tiled 8 per grid step -> grid = (2,)
    key = jax.random.PRNGKey(0)
    ks = jax.random.split(key, 11)

    params = {
        'conv1_w': 0.1 * jax.random.normal(ks[0], (6, 1, 5, 5), jnp.float32),
        'conv1_b': 0.1 * jax.random.normal(ks[1], (6,), jnp.float32),
        'conv2_w': 0.1 * jax.random.normal(ks[2], (16, 6, 5, 5), jnp.float32),
        'conv2_b': 0.1 * jax.random.normal(ks[3], (16,), jnp.float32),
        'fc1_w': 0.05 * jax.random.normal(ks[4], (120, 16 * 4 * 4), jnp.float32),
        'fc1_b': 0.05 * jax.random.normal(ks[5], (120,), jnp.float32),
        'fc2_w': 0.05 * jax.random.normal(ks[6], (84, 120), jnp.float32),
        'fc2_b': 0.05 * jax.random.normal(ks[7], (84,), jnp.float32),
        'fc3_w': 0.05 * jax.random.normal(ks[8], (num_classes, 84), jnp.float32),
        'fc3_b': 0.05 * jax.random.normal(ks[9], (num_classes,), jnp.float32),
    }

    # LeNet requires 28x28 single-channel input (fc1 expects 16*4*4 features).
    x = jax.random.normal(ks[10], (B, 1, 28, 28), jnp.float32)

    out = jax.block_until_ready(jax.jit(lenet_forward)(x, params))
    assert out.shape == (B, num_classes), out.shape

    ref = jax.block_until_ready(lenet_ref(x, params))
    max_err = float(jnp.max(jnp.abs(out - ref)))
    assert max_err < 1e-3, f"mismatch vs reference: {max_err}"

    print("KERNEL_OK")
</pallas_src>

<mosaic_0001>
module attributes {stable_mosaic.version = 11 : i64} {
  func.func @_lenet_fused_kernel(%arg0: i32, %arg1: memref<8x28x28xf32, #tpu.memory_space<vmem>>, %arg2: memref<5x28x144xf32, #tpu.memory_space<vmem>>, %arg3: memref<1x144xf32, #tpu.memory_space<vmem>>, %arg4: memref<144x72xf32, #tpu.memory_space<vmem>>, %arg5: memref<144x72xf32, #tpu.memory_space<vmem>>, %arg6: memref<5x72x128xf32, #tpu.memory_space<vmem>>, %arg7: memref<1x128xf32, #tpu.memory_space<vmem>>, %arg8: memref<128x64xf32, #tpu.memory_space<vmem>>, %arg9: memref<128x64xf32, #tpu.memory_space<vmem>>, %arg10: memref<4x64x120xf32, #tpu.memory_space<vmem>>, %arg11: memref<1x120xf32, #tpu.memory_space<vmem>>, %arg12: memref<120x84xf32, #tpu.memory_space<vmem>>, %arg13: memref<1x84xf32, #tpu.memory_space<vmem>>, %arg14: memref<84x128xf32, #tpu.memory_space<vmem>>, %arg15: memref<1x128xf32, #tpu.memory_space<vmem>>, %arg16: memref<8x128xf32, #tpu.memory_space<vmem>>) attributes {dimension_semantics = [#tpu.dimension_semantics<parallel>], iteration_bounds = array<i64: 2>, scalar_prefetch = 0 : i64, scratch_operands = 0 : i64, tpu.core_type = #tpu.core_type<tc>, window_params = [{transform_indices = @transform_0, window_bounds = array<i64: 8, 28, 28>}, {pipeline_mode = #tpu.pipeline_mode<synchronous>, transform_indices = @transform_1, window_bounds = array<i64: 5, 28, 144>}, {pipeline_mode = #tpu.pipeline_mode<synchronous>, transform_indices = @transform_2, window_bounds = array<i64: 1, 144>}, {pipeline_mode = #tpu.pipeline_mode<synchronous>, transform_indices = @transform_3, window_bounds = array<i64: 144, 72>}, {pipeline_mode = #tpu.pipeline_mode<synchronous>, transform_indices = @transform_4, window_bounds = array<i64: 144, 72>}, {pipeline_mode = #tpu.pipeline_mode<synchronous>, transform_indices = @transform_5, window_bounds = array<i64: 5, 72, 128>}, {pipeline_mode = #tpu.pipeline_mode<synchronous>, transform_indices = @transform_6, window_bounds = array<i64: 1, 128>}, {pipeline_mode = #tpu.pipeline_mode<synchronous>, transform_indices = @transform_7, window_bounds = array<i64: 128, 64>}, {pipeline_mode = #tpu.pipeline_mode<synchronous>, transform_indices = @transform_8, window_bounds = array<i64: 128, 64>}, {pipeline_mode = #tpu.pipeline_mode<synchronous>, transform_indices = @transform_9, window_bounds = array<i64: 4, 64, 120>}, {pipeline_mode = #tpu.pipeline_mode<synchronous>, transform_indices = @transform_10, window_bounds = array<i64: 1, 120>}, {pipeline_mode = #tpu.pipeline_mode<synchronous>, transform_indices = @transform_11, window_bounds = array<i64: 120, 84>}, {pipeline_mode = #tpu.pipeline_mode<synchronous>, transform_indices = @transform_12, window_bounds = array<i64: 1, 84>}, {pipeline_mode = #tpu.pipeline_mode<synchronous>, transform_indices = @transform_13, window_bounds = array<i64: 84, 128>}, {pipeline_mode = #tpu.pipeline_mode<synchronous>, transform_indices = @transform_14, window_bounds = array<i64: 1, 128>}, {transform_indices = @transform_15, window_bounds = array<i64: 8, 128>}]} {
    %c0 = arith.constant 0 : index
    %c0_0 = arith.constant 0 : index
    %c0_1 = arith.constant 0 : index
    %0 = vector.load %arg1[%c0, %c0_0, %c0_1] : memref<8x28x28xf32, #tpu.memory_space<vmem>>, vector<8x28x28xf32>
    %1 = vector.extract_strided_slice %0 {offsets = [0, 0, 0], sizes = [8, 24, 28], strides = [1, 1, 1]} : vector<8x28x28xf32> to vector<8x24x28xf32>
    %2 = vector.shape_cast %1 : vector<8x24x28xf32> to vector<192x28xf32>
    %c0_2 = arith.constant 0 : index
    %c0_3 = arith.constant 0 : index
    %c0_4 = arith.constant 0 : index
    %3 = vector.load %arg2[%c0_2, %c0_3, %c0_4] : memref<5x28x144xf32, #tpu.memory_space<vmem>>, vector<1x28x144xf32>
    %4 = vector.shape_cast %3 : vector<1x28x144xf32> to vector<28x144xf32>
    %cst = arith.constant dense<0.000000e+00> : vector<192x144xf32>
    %5 = tpu.matmul %2, %4, %cst {dimension_numbers = #tpu.dot_dimension_numbers<[1], [0], [0], [1], [0, 0, 1, 1], [], []>} : vector<192x28xf32>, vector<28x144xf32>, vector<192x144xf32> -> vector<192x144xf32>
    %6 = vector.extract_strided_slice %0 {offsets = [0, 1, 0], sizes = [8, 24, 28], strides = [1, 1, 1]} : vector<8x28x28xf32> to vector<8x24x28xf32>
    %7 = vector.shape_cast %6 : vector<8x24x28xf32> to vector<192x28xf32>
    %c1 = arith.constant 1 : index
    %c0_5 = arith.constant 0 : index
    %c0_6 = arith.constant 0 : index
    %8 = vector.load %arg2[%c1, %c0_5, %c0_6] : memref<5x28x144xf32, #tpu.memory_space<vmem>>, vector<1x28x144xf32>
    %9 = vector.shape_cast %8 : vector<1x28x144xf32> to vector<28x144xf32>
    %cst_7 = arith.constant dense<0.000000e+00> : vector<192x144xf32>
    %10 = tpu.matmul %7, %9, %cst_7 {dimension_numbers = #tpu.dot_dimension_numbers<[1], [0], [0], [1], [0, 0, 1, 1], [], []>} : vector<192x28xf32>, vector<28x144xf32>, vector<192x144xf32> -> vector<192x144xf32>
    %11 = arith.addf %5, %10 : vector<192x144xf32>
    %12 = vector.extract_strided_slice %0 {offsets = [0, 2, 0], sizes = [8, 24, 28], strides = [1, 1, 1]} : vector<8x28x28xf32> to vector<8x24x28xf32>
    %13 = vector.shape_cast %12 : vector<8x24x28xf32> to vector<192x28xf32>
    %c2 = arith.constant 2 : index
    %c0_8 = arith.constant 0 : index
    %c0_9 = arith.constant 0 : index
    %14 = vector.load %arg2[%c2, %c0_8, %c0_9] : memref<5x28x144xf32, #tpu.memory_space<vmem>>, vector<1x28x144xf32>
    %15 = vector.shape_cast %14 : vector<1x28x144xf32> to vector<28x144xf32>
    %cst_10 = arith.constant dense<0.000000e+00> : vector<192x144xf32>
    %16 = tpu.matmul %13, %15, %cst_10 {dimension_numbers = #tpu.dot_dimension_numbers<[1], [0], [0], [1], [0, 0, 1, 1], [], []>} : vector<192x28xf32>, vector<28x144xf32>, vector<192x144xf32> -> vector<192x144xf32>
    %17 = arith.addf %11, %16 : vector<192x144xf32>
    %18 = vector.extract_strided_slice %0 {offsets = [0, 3, 0], sizes = [8, 24, 28], strides = [1, 1, 1]} : vector<8x28x28xf32> to vector<8x24x28xf32>
    %19 = vector.shape_cast %18 : vector<8x24x28xf32> to vector<192x28xf32>
    %c3 = arith.constant 3 : index
    %c0_11 = arith.constant 0 : index
    %c0_12 = arith.constant 0 : index
    %20 = vector.load %arg2[%c3, %c0_11, %c0_12] : memref<5x28x144xf32, #tpu.memory_space<vmem>>, vector<1x28x144xf32>
    %21 = vector.shape_cast %20 : vector<1x28x144xf32> to vector<28x144xf32>
    %cst_13 = arith.constant dense<0.000000e+00> : vector<192x144xf32>
    %22 = tpu.matmul %19, %21, %cst_13 {dimension_numbers = #tpu.dot_dimension_numbers<[1], [0], [0], [1], [0, 0, 1, 1], [], []>} : vector<192x28xf32>, vector<28x144xf32>, vector<192x144xf32> -> vector<192x144xf32>
    %23 = arith.addf %17, %22 : vector<192x144xf32>
    %24 = vector.extract_strided_slice %0 {offsets = [0, 4, 0], sizes = [8, 24, 28], strides = [1, 1, 1]} : vector<8x28x28xf32> to vector<8x24x28xf32>
    %25 = vector.shape_cast %24 : vector<8x24x28xf32> to vector<192x28xf32>
    %c4 = arith.constant 4 : index
    %c0_14 = arith.constant 0 : index
    %c0_15 = arith.constant 0 : index
    %26 = vector.load %arg2[%c4, %c0_14, %c0_15] : memref<5x28x144xf32, #tpu.memory_space<vmem>>, vector<1x28x144xf32>
    %27 = vector.shape_cast %26 : vector<1x28x144xf32> to vector<28x144xf32>
    %cst_16 = arith.constant dense<0.000000e+00> : vector<192x144xf32>
    %28 = tpu.matmul %25, %27, %cst_16 {dimension_numbers = #tpu.dot_dimension_numbers<[1], [0], [0], [1], [0, 0, 1, 1], [], []>} : vector<192x28xf32>, vector<28x144xf32>, vector<192x144xf32> -> vector<192x144xf32>
    %29 = arith.addf %23, %28 : vector<192x144xf32>
    %c0_17 = arith.constant 0 : index
    %c0_18 = arith.constant 0 : index
    %30 = vector.load %arg3[%c0_17, %c0_18] : memref<1x144xf32, #tpu.memory_space<vmem>>, vector<1x144xf32>
    %31 = vector.broadcast %30 : vector<1x144xf32> to vector<192x144xf32>
    %32 = arith.addf %29, %31 : vector<192x144xf32>
    %cst_19 = arith.constant 0.000000e+00 : f32
    %33 = vector.broadcast %cst_19 : f32 to vector<192x144xf32>
    %34 = arith.maximumf %32, %33 : vector<192x144xf32>
    %c0_20 = arith.constant 0 : index
    %c0_21 = arith.constant 0 : index
    %35 = vector.load %arg4[%c0_20, %c0_21] : memref<144x72xf32, #tpu.memory_space<vmem>>, vector<144x72xf32>
    %cst_22 = arith.constant dense<0.000000e+00> : vector<192x72xf32>
    %36 = tpu.matmul %34, %35, %cst_22 {dimension_numbers = #tpu.dot_dimension_numbers<[1], [0], [0], [1], [0, 0, 1, 1], [], []>} : vector<192x144xf32>, vector<144x72xf32>, vector<192x72xf32> -> vector<192x72xf32>
    %c0_23 = arith.constant 0 : index
    %c0_24 = arith.constant 0 : index
    %37 = vector.load %arg5[%c0_23, %c0_24] : memref<144x72xf32, #tpu.memory_space<vmem>>, vector<144x72xf32>
    %cst_25 = arith.constant dense<0.000000e+00> : vector<192x72xf32>
    %38 = tpu.matmul %34, %37, %cst_25 {dimension_numbers = #tpu.dot_dimension_numbers<[1], [0], [0], [1], [0, 0, 1, 1], [], []>} : vector<192x144xf32>, vector<144x72xf32>, vector<192x72xf32> -> vector<192x72xf32>
    %39 = arith.maximumf %36, %38 : vector<192x72xf32>
    %40 = vector.shape_cast %39 : vector<192x72xf32> to vector<8x12x2x72xf32>
    %41 = vector.extract_strided_slice %40 {offsets = [0, 0, 0, 0], sizes = [8, 12, 1, 72], strides = [1, 1, 1, 1]} : vector<8x12x2x72xf32> to vector<8x12x1x72xf32>
    %42 = vector.shape_cast %41 : vector<8x12x1x72xf32> to vector<8x12x72xf32>
    %43 = vector.extract_strided_slice %40 {offsets = [0, 0, 1, 0], sizes = [8, 12, 1, 72], strides = [1, 1, 1, 1]} : vector<8x12x2x72xf32> to vector<8x12x1x72xf32>
    %44 = vector.shape_cast %43 : vector<8x12x1x72xf32> to vector<8x12x72xf32>
    %45 = arith.maximumf %42, %44 : vector<8x12x72xf32>
    %46 = vector.extract_strided_slice %45 {offsets = [0, 0, 0], sizes = [8, 8, 72], strides = [1, 1, 1]} : vector<8x12x72xf32> to vector<8x8x72xf32>
    %47 = vector.shape_cast %46 : vector<8x8x72xf32> to vector<64x72xf32>
    %c0_26 = arith.constant 0 : index
    %c0_27 = arith.constant 0 : index
    %c0_28 = arith.constant 0 : index
    %48 = vector.load %arg6[%c0_26, %c0_27, %c0_28] : memref<5x72x128xf32, #tpu.memory_space<vmem>>, vector<1x72x128xf32>
    %49 = vector.shape_cast %48 : vector<1x72x128xf32> to vector<72x128xf32>
    %cst_29 = arith.constant dense<0.000000e+00> : vector<64x128xf32>
    %50 = tpu.matmul %47, %49, %cst_29 {dimension_numbers = #tpu.dot_dimension_numbers<[1], [0], [0], [1], [0, 0, 1, 1], [], []>} : vector<64x72xf32>, vector<72x128xf32>, vector<64x128xf32> -> vector<64x128xf32>
    %51 = vector.extract_strided_slice %45 {offsets = [0, 1, 0], sizes = [8, 8, 72], strides = [1, 1, 1]} : vector<8x12x72xf32> to vector<8x8x72xf32>
    %52 = vector.shape_cast %51 : vector<8x8x72xf32> to vector<64x72xf32>
    %c1_30 = arith.constant 1 : index
    %c0_31 = arith.constant 0 : index
    %c0_32 = arith.constant 0 : index
    %53 = vector.load %arg6[%c1_30, %c0_31, %c0_32] : memref<5x72x128xf32, #tpu.memory_space<vmem>>, vector<1x72x128xf32>
    %54 = vector.shape_cast %53 : vector<1x72x128xf32> to vector<72x128xf32>
    %cst_33 = arith.constant dense<0.000000e+00> : vector<64x128xf32>
    %55 = tpu.matmul %52, %54, %cst_33 {dimension_numbers = #tpu.dot_dimension_numbers<[1], [0], [0], [1], [0, 0, 1, 1], [], []>} : vector<64x72xf32>, vector<72x128xf32>, vector<64x128xf32> -> vector<64x128xf32>
    %56 = arith.addf %50, %55 : vector<64x128xf32>
    %57 = vector.extract_strided_slice %45 {offsets = [0, 2, 0], sizes = [8, 8, 72], strides = [1, 1, 1]} : vector<8x12x72xf32> to vector<8x8x72xf32>
    %58 = vector.shape_cast %57 : vector<8x8x72xf32> to vector<64x72xf32>
    %c2_34 = arith.constant 2 : index
    %c0_35 = arith.constant 0 : index
    %c0_36 = arith.constant 0 : index
    %59 = vector.load %arg6[%c2_34, %c0_35, %c0_36] : memref<5x72x128xf32, #tpu.memory_space<vmem>>, vector<1x72x128xf32>
    %60 = vector.shape_cast %59 : vector<1x72x128xf32> to vector<72x128xf32>
    %cst_37 = arith.constant dense<0.000000e+00> : vector<64x128xf32>
    %61 = tpu.matmul %58, %60, %cst_37 {dimension_numbers = #tpu.dot_dimension_numbers<[1], [0], [0], [1], [0, 0, 1, 1], [], []>} : vector<64x72xf32>, vector<72x128xf32>, vector<64x128xf32> -> vector<64x128xf32>
    %62 = arith.addf %56, %61 : vector<64x128xf32>
    %63 = vector.extract_strided_slice %45 {offsets = [0, 3, 0], sizes = [8, 8, 72], strides = [1, 1, 1]} : vector<8x12x72xf32> to vector<8x8x72xf32>
    %64 = vector.shape_cast %63 : vector<8x8x72xf32> to vector<64x72xf32>
    %c3_38 = arith.constant 3 : index
    %c0_39 = arith.constant 0 : index
    %c0_40 = arith.constant 0 : index
    %65 = vector.load %arg6[%c3_38, %c0_39, %c0_40] : memref<5x72x128xf32, #tpu.memory_space<vmem>>, vector<1x72x128xf32>
    %66 = vector.shape_cast %65 : vector<1x72x128xf32> to vector<72x128xf32>
    %cst_41 = arith.constant dense<0.000000e+00> : vector<64x128xf32>
    %67 = tpu.matmul %64, %66, %cst_41 {dimension_numbers = #tpu.dot_dimension_numbers<[1], [0], [0], [1], [0, 0, 1, 1], [], []>} : vector<64x72xf32>, vector<72x128xf32>, vector<64x128xf32> -> vector<64x128xf32>
    %68 = arith.addf %62, %67 : vector<64x128xf32>
    %69 = vector.extract_strided_slice %45 {offsets = [0, 4, 0], sizes = [8, 8, 72], strides = [1, 1, 1]} : vector<8x12x72xf32> to vector<8x8x72xf32>
    %70 = vector.shape_cast %69 : vector<8x8x72xf32> to vector<64x72xf32>
    %c4_42 = arith.constant 4 : index
    %c0_43 = arith.constant 0 : index
    %c0_44 = arith.constant 0 : index
    %71 = vector.load %arg6[%c4_42, %c0_43, %c0_44] : memref<5x72x128xf32, #tpu.memory_space<vmem>>, vector<1x72x128xf32>
    %72 = vector.shape_cast %71 : vector<1x72x128xf32> to vector<72x128xf32>
    %cst_45 = arith.constant dense<0.000000e+00> : vector<64x128xf32>
    %73 = tpu.matmul %70, %72, %cst_45 {dimension_numbers = #tpu.dot_dimension_numbers<[1], [0], [0], [1], [0, 0, 1, 1], [], []>} : vector<64x72xf32>, vector<72x128xf32>, vector<64x128xf32> -> vector<64x128xf32>
    %74 = arith.addf %68, %73 : vector<64x128xf32>
    %c0_46 = arith.constant 0 : index
    %c0_47 = arith.constant 0 : index
    %75 = vector.load %arg7[%c0_46, %c0_47] : memref<1x128xf32, #tpu.memory_space<vmem>>, vector<1x128xf32>
    %76 = vector.broadcast %75 : vector<1x128xf32> to vector<64x128xf32>
    %77 = arith.addf %74, %76 : vector<64x128xf32>
    %cst_48 = arith.constant 0.000000e+00 : f32
    %78 = vector.broadcast %cst_48 : f32 to vector<64x128xf32>
    %79 = arith.maximumf %77, %78 : vector<64x128xf32>
    %c0_49 = arith.constant 0 : index
    %c0_50 = arith.constant 0 : index
    %80 = vector.load %arg8[%c0_49, %c0_50] : memref<128x64xf32, #tpu.memory_space<vmem>>, vector<128x64xf32>
    %cst_51 = arith.constant dense<0.000000e+00> : vector<64x64xf32>
    %81 = tpu.matmul %79, %80, %cst_51 {dimension_numbers = #tpu.dot_dimension_numbers<[1], [0], [0], [1], [0, 0, 1, 1], [], []>} : vector<64x128xf32>, vector<128x64xf32>, vector<64x64xf32> -> vector<64x64xf32>
    %c0_52 = arith.constant 0 : index
    %c0_53 = arith.constant 0 : index
    %82 = vector.load %arg9[%c0_52, %c0_53] : memref<128x64xf32, #tpu.memory_space<vmem>>, vector<128x64xf32>
    %cst_54 = arith.constant dense<0.000000e+00> : vector<64x64xf32>
    %83 = tpu.matmul %79, %82, %cst_54 {dimension_numbers = #tpu.dot_dimension_numbers<[1], [0], [0], [1], [0, 0, 1, 1], [], []>} : vector<64x128xf32>, vector<128x64xf32>, vector<64x64xf32> -> vector<64x64xf32>
    %84 = arith.maximumf %81, %83 : vector<64x64xf32>
    %85 = vector.shape_cast %84 : vector<64x64xf32> to vector<8x4x2x64xf32>
    %86 = vector.extract_strided_slice %85 {offsets = [0, 0, 0, 0], sizes = [8, 4, 1, 64], strides = [1, 1, 1, 1]} : vector<8x4x2x64xf32> to vector<8x4x1x64xf32>
    %87 = vector.shape_cast %86 : vector<8x4x1x64xf32> to vector<8x4x64xf32>
    %88 = vector.extract_strided_slice %85 {offsets = [0, 0, 1, 0], sizes = [8, 4, 1, 64], strides = [1, 1, 1, 1]} : vector<8x4x2x64xf32> to vector<8x4x1x64xf32>
    %89 = vector.shape_cast %88 : vector<8x4x1x64xf32> to vector<8x4x64xf32>
    %90 = arith.maximumf %87, %89 : vector<8x4x64xf32>
    %91 = vector.extract_strided_slice %90 {offsets = [0, 0, 0], sizes = [8, 1, 64], strides = [1, 1, 1]} : vector<8x4x64xf32> to vector<8x1x64xf32>
    %92 = vector.shape_cast %91 : vector<8x1x64xf32> to vector<8x64xf32>
    %c0_55 = arith.constant 0 : index
    %c0_56 = arith.constant 0 : index
    %c0_57 = arith.constant 0 : index
    %93 = vector.load %arg10[%c0_55, %c0_56, %c0_57] : memref<4x64x120xf32, #tpu.memory_space<vmem>>, vector<1x64x120xf32>
    %94 = vector.shape_cast %93 : vector<1x64x120xf32> to vector<64x120xf32>
    %cst_58 = arith.constant dense<0.000000e+00> : vector<8x120xf32>
    %95 = tpu.matmul %92, %94, %cst_58 {dimension_numbers = #tpu.dot_dimension_numbers<[1], [0], [0], [1], [0, 0, 1, 1], [], []>} : vector<8x64xf32>, vector<64x120xf32>, vector<8x120xf32> -> vector<8x120xf32>
    %96 = vector.extract_strided_slice %90 {offsets = [0, 1, 0], sizes = [8, 1, 64], strides = [1, 1, 1]} : vector<8x4x64xf32> to vector<8x1x64xf32>
    %97 = vector.shape_cast %96 : vector<8x1x64xf32> to vector<8x64xf32>
    %c1_59 = arith.constant 1 : index
    %c0_60 = arith.constant 0 : index
    %c0_61 = arith.constant 0 : index
    %98 = vector.load %arg10[%c1_59, %c0_60, %c0_61] : memref<4x64x120xf32, #tpu.memory_space<vmem>>, vector<1x64x120xf32>
    %99 = vector.shape_cast %98 : vector<1x64x120xf32> to vector<64x120xf32>
    %cst_62 = arith.constant dense<0.000000e+00> : vector<8x120xf32>
    %100 = tpu.matmul %97, %99, %cst_62 {dimension_numbers = #tpu.dot_dimension_numbers<[1], [0], [0], [1], [0, 0, 1, 1], [], []>} : vector<8x64xf32>, vector<64x120xf32>, vector<8x120xf32> -> vector<8x120xf32>
    %101 = arith.addf %95, %100 : vector<8x120xf32>
    %102 = vector.extract_strided_slice %90 {offsets = [0, 2, 0], sizes = [8, 1, 64], strides = [1, 1, 1]} : vector<8x4x64xf32> to vector<8x1x64xf32>
    %103 = vector.shape_cast %102 : vector<8x1x64xf32> to vector<8x64xf32>
    %c2_63 = arith.constant 2 : index
    %c0_64 = arith.constant 0 : index
    %c0_65 = arith.constant 0 : index
    %104 = vector.load %arg10[%c2_63, %c0_64, %c0_65] : memref<4x64x120xf32, #tpu.memory_space<vmem>>, vector<1x64x120xf32>
    %105 = vector.shape_cast %104 : vector<1x64x120xf32> to vector<64x120xf32>
    %cst_66 = arith.constant dense<0.000000e+00> : vector<8x120xf32>
    %106 = tpu.matmul %103, %105, %cst_66 {dimension_numbers = #tpu.dot_dimension_numbers<[1], [0], [0], [1], [0, 0, 1, 1], [], []>} : vector<8x64xf32>, vector<64x120xf32>, vector<8x120xf32> -> vector<8x120xf32>
    %107 = arith.addf %101, %106 : vector<8x120xf32>
    %108 = vector.extract_strided_slice %90 {offsets = [0, 3, 0], sizes = [8, 1, 64], strides = [1, 1, 1]} : vector<8x4x64xf32> to vector<8x1x64xf32>
    %109 = vector.shape_cast %108 : vector<8x1x64xf32> to vector<8x64xf32>
    %c3_67 = arith.constant 3 : index
    %c0_68 = arith.constant 0 : index
    %c0_69 = arith.constant 0 : index
    %110 = vector.load %arg10[%c3_67, %c0_68, %c0_69] : memref<4x64x120xf32, #tpu.memory_space<vmem>>, vector<1x64x120xf32>
    %111 = vector.shape_cast %110 : vector<1x64x120xf32> to vector<64x120xf32>
    %cst_70 = arith.constant dense<0.000000e+00> : vector<8x120xf32>
    %112 = tpu.matmul %109, %111, %cst_70 {dimension_numbers = #tpu.dot_dimension_numbers<[1], [0], [0], [1], [0, 0, 1, 1], [], []>} : vector<8x64xf32>, vector<64x120xf32>, vector<8x120xf32> -> vector<8x120xf32>
    %113 = arith.addf %107, %112 : vector<8x120xf32>
    %c0_71 = arith.constant 0 : index
    %c0_72 = arith.constant 0 : index
    %114 = vector.load %arg11[%c0_71, %c0_72] : memref<1x120xf32, #tpu.memory_space<vmem>>, vector<1x120xf32>
    %115 = vector.broadcast %114 : vector<1x120xf32> to vector<8x120xf32>
    %116 = arith.addf %113, %115 : vector<8x120xf32>
    %cst_73 = arith.constant 0.000000e+00 : f32
    %117 = vector.broadcast %cst_73 : f32 to vector<8x120xf32>
    %118 = arith.maximumf %116, %117 : vector<8x120xf32>
    %c0_74 = arith.constant 0 : index
    %c0_75 = arith.constant 0 : index
    %119 = vector.load %arg12[%c0_74, %c0_75] : memref<120x84xf32, #tpu.memory_space<vmem>>, vector<120x84xf32>
    %cst_76 = arith.constant dense<0.000000e+00> : vector<8x84xf32>
    %120 = tpu.matmul %118, %119, %cst_76 {dimension_numbers = #tpu.dot_dimension_numbers<[1], [0], [0], [1], [0, 0, 1, 1], [], []>} : vector<8x120xf32>, vector<120x84xf32>, vector<8x84xf32> -> vector<8x84xf32>
    %c0_77 = arith.constant 0 : index
    %c0_78 = arith.constant 0 : index
    %121 = vector.load %arg13[%c0_77, %c0_78] : memref<1x84xf32, #tpu.memory_space<vmem>>, vector<1x84xf32>
    %122 = vector.broadcast %121 : vector<1x84xf32> to vector<8x84xf32>
    %123 = arith.addf %120, %122 : vector<8x84xf32>
    %cst_79 = arith.constant 0.000000e+00 : f32
    %124 = vector.broadcast %cst_79 : f32 to vector<8x84xf32>
    %125 = arith.maximumf %123, %124 : vector<8x84xf32>
    %c0_80 = arith.constant 0 : index
    %c0_81 = arith.constant 0 : index
    %126 = vector.load %arg14[%c0_80, %c0_81] : memref<84x128xf32, #tpu.memory_space<vmem>>, vector<84x128xf32>
    %cst_82 = arith.constant dense<0.000000e+00> : vector<8x128xf32>
    %127 = tpu.matmul %125, %126, %cst_82 {dimension_numbers = #tpu.dot_dimension_numbers<[1], [0], [0], [1], [0, 0, 1, 1], [], []>} : vector<8x84xf32>, vector<84x128xf32>, vector<8x128xf32> -> vector<8x128xf32>
    %c0_83 = arith.constant 0 : index
    %c0_84 = arith.constant 0 : index
    %128 = vector.load %arg15[%c0_83, %c0_84] : memref<1x128xf32, #tpu.memory_space<vmem>>, vector<1x128xf32>
    %129 = vector.broadcast %128 : vector<1x128xf32> to vector<8x128xf32>
    %130 = arith.addf %127, %129 : vector<8x128xf32>
    %c0_85 = arith.constant 0 : index
    %c0_86 = arith.constant 0 : index
    %131 = vector.load %arg16[%c0_85, %c0_86] : memref<8x128xf32, #tpu.memory_space<vmem>>, vector<8x128xf32>
    tpu.vector_store %arg16[%c0_85, %c0_86], %130 {strides = array<i32>} : memref<8x128xf32, #tpu.memory_space<vmem>>, vector<8x128xf32>,
    return
  }
  func.func @transform_0(%arg0: i32) -> (i32, i32, i32) {
    %c0_i32 = arith.constant 0 : i32
    %c0_i32_0 = arith.constant 0 : i32
    %c0_i32_1 = arith.constant 0 : i32
    return %arg0, %c0_i32, %c0_i32_0 : i32, i32, i32
  }
  func.func @transform_1(%arg0: i32) -> (i32, i32, i32) {
    %c0_i32 = arith.constant 0 : i32
    %c0_i32_0 = arith.constant 0 : i32
    %c0_i32_1 = arith.constant 0 : i32
    %c0_i32_2 = arith.constant 0 : i32
    return %c0_i32, %c0_i32_0, %c0_i32_1 : i32, i32, i32
  }
  func.func @transform_2(%arg0: i32) -> (i32, i32) {
    %c0_i32 = arith.constant 0 : i32
    %c0_i32_0 = arith.constant 0 : i32
    %c0_i32_1 = arith.constant 0 : i32
    return %c0_i32, %c0_i32_0 : i32, i32
  }
  func.func @transform_3(%arg0: i32) -> (i32, i32) {
    %c0_i32 = arith.constant 0 : i32
    %c0_i32_0 = arith.constant 0 : i32
    %c0_i32_1 = arith.constant 0 : i32
    return %c0_i32, %c0_i32_0 : i32, i32
  }
  func.func @transform_4(%arg0: i32) -> (i32, i32) {
    %c0_i32 = arith.constant 0 : i32
    %c0_i32_0 = arith.constant 0 : i32
    %c0_i32_1 = arith.constant 0 : i32
    return %c0_i32, %c0_i32_0 : i32, i32
  }
  func.func @transform_5(%arg0: i32) -> (i32, i32, i32) {
    %c0_i32 = arith.constant 0 : i32
    %c0_i32_0 = arith.constant 0 : i32
    %c0_i32_1 = arith.constant 0 : i32
    %c0_i32_2 = arith.constant 0 : i32
    return %c0_i32, %c0_i32_0, %c0_i32_1 : i32, i32, i32
  }
  func.func @transform_6(%arg0: i32) -> (i32, i32) {
    %c0_i32 = arith.constant 0 : i32
    %c0_i32_0 = arith.constant 0 : i32
    %c0_i32_1 = arith.constant 0 : i32
    return %c0_i32, %c0_i32_0 : i32, i32
  }
  func.func @transform_7(%arg0: i32) -> (i32, i32) {
    %c0_i32 = arith.constant 0 : i32
    %c0_i32_0 = arith.constant 0 : i32
    %c0_i32_1 = arith.constant 0 : i32
    return %c0_i32, %c0_i32_0 : i32, i32
  }
  func.func @transform_8(%arg0: i32) -> (i32, i32) {
    %c0_i32 = arith.constant 0 : i32
    %c0_i32_0 = arith.constant 0 : i32
    %c0_i32_1 = arith.constant 0 : i32
    return %c0_i32, %c0_i32_0 : i32, i32
  }
  func.func @transform_9(%arg0: i32) -> (i32, i32, i32) {
    %c0_i32 = arith.constant 0 : i32
    %c0_i32_0 = arith.constant 0 : i32
    %c0_i32_1 = arith.constant 0 : i32
    %c0_i32_2 = arith.constant 0 : i32
    return %c0_i32, %c0_i32_0, %c0_i32_1 : i32, i32, i32
  }
  func.func @transform_10(%arg0: i32) -> (i32, i32) {
    %c0_i32 = arith.constant 0 : i32
    %c0_i32_0 = arith.constant 0 : i32
    %c0_i32_1 = arith.constant 0 : i32
    return %c0_i32, %c0_i32_0 : i32, i32
  }
  func.func @transform_11(%arg0: i32) -> (i32, i32) {
    %c0_i32 = arith.constant 0 : i32
    %c0_i32_0 = arith.constant 0 : i32
    %c0_i32_1 = arith.constant 0 : i32
    return %c0_i32, %c0_i32_0 : i32, i32
  }
  func.func @transform_12(%arg0: i32) -> (i32, i32) {
    %c0_i32 = arith.constant 0 : i32
    %c0_i32_0 = arith.constant 0 : i32
    %c0_i32_1 = arith.constant 0 : i32
    return %c0_i32, %c0_i32_0 : i32, i32
  }
  func.func @transform_13(%arg0: i32) -> (i32, i32) {
    %c0_i32 = arith.constant 0 : i32
    %c0_i32_0 = arith.constant 0 : i32
    %c0_i32_1 = arith.constant 0 : i32
    return %c0_i32, %c0_i32_0 : i32, i32
  }
  func.func @transform_14(%arg0: i32) -> (i32, i32) {
    %c0_i32 = arith.constant 0 : i32
    %c0_i32_0 = arith.constant 0 : i32
    %c0_i32_1 = arith.constant 0 : i32
    return %c0_i32, %c0_i32_0 : i32, i32
  }
  func.func @transform_15(%arg0: i32) -> (i32, i32) {
    %c0_i32 = arith.constant 0 : i32
    %c0_i32_0 = arith.constant 0 : i32
    return %arg0, %c0_i32 : i32, i32
  }
}

</mosaic_0001>

<llo_original>
// kernel: lenet_forward.1
$region0: #{lenet_forward.1}
  #allocation0 [shape = 'u32[]', space=smem, size = 0x4, offset = 0x4, fixed_abs, tag = 'smem constant byte address 0x4 - core index']
  #allocation1 [shape = 'u32[144,128]{1,0:T(1,128)}', space=vmem, size = 0x12000, scoped, tag = 'internal scratch']
  %s0 = inlined_call_operand.vmem [shape: f32[16,28,28], index: 0, kind: input, shape index: {}]
  %s1 = inlined_call_operand.vmem [shape: f32[5,28,144], index: 1, kind: input, shape index: {}]
  %s2 = inlined_call_operand.vmem [shape: f32[1,144], index: 2, kind: input, shape index: {}]
  %s3 = inlined_call_operand.vmem [shape: f32[144,72], index: 3, kind: input, shape index: {}]
  %s4 = inlined_call_operand.vmem [shape: f32[144,72], index: 4, kind: input, shape index: {}]
  %s5 = inlined_call_operand.vmem [shape: f32[5,72,128], index: 5, kind: input, shape index: {}]
  %s6 = inlined_call_operand.vmem [shape: f32[1,128], index: 6, kind: input, shape index: {}]
  %s7 = inlined_call_operand.vmem [shape: f32[128,64], index: 7, kind: input, shape index: {}]
  %s8 = inlined_call_operand.vmem [shape: f32[128,64], index: 8, kind: input, shape index: {}]
  %s9 = inlined_call_operand.vmem [shape: f32[4,64,120], index: 9, kind: input, shape index: {}]
  %s10 = inlined_call_operand.vmem [shape: f32[1,120], index: 10, kind: input, shape index: {}]
  %s11 = inlined_call_operand.vmem [shape: f32[120,84], index: 11, kind: input, shape index: {}]
  %s12 = inlined_call_operand.vmem [shape: f32[1,84], index: 12, kind: input, shape index: {}]
  %s13 = inlined_call_operand.vmem [shape: f32[84,128], index: 13, kind: input, shape index: {}]
  %s14 = inlined_call_operand.vmem [shape: f32[1,128], index: 14, kind: input, shape index: {}]
  %s15 = inlined_call_operand.hbm [shape: f32[16,128], index: 15, kind: output, shape index: {}]
  %s16 = sld [smem:[#allocation0]]
  $region93: #{lenet_forward.1} parent=0
    _
  %s18 = ssub.s32 1, %s16
  %s19 = scalar_select 0, %s18, %s16
  $region1: #{lenet_forward.1} parent=0
    #allocation2 [shape = 'u8[8192]{0}', space=vmem, size = 0x2000, scoped, tag = 'output window, operand 0']
    #allocation3 [shape = 's32[2]{0}', space=sflag, size = 0x8, scoped, tag = 'scoped memory for lenet_forward.1']
    %20 = vsyncpa [#allocation3], 0
    %s21 = scalar_lea.sflag [#allocation3], 1
    %22 = vsyncpa %s21, 0
    loop: start=0, step=1, limit=4
    $region2: #{lenet_forward.1} parent=1 // loop_pre_header
      _
    $region3: #{lenet_forward.1} parent=1 // loop_header
      %s24 = sphi 0, %s28
      %p25 = scmp.ge.s32.totalorder %s24, 4
      %s34 = sphi 0, %s36
      %s37 = sphi 0, %s34
      %s38 = sphi 0, %s37
      %s54 = sphi 0, %s38
      %s58 = sphi 0, %s58
      %s60 = sphi 0, %s58
      %s61 = sphi 0, %s60
      %s75 = sphi 0, %s61
      %s79 = sphi 0, %s79
      %s81 = sphi 0, %s79
      %s82 = sphi 0, %s81
      %s96 = sphi 0, %s82
      %s100 = sphi 0, %s100
      %s102 = sphi 0, %s100
      %s103 = sphi 0, %s102
      %s117 = sphi 0, %s103
      %s121 = sphi 0, %s121
      %s123 = sphi 0, %s121
      %s124 = sphi 0, %s123
      %s138 = sphi 0, %s124
      %s142 = sphi 0, %s142
      %s144 = sphi 0, %s142
      %s145 = sphi 0, %s144
      %s159 = sphi 0, %s145
      %s163 = sphi 0, %s163
      %s165 = sphi 0, %s163
      %s166 = sphi 0, %s165
      %s180 = sphi 0, %s166
      %s184 = sphi 0, %s184
      %s186 = sphi 0, %s184
      %s187 = sphi 0, %s186
      %s201 = sphi 0, %s187
      %s205 = sphi 0, %s205
      %s207 = sphi 0, %s205
      %s208 = sphi 0, %s207
      %s222 = sphi 0, %s208
      %s226 = sphi 0, %s226
      %s228 = sphi 0, %s226
      %s229 = sphi 0, %s228
      %s243 = sphi 0, %s229
      %s247 = sphi 0, %s247
      %s249 = sphi 0, %s247
      %s250 = sphi 0, %s249
      %s264 = sphi 0, %s250
      %s268 = sphi 0, %s268
      %s270 = sphi 0, %s268
      %s271 = sphi 0, %s270
      %s285 = sphi 0, %s271
      %s289 = sphi 0, %s289
      %s291 = sphi 0, %s289
      %s292 = sphi 0, %s291
      %s306 = sphi 0, %s292
      %s310 = sphi 0, %s310
      %s312 = sphi 0, %s310
      %s313 = sphi 0, %s312
      %s327 = sphi 0, %s313
      %s331 = sphi 0, %s331
      %s333 = sphi 0, %s331
      %s334 = sphi 0, %s333
      %s348 = sphi 0, %s334
      %s354 = sphi 0, %s356
      %s357 = sphi 0, %s354
      %s358 = sphi 0, %s357
      %s374 = sphi 0, %s358
    $region4: #{lenet_forward.1} parent=1 // loop_header_branch
      %27 = sbr.rel (%p25) target = $region8
    $region5: #{lenet_forward.1} parent=1 // loop_body
      %s29 = ssub.s32 %s24, 1
      %s30 = ssub.s32 %s24, 2
      %s31 = sadd.s32 %s24, 1
      %s32 = ssub.s32 %s24, %s31
      %p33 = scmp.eq.s32.totalorder %s32, 0
      %s35 = sadd.s32 %s34, 1
      %s36 = scalar_select %p33, %s34, %s35
      %p39 = pneg %p33
      %p40 = scmp.eq.s32.totalorder %s24, 1
      %p41 = por %p39, %p40
      %p42 = scmp.ne.s32.totalorder %s34, %s37
      %p43 = scmp.eq.s32.totalorder %s24, 0
      %p44 = por %p42, %p43
      %p45 = scmp.ne.s32.totalorder %s34, %s37
      %p46 = scmp.eq.s32.totalorder %s29, 1
      %p47 = por %p45, %p46
      %p48 = scmp.ne.s32.totalorder %s37, %s38
      %p49 = scmp.eq.s32.totalorder %s29, 0
      %p50 = por %p48, %p49
      %p51 = scmp.ne.s32.totalorder %s37, %s38
      %p52 = scmp.eq.s32.totalorder %s30, 1
      %p53 = por %p51, %p52
      %p55 = scmp.ne.s32.totalorder %s38, %s54
      %p56 = scmp.eq.s32.totalorder %s30, 0
      %p57 = por %p55, %p56
      %s59 = sadd.s32 %s58, 1
      %p62 = scmp.eq.s32.totalorder %s24, 1
      %p63 = scmp.ne.s32.totalorder %s58, %s60
      %p64 = scmp.eq.s32.totalorder %s24, 0
      %p65 = por %p63, %p64
      %p66 = scmp.ne.s32.totalorder %s58, %s60
      %p67 = scmp.eq.s32.totalorder %s29, 1
      %p68 = por %p66, %p67
      %p69 = scmp.ne.s32.totalorder %s60, %s61
      %p70 = scmp.eq.s32.totalorder %s29, 0
      %p71 = por %p69, %p70
      %p72 = scmp.ne.s32.totalorder %s60, %s61
      %p73 = scmp.eq.s32.totalorder %s30, 1
      %p74 = por %p72, %p73
      %p76 = scmp.ne.s32.totalorder %s61, %s75
      %p77 = scmp.eq.s32.totalorder %s30, 0
      %p78 = por %p76, %p77
      %s80 = sadd.s32 %s79, 1
      %p83 = scmp.eq.s32.totalorder %s24, 1
      %p84 = scmp.ne.s32.totalorder %s79, %s81
      %p85 = scmp.eq.s32.totalorder %s24, 0
      %p86 = por %p84, %p85
      %p87 = scmp.ne.s32.totalorder %s79, %s81
      %p88 = scmp.eq.s32.totalorder %s29, 1
      %p89 = por %p87, %p88
      %p90 = scmp.ne.s32.totalorder %s81, %s82
      %p91 = scmp.eq.s32.totalorder %s29, 0
      %p92 = por %p90, %p91
      %p93 = scmp.ne.s32.totalorder %s81, %s82
      %p94 = scmp.eq.s32.totalorder %s30, 1
      %p95 = por %p93, %p94
      %p97 = scmp.ne.s32.totalorder %s82, %s96
      %p98 = scmp.eq.s32.totalorder %s30, 0
      %p99 = por %p97, %p98
      %s101 = sadd.s32 %s100, 1
      %p104 = scmp.eq.s32.totalorder %s24, 1
      %p105 = scmp.ne.s32.totalorder %s100, %s102
      %p106 = scmp.eq.s32.totalorder %s24, 0
      %p107 = por %p105, %p106
      %p108 = scmp.ne.s32.totalorder %s100, %s102
      %p109 = scmp.eq.s32.totalorder %s29, 1
      %p110 = por %p108, %p109
      %p111 = scmp.ne.s32.totalorder %s102, %s103
      %p112 = scmp.eq.s32.totalorder %s29, 0
      %p113 = por %p111, %p112
      %p114 = scmp.ne.s32.totalorder %s102, %s103
      %p115 = scmp.eq.s32.totalorder %s30, 1
      %p116 = por %p114, %p115
      %p118 = scmp.ne.s32.totalorder %s103, %s117
      %p119 = scmp.eq.s32.totalorder %s30, 0
      %p120 = por %p118, %p119
      %s122 = sadd.s32 %s121, 1
      %p125 = scmp.eq.s32.totalorder %s24, 1
      %p126 = scmp.ne.s32.totalorder %s121, %s123
      %p127 = scmp.eq.s32.totalorder %s24, 0
      %p128 = por %p126, %p127
      %p129 = scmp.ne.s32.totalorder %s121, %s123
      %p130 = scmp.eq.s32.totalorder %s29, 1
      %p131 = por %p129, %p130
      %p132 = scmp.ne.s32.totalorder %s123, %s124
      %p133 = scmp.eq.s32.totalorder %s29, 0
      %p134 = por %p132, %p133
      %p135 = scmp.ne.s32.totalorder %s123, %s124
      %p136 = scmp.eq.s32.totalorder %s30, 1
      %p137 = por %p135, %p136
      %p139 = scmp.ne.s32.totalorder %s124, %s138
      %p140 = scmp.eq.s32.totalorder %s30, 0
      %p141 = por %p139, %p140
      %s143 = sadd.s32 %s142, 1
      %p146 = scmp.eq.s32.totalorder %s24, 1
      %p147 = scmp.ne.s32.totalorder %s142, %s144
      %p148 = scmp.eq.s32.totalorder %s24, 0
      %p149 = por %p147, %p148
      %p150 = scmp.ne.s32.totalorder %s142, %s144
      %p151 = scmp.eq.s32.totalorder %s29, 1
      %p152 = por %p150, %p151
      %p153 = scmp.ne.s32.totalorder %s144, %s145
      %p154 = scmp.eq.s32.totalorder %s29, 0
      %p155 = por %p153, %p154
      %p156 = scmp.ne.s32.totalorder %s144, %s145
      %p157 = scmp.eq.s32.totalorder %s30, 1
      %p158 = por %p156, %p157
      %p160 = scmp.ne.s32.totalorder %s145, %s159
      %p161 = scmp.eq.s32.totalorder %s30, 0
      %p162 = por %p160, %p161
      %s164 = sadd.s32 %s163, 1
      %p167 = scmp.eq.s32.totalorder %s24, 1
      %p168 = scmp.ne.s32.totalorder %s163, %s165
      %p169 = scmp.eq.s32.totalorder %s24, 0
      %p170 = por %p168, %p169
      %p171 = scmp.ne.s32.totalorder %s163, %s165
      %p172 = scmp.eq.s32.totalorder %s29, 1
      %p173 = por %p171, %p172
      %p174 = scmp.ne.s32.totalorder %s165, %s166
      %p175 = scmp.eq.s32.totalorder %s29, 0
      %p176 = por %p174, %p175
      %p177 = scmp.ne.s32.totalorder %s165, %s166
      %p178 = scmp.eq.s32.totalorder %s30, 1
      %p179 = por %p177, %p178
      %p181 = scmp.ne.s32.totalorder %s166, %s180
      %p182 = scmp.eq.s32.totalorder %s30, 0
      %p183 = por %p181, %p182
      %s185 = sadd.s32 %s184, 1
      %p188 = scmp.eq.s32.totalorder %s24, 1
      %p189 = scmp.ne.s32.totalorder %s184, %s186
      %p190 = scmp.eq.s32.totalorder %s24, 0
      %p191 = por %p189, %p190
      %p192 = scmp.ne.s32.totalorder %s184, %s186
      %p193 = scmp.eq.s32.totalorder %s29, 1
      %p194 = por %p192, %p193
      %p195 = scmp.ne.s32.totalorder %s186, %s187
      %p196 = scmp.eq.s32.totalorder %s29, 0
      %p197 = por %p195, %p196
      %p198 = scmp.ne.s32.totalorder %s186, %s187
      %p199 = scmp.eq.s32.totalorder %s30, 1
      %p200 = por %p198, %p199
      %p202 = scmp.ne.s32.totalorder %s187, %s201
      %p203 = scmp.eq.s32.totalorder %s30, 0
      %p204 = por %p202, %p203
      %s206 = sadd.s32 %s205, 1
      %p209 = scmp.eq.s32.totalorder %s24, 1
      %p210 = scmp.ne.s32.totalorder %s205, %s207
      %p211 = scmp.eq.s32.totalorder %s24, 0
      %p212 = por %p210, %p211
      %p213 = scmp.ne.s32.totalorder %s205, %s207
      %p214 = scmp.eq.s32.totalorder %s29, 1
      %p215 = por %p213, %p214
      %p216 = scmp.ne.s32.totalorder %s207, %s208
      %p217 = scmp.eq.s32.totalorder %s29, 0
      %p218 = por %p216, %p217
      %p219 = scmp.ne.s32.totalorder %s207, %s208
      %p220 = scmp.eq.s32.totalorder %s30, 1
      %p221 = por %p219, %p220
      %p223 = scmp.ne.s32.totalorder %s208, %s222
      %p224 = scmp.eq.s32.totalorder %s30, 0
      %p225 = por %p223, %p224
      %s227 = sadd.s32 %s226, 1
      %p230 = scmp.eq.s32.totalorder %s24, 1
      %p231 = scmp.ne.s32.totalorder %s226, %s228
      %p232 = scmp.eq.s32.totalorder %s24, 0
      %p233 = por %p231, %p232
      %p234 = scmp.ne.s32.totalorder %s226, %s228
      %p235 = scmp.eq.s32.totalorder %s29, 1
      %p236 = por %p234, %p235
      %p237 = scmp.ne.s32.totalorder %s228, %s229
      %p238 = scmp.eq.s32.totalorder %s29, 0
      %p239 = por %p237, %p238
      %p240 = scmp.ne.s32.totalorder %s228, %s229
      %p241 = scmp.eq.s32.totalorder %s30, 1
      %p242 = por %p240, %p241
      %p244 = scmp.ne.s32.totalorder %s229, %s243
      %p245 = scmp.eq.s32.totalorder %s30, 0
      %p246 = por %p244, %p245
      %s248 = sadd.s32 %s247, 1
      %p251 = scmp.eq.s32.totalorder %s24, 1
      %p252 = scmp.ne.s32.totalorder %s247, %s249
      %p253 = scmp.eq.s32.totalorder %s24, 0
      %p254 = por %p252, %p253
      %p255 = scmp.ne.s32.totalorder %s247, %s249
      %p256 = scmp.eq.s32.totalorder %s29, 1
      %p257 = por %p255, %p256
      %p258 = scmp.ne.s32.totalorder %s249, %s250
      %p259 = scmp.eq.s32.totalorder %s29, 0
      %p260 = por %p258, %p259
      %p261 = scmp.ne.s32.totalorder %s249, %s250
      %p262 = scmp.eq.s32.totalorder %s30, 1
      %p263 = por %p261, %p262
      %p265 = scmp.ne.s32.totalorder %s250, %s264
      %p266 = scmp.eq.s32.totalorder %s30, 0
      %p267 = por %p265, %p266
      %s269 = sadd.s32 %s268, 1
      %p272 = scmp.eq.s32.totalorder %s24, 1
      %p273 = scmp.ne.s32.totalorder %s268, %s270
      %p274 = scmp.eq.s32.totalorder %s24, 0
      %p275 = por %p273, %p274
      %p276 = scmp.ne.s32.totalorder %s268, %s270
      %p277 = scmp.eq.s32.totalorder %s29, 1
      %p278 = por %p276, %p277
      %p279 = scmp.ne.s32.totalorder %s270, %s271
      %p280 = scmp.eq.s32.totalorder %s29, 0
      %p281 = por %p279, %p280
      %p282 = scmp.ne.s32.totalorder %s270, %s271
      %p283 = scmp.eq.s32.totalorder %s30, 1
      %p284 = por %p282, %p283
      %p286 = scmp.ne.s32.totalorder %s271, %s285
      %p287 = scmp.eq.s32.totalorder %s30, 0
      %p288 = por %p286, %p287
      %s290 = sadd.s32 %s289, 1
      %p293 = scmp.eq.s32.totalorder %s24, 1
      %p294 = scmp.ne.s32.totalorder %s289, %s291
      %p295 = scmp.eq.s32.totalorder %s24, 0
      %p296 = por %p294, %p295
      %p297 = scmp.ne.s32.totalorder %s289, %s291
      %p298 = scmp.eq.s32.totalorder %s29, 1
      %p299 = por %p297, %p298
      %p300 = scmp.ne.s32.totalorder %s291, %s292
      %p301 = scmp.eq.s32.totalorder %s29, 0
      %p302 = por %p300, %p301
      %p303 = scmp.ne.s32.totalorder %s291, %s292
      %p304 = scmp.eq.s32.totalorder %s30, 1
      %p305 = por %p303, %p304
      %p307 = scmp.ne.s32.totalorder %s292, %s306
      %p308 = scmp.eq.s32.totalorder %s30, 0
      %p309 = por %p307, %p308
      %s311 = sadd.s32 %s310, 1
      %p314 = scmp.eq.s32.totalorder %s24, 1
      %p315 = scmp.ne.s32.totalorder %s310, %s312
      %p316 = scmp.eq.s32.totalorder %s24, 0
      %p317 = por %p315, %p316
      %p318 = scmp.ne.s32.totalorder %s310, %s312
      %p319 = scmp.eq.s32.totalorder %s29, 1
      %p320 = por %p318, %p319
      %p321 = scmp.ne.s32.totalorder %s312, %s313
      %p322 = scmp.eq.s32.totalorder %s29, 0
      %p323 = por %p321, %p322
      %p324 = scmp.ne.s32.totalorder %s312, %s313
      %p325 = scmp.eq.s32.totalorder %s30, 1
      %p326 = por %p324, %p325
      %p328 = scmp.ne.s32.totalorder %s313, %s327
      %p329 = scmp.eq.s32.totalorder %s30, 0
      %p330 = por %p328, %p329
      %s332 = sadd.s32 %s331, 1
      %p335 = scmp.eq.s32.totalorder %s24, 1
      %p336 = scmp.ne.s32.totalorder %s331, %s333
      %p337 = scmp.eq.s32.totalorder %s24, 0
      %p338 = por %p336, %p337
      %p339 = scmp.ne.s32.totalorder %s331, %s333
      %p340 = scmp.eq.s32.totalorder %s29, 1
      %p341 = por %p339, %p340
      %p342 = scmp.ne.s32.totalorder %s333, %s334
      %p343 = scmp.eq.s32.totalorder %s29, 0
      %p344 = por %p342, %p343
      %p345 = scmp.ne.s32.totalorder %s333, %s334
      %p346 = scmp.eq.s32.totalorder %s30, 1
      %p347 = por %p345, %p346
      %p349 = scmp.ne.s32.totalorder %s334, %s348
      %p350 = scmp.eq.s32.totalorder %s30, 0
      %p351 = por %p349, %p350
      %s352 = ssub.s32 %s24, %s31
      %p353 = scmp.eq.s32.totalorder %s352, 0
      %s355 = sadd.s32 %s354, 1
      %s356 = scalar_select %p353, %s354, %s355
      %p359 = pneg %p353
      %p360 = scmp.eq.s32.totalorder %s24, 1
      %p361 = por %p359, %p360
      %p362 = scmp.ne.s32.totalorder %s354, %s357
      %p363 = scmp.eq.s32.totalorder %s24, 0
      %p364 = por %p362, %p363
      %p365 = scmp.ne.s32.totalorder %s354, %s357
      %p366 = scmp.eq.s32.totalorder %s29, 1
      %p367 = por %p365, %p366
      %p368 = scmp.ne.s32.totalorder %s357, %s358
      %p369 = scmp.eq.s32.totalorder %s29, 0
      %p370 = por %p368, %p369
      %p371 = scmp.ne.s32.totalorder %s357, %s358
      %p372 = scmp.eq.s32.totalorder %s30, 1
      %p373 = por %p371, %p372
      %p375 = scmp.ne.s32.totalorder %s358, %s374
      %p376 = scmp.eq.s32.totalorder %s30, 0
      %p377 = por %p375, %p376
      %p378 = scmp.le.s32.totalorder 1, %s24
      %p379 = scmp.lt.s32.totalorder %s24, 3
      %p380 = pnand %p378, %p379
      %p381 = pneg %p380
      // Predicated region
      $region9: #{lenet_forward.1} parent=5 // pred_check
        _
      $region10: #{lenet_forward.1} parent=5 // pred_check_branch
        %383 = sbr.rel (%p380) target = $region12
      $region11: #{lenet_forward.1} parent=5 // pred_region
        %s384 = ssub.s32 %s24, 1
        // Predicated region
        $region13: #{lenet_forward.1} parent=11 // pred_check
          %p385 = pneg %p71
        $region14: #{lenet_forward.1} parent=11 // pred_check_branch
          %387 = sbr.rel (%p385) target = $region16
        $region15: #{lenet_forward.1} parent=11 // pred_region
          _
        $region16: #{lenet_forward.1} parent=11 // pred_fallthru
          _
        // Predicated region
        $region17: #{lenet_forward.1} parent=11 // pred_check
          %p388 = pneg %p92
        $region18: #{lenet_forward.1} parent=11 // pred_check_branch
          %390 = sbr.rel (%p388) target = $region20
        $region19: #{lenet_forward.1} parent=11 // pred_region
          _
        $region20: #{lenet_forward.1} parent=11 // pred_fallthru
          _
        // Predicated region
        $region21: #{lenet_forward.1} parent=11 // pred_check
          %p391 = pneg %p113
        $region22: #{lenet_forward.1} parent=11 // pred_check_branch
          %393 = sbr.rel (%p391) target = $region24
        $region23: #{lenet_forward.1} parent=11 // pred_region
          _
        $region24: #{lenet_forward.1} parent=11 // pred_fallthru
          _
        // Predicated region
        $region25: #{lenet_forward.1} parent=11 // pred_check
          %p394 = pneg %p134
        $region26: #{lenet_forward.1} parent=11 // pred_check_branch
          %396 = sbr.rel (%p394) target = $region28
        $region27: #{lenet_forward.1} parent=11 // pred_region
          _
        $region28: #{lenet_forward.1} parent=11 // pred_fallthru
          _
        // Predicated region
        $region29: #{lenet_forward.1} parent=11 // pred_check
          %p397 = pneg %p155
        $region30: #{lenet_forward.1} parent=11 // pred_check_branch
          %399 = sbr.rel (%p397) target = $region32
        $region31: #{lenet_forward.1} parent=11 // pred_region
          _
        $region32: #{lenet_forward.1} parent=11 // pred_fallthru
          _
        // Predicated region
        $region33: #{lenet_forward.1} parent=11 // pred_check
          %p400 = pneg %p176
        $region34: #{lenet_forward.1} parent=11 // pred_check_branch
          %402 = sbr.rel (%p400) target = $region36
        $region35: #{lenet_forward.1} parent=11 // pred_region
          _
        $region36: #{lenet_forward.1} parent=11 // pred_fallthru
          _
        // Predicated region
        $region37: #{lenet_forward.1} parent=11 // pred_check
          %p403 = pneg %p197
        $region38: #{lenet_forward.1} parent=11 // pred_check_branch
          %405 = sbr.rel (%p403) target = $region40
        $region39: #{lenet_forward.1} parent=11 // pred_region
          _
        $region40: #{lenet_forward.1} parent=11 // pred_fallthru
          _
        // Predicated region
        $region41: #{lenet_forward.1} parent=11 // pred_check
          %p406 = pneg %p218
        $region42: #{lenet_forward.1} parent=11 // pred_check_branch
          %408 = sbr.rel (%p406) target = $region44
        $region43: #{lenet_forward.1} parent=11 // pred_region
          _
        $region44: #{lenet_forward.1} parent=11 // pred_fallthru
          _
        // Predicated region
        $region45: #{lenet_forward.1} parent=11 // pred_check
          %p409 = pneg %p239
        $region46: #{lenet_forward.1} parent=11 // pred_check_branch
          %411 = sbr.rel (%p409) target = $region48
        $region47: #{lenet_forward.1} parent=11 // pred_region
          _
        $region48: #{lenet_forward.1} parent=11 // pred_fallthru
          _
        // Predicated region
        $region49: #{lenet_forward.1} parent=11 // pred_check
          %p412 = pneg %p260
        $region50: #{lenet_forward.1} parent=11 // pred_check_branch
          %414 = sbr.rel (%p412) target = $region52
        $region51: #{lenet_forward.1} parent=11 // pred_region
          _
        $region52: #{lenet_forward.1} parent=11 // pred_fallthru
          _
        // Predicated region
        $region53: #{lenet_forward.1} parent=11 // pred_check
          %p415 = pneg %p281
        $region54: #{lenet_forward.1} parent=11 // pred_check_branch
          %417 = sbr.rel (%p415) target = $region56
        $region55: #{lenet_forward.1} parent=11 // pred_region
          _
        $region56: #{lenet_forward.1} parent=11 // pred_fallthru
          _
        // Predicated region
        $region57: #{lenet_forward.1} parent=11 // pred_check
          %p418 = pneg %p302
        $region58: #{lenet_forward.1} parent=11 // pred_check_branch
          %420 = sbr.rel (%p418) target = $region60
        $region59: #{lenet_forward.1} parent=11 // pred_region
          _
        $region60: #{lenet_forward.1} parent=11 // pred_fallthru
          _
        // Predicated region
        $region61: #{lenet_forward.1} parent=11 // pred_check
          %p421 = pneg %p323
        $region62: #{lenet_forward.1} parent=11 // pred_check_branch
          %423 = sbr.rel (%p421) target = $region64
        $region63: #{lenet_forward.1} parent=11 // pred_region
          _
        $region64: #{lenet_forward.1} parent=11 // pred_fallthru
          _
        // Predicated region
        $region65: #{lenet_forward.1} parent=11 // pred_check
          %p424 = pneg %p344
        $region66: #{lenet_forward.1} parent=11 // pred_check_branch
          %426 = sbr.rel (%p424) target = $region68
        $region67: #{lenet_forward.1} parent=11 // pred_region
          _
        $region68: #{lenet_forward.1} parent=11 // pred_fallthru
          _
      $region12: #{lenet_forward.1} parent=5 // pred_fallthru
        _
      %p427 = scmp.lt.s32.totalorder %s24, 2
      // Predicated region
      $region69: #{lenet_forward.1} parent=5 // pred_check
        %p428 = pneg %p427
      $region70: #{lenet_forward.1} parent=5 // pred_check_branch
        %430 = sbr.rel (%p428) target = $region72
      $region71: #{lenet_forward.1} parent=5 // pred_region
        // Predicated region
        $region73: #{lenet_forward.1} parent=71 // pred_check
          %p431 = pneg %p44
        $region74: #{lenet_forward.1} parent=71 // pred_check_branch
          %433 = sbr.rel (%p431) target = $region76
        $region75: #{lenet_forward.1} parent=71 // pred_region
          %s434 = smul.u32 8, %s24
          %p435 = scmp.lt.s32.totalorder %s434, 15
          %s436 = scalar_select %p435, %s434, 15
          %s437 = smul.addr %s436, 4
          %s438 = smul.addr %s437, 8
          %s439 = scalar_lea.vmem %s0, %s438
          %s440 = smul.u32 8, %s24
        $region76: #{lenet_forward.1} parent=71 // pred_fallthru
          _
      $region72: #{lenet_forward.1} parent=5 // pred_fallthru
        _
      %p441 = scmp.le.s32.totalorder 1, %s24
      %p442 = scmp.lt.s32.totalorder %s24, 3
      %p443 = pnand %p441, %p442
      %p444 = pneg %p443
      // Predicated region
      $region77: #{lenet_forward.1} parent=5 // pred_check
        _
      $region78: #{lenet_forward.1} parent=5 // pred_check_branch
        %446 = sbr.rel (%p443) target = $region80
      $region79: #{lenet_forward.1} parent=5 // pred_region
        %s447 = ssub.s32 %s24, 1
        %s448 = smul.u32 8, %s29
        %p449 = scmp.lt.s32.totalorder %s448, 15
        %s450 = scalar_select %p449, %s448, 15
        %s451 = smul.addr %s450, 4
        %s452 = smul.addr %s451, 8
        %s453 = scalar_lea.vmem %s0, %s452
        %p454 = pneg %p50
        %p455 = pneg %p47
        %p456 = pneg %p71
        %p457 = pneg %p68
        %p458 = pneg %p92
        %p459 = pneg %p89
        %p460 = pneg %p113
        %p461 = pneg %p110
        %p462 = pneg %p134
        %p463 = pneg %p131
        %p464 = pneg %p155
        %p465 = pneg %p152
        %p466 = pneg %p176
        %p467 = pneg %p173
        %p468 = pneg %p197
        %p469 = pneg %p194
        %p470 = pneg %p218
        %p471 = pneg %p215
        %p472 = pneg %p239
        %p473 = pneg %p236
        %p474 = pneg %p260
        %p475 = pneg %p257
        %p476 = pneg %p281
        %p477 = pneg %p278
        %p478 = pneg %p302
        %p479 = pneg %p299
        %p480 = pneg %p323
        %p481 = pneg %p320
        %p482 = pneg %p344
        %p483 = pneg %p341
        %p484 = pneg %p370
        %p485 = pneg %p367
        %s486 = sand.u32 %s357, 1
        %s487 = scalar_lea.sflag [#allocation3], %s486
        %s488 = sand.u32 %s357, 1
        %s489 = smul.addr %s488, 8
        %s490 = scalar_lea.vmem [#allocation2], %s489
        %s491 = smul.u32 8, %s29
        %p492 = scmp.lt.s32.totalorder %s491, 15
        %s493 = scalar_select %p492, %s491, 15
        %s494 = smul.addr %s493, 4
        %s495 = smul.addr %s494, 8
        %s496 = scalar_lea.vmem %s0, %s495
        %s497 = smul.u32 8, %s29
        %v498 = vld [vmem:[%s496] sm:$0xff]
        %v499 = vld [vmem:[%s496 + $0x8] sm:$0xff]
        %v500 = vld [vmem:[%s496 + $0x10] sm:$0xff]
        %v501 = vld [vmem:[%s496 + $0x18] sm:$0xf]
        %v502 = vld [vmem:[%s496 + $0x20] sm:$0xff]
        %v503 = vld [vmem:[%s496 + $0x28] sm:$0xff]
        %v504 = vld [vmem:[%s496 + $0x30] sm:$0xff]
        %v505 = vld [vmem:[%s496 + $0x38] sm:$0xf]
        %v506 = vld [vmem:[%s496 + $0x40] sm:$0xff]
        %v507 = vld [vmem:[%s496 + $0x48] sm:$0xff]
        %v508 = vld [vmem:[%s496 + $0x50] sm:$0xff]
        %v509 = vld [vmem:[%s496 + $0x58] sm:$0xf]
        %v510 = vld [vmem:[%s496 + $0x60] sm:$0xff]
        %v511 = vld [vmem:[%s496 + $0x68] sm:$0xff]
        %v512 = vld [vmem:[%s496 + $0x70] sm:$0xff]
        %v513 = vld [vmem:[%s496 + $0x78] sm:$0xf]
        %v514 = vld [vmem:[%s496 + $0x80] sm:$0xff]
        %v515 = vld [vmem:[%s496 + $0x88] sm:$0xff]
        %v516 = vld [vmem:[%s496 + $0x90] sm:$0xff]
        %v517 = vld [vmem:[%s496 + $0x98] sm:$0xf]
        %v518 = vld [vmem:[%s496 + $0xa0] sm:$0xff]
        %v519 = vld [vmem:[%s496 + $0xa8] sm:$0xff]
        %v520 = vld [vmem:[%s496 + $0xb0] sm:$0xff]
        %v521 = vld [vmem:[%s496 + $0xb8] sm:$0xf]
        %v522 = vld [vmem:[%s496 + $0xc0] sm:$0xff]
        %v523 = vld [vmem:[%s496 + $0xc8] sm:$0xff]
        %v524 = vld [vmem:[%s496 + $0xd0] sm:$0xff]
        %v525 = vld [vmem:[%s496 + $0xd8] sm:$0xf]
        %v526 = vld [vmem:[%s496 + $0xe0] sm:$0xff]
        %v527 = vld [vmem:[%s496 + $0xe8] sm:$0xff]
        %v528 = vld [vmem:[%s496 + $0xf0] sm:$0xff]
        %v529 = vld [vmem:[%s496 + $0xf8] sm:$0xf]
        %v530 = vld [vmem:[%s1] sm:$0xff]
        %v531 = vld [vmem:[%s1 + $0x8] sm:$0xff]
        %v532 = vld [vmem:[%s1 + $0x10] sm:$0xff]
        %v533 = vld [vmem:[%s1 + $0x18] sm:$0xff]
        %v534 = vld [vmem:[%s1 + $0x20] sm:$0xff]
        %v535 = vld [vmem:[%s1 + $0x28] sm:$0xff]
        %v536 = vld [vmem:[%s1 + $0x30] sm:$0xf]
        %v537 = vld [vmem:[%s1 + $0x38] sm:$0xf]
        %vm570 = vcmask 1046528
        %v571 = vrot.slane %v498, 1
        %v572 = vrot.slane %v499, 1
        %v573 = vsel %vm570, %v571, %v572
        %v574 = vrot.slane %v500, 1
        %v575 = vsel %vm570, %v572, %v574
        %v576 = vrot.slane %v501, 1
        %v577 = vsel %vm570, %v574, %v576
        %v578 = vrot.slane %v502, 1
        %v579 = vrot.slane %v503, 1
        %v580 = vsel %vm570, %v578, %v579
        %v581 = vrot.slane %v504, 1
        %v582 = vsel %vm570, %v579, %v581
        %v583 = vrot.slane %v505, 1
        %v584 = vsel %vm570, %v581, %v583
        %v585 = vrot.slane %v506, 1
        %v586 = vrot.slane %v507, 1
        %v587 = vsel %vm570, %v585, %v586
        %v588 = vrot.slane %v508, 1
        %v589 = vsel %vm570, %v586, %v588
        %v590 = vrot.slane %v509, 1
        %v591 = vsel %vm570, %v588, %v590
        %v592 = vrot.slane %v510, 1
        %v593 = vrot.slane %v511, 1
        %v594 = vsel %vm570, %v592, %v593
        %v595 = vrot.slane %v512, 1
        %v596 = vsel %vm570, %v593, %v595
        %v597 = vrot.slane %v513, 1
        %v598 = vsel %vm570, %v595, %v597
        %v599 = vrot.slane %v514, 1
        %v600 = vrot.slane %v515, 1
        %v601 = vsel %vm570, %v599, %v600
        %v602 = vrot.slane %v516, 1
        %v603 = vsel %vm570, %v600, %v602
        %v604 = vrot.slane %v517, 1
        %v605 = vsel %vm570, %v602, %v604
        %v606 = vrot.slane %v518, 1
        %v607 = vrot.slane %v519, 1
        %v608 = vsel %vm570, %v606, %v607
        %v609 = vrot.slane %v520, 1
        %v610 = vsel %vm570, %v607, %v609
        %v611 = vrot.slane %v521, 1
        %v612 = vsel %vm570, %v609, %v611
        %v613 = vrot.slane %v522, 1
        %v614 = vrot.slane %v523, 1
        %v615 = vsel %vm570, %v613, %v614
        %v616 = vrot.slane %v524, 1
        %v617 = vsel %vm570, %v614, %v616
        %v618 = vrot.slane %v525, 1
        %v619 = vsel %vm570, %v616, %v618
        %v620 = vrot.slane %v526, 1
        %v621 = vrot.slane %v527, 1
        %v622 = vsel %vm570, %v620, %v621
        %v623 = vrot.slane %v528, 1
        %v624 = vsel %vm570, %v621, %v623
        %v625 = vrot.slane %v529, 1
        %v626 = vsel %vm570, %v623, %v625
        %s627 = scalar_lea.vmem %s1, 64
        %v628 = vld [vmem:[%s627] sm:$0xff]
        %v629 = vld [vmem:[%s627 + $0x8] sm:$0xff]
        %v630 = vld [vmem:[%s627 + $0x10] sm:$0xff]
        %v631 = vld [vmem:[%s627 + $0x18] sm:$0xff]
        %v632 = vld [vmem:[%s627 + $0x20] sm:$0xff]
        %v633 = vld [vmem:[%s627 + $0x28] sm:$0xff]
        %v634 = vld [vmem:[%s627 + $0x30] sm:$0xf]
        %v635 = vld [vmem:[%s627 + $0x38] sm:$0xf]
        %vm636 = vcmask 228352
        %v637 = vsel %vm636, %v573, 0
        %v639 = vsel %vm636, %v575, 0
        %v641 = vsel %vm636, %v577, 0
        %v643 = vsel %vm636, %v580, 0
        %v645 = vsel %vm636, %v582, 0
        %v647 = vsel %vm636, %v584, 0
        %v649 = vsel %vm636, %v587, 0
        %v651 = vsel %vm636, %v589, 0
        %v653 = vsel %vm636, %v591, 0
        %v655 = vsel %vm636, %v594, 0
        %v657 = vsel %vm636, %v596, 0
        %v659 = vsel %vm636, %v598, 0
        %v661 = vsel %vm636, %v601, 0
        %v663 = vsel %vm636, %v603, 0
        %v665 = vsel %vm636, %v605, 0
        %v667 = vsel %vm636, %v608, 0
        %v669 = vsel %vm636, %v610, 0
        %v671 = vsel %vm636, %v612, 0
        %v673 = vsel %vm636, %v615, 0
        %v675 = vsel %vm636, %v617, 0
        %v677 = vsel %vm636, %v619, 0
        %v679 = vsel %vm636, %v622, 0
        %v681 = vsel %vm636, %v624, 0
        %v683 = vsel %vm636, %v626, 0
        %vm685 = vcmask 1043456
        %v687 = vsel %vm685, %v634, 0
        %v690 = vsel %vm685, %v635, 0
        %692 = vmatprep.subr.mxu0 %v629
        %693 = vmatpush1.msra.mxu0 %v628
        %694 = vmatprep.subr.mxu0 %v631
        %695 = vmatpush1.msra.mxu0 %v630
        %696 = vmatprep.subr.mxu0 %v633
        %697 = vmatpush1.msra.mxu0 %v632
        %698 = vmatprep.subr.mxu0 %v690
        %699 = vmatpush1.msra.mxu0 %v687
        %700 = vmatprep.subr.mxu0 0.0
        %701 = vmatpush1.msra.mxu0 0.0
        %702 = vmatprep.subr.mxu0 0.0
        %703 = vmatpush1.msra.mxu0 0.0
        %704 = vmatprep.subr.mxu0 0.0
        %705 = vmatpush1.msra.mxu0 0.0
        %706 = vmatprep.subr.mxu0 0.0
        %707 = vmatpush1.msra.mxu0 0.0
        %708 = vmatprep.subr.mxu0 0.0
        %709 = vmatpush1.msra.mxu0 0.0
        %710 = vmatprep.subr.mxu0 0.0
        %711 = vmatpush1.msra.mxu0 0.0
        %712 = vmatprep.subr.mxu0 0.0
        %713 = vmatpush1.msra.mxu0 0.0
        %714 = vmatprep.subr.mxu0 0.0
        %715 = vmatpush1.msra.mxu0 0.0
        %716 = vmatprep.subr.mxu0 0.0
        %717 = vmatpush1.msra.mxu0 0.0
        %718 = vmatprep.subr.mxu0 0.0
        %719 = vmatpush1.msra.mxu0 0.0
        %720 = vmatprep.subr.mxu0 0.0
        %721 = vmatpush1.msra.mxu0 0.0
        %722 = vmatprep.subr.mxu0 0.0
        %723 = vmatpush1.msra.mxu0 0.0
        %724 = vmatprep.subr.mxu0 0.0
        %725 = vmatpush1.msra.mxu0 0.0
        %726 = vmatprep.subr.mxu0 0.0
        %727 = vmatpush1.msra.mxu0 0.0
        %728 = vmatprep.subr.mxu0 0.0
        %729 = vmatpush1.msra.mxu0 0.0
        %730 = vmatprep.subr.mxu0 0.0
        %731 = vmatpush1.msra.mxu0 0.0
        %732 = vmatprep.subr.mxu0 0.0
        %733 = vmatpush1.msra.mxu0 0.0
        %734 = vmatprep.subr.mxu0 0.0
        %735 = vmatpush1.msra.mxu0 0.0
        %736 = vmatprep.subr.mxu0 0.0
        %737 = vmatpush1.msra.mxu0 0.0
        %738 = vmatprep.subr.mxu0 0.0
        %739 = vmatpush1.msra.mxu0 0.0
        %740 = vmatprep.subr.mxu0 0.0
        %741 = vmatpush1.msra.mxu0 0.0
        %742 = vmatprep.subr.mxu0 0.0
        %743 = vmatpush1.msra.mxu0 0.0
        %744 = vmatprep.subr.mxu0 0.0
        %745 = vmatpush1.msra.mxu0 0.0
        %746 = vmatprep.subr.mxu0 0.0
        %747 = vmatpush1.msra.mxu0 0.0
        %748 = vmatprep.subr.mxu0 0.0
        %749 = vmatpush1.msra.mxu0 0.0
        %750 = vmatprep.subr.mxu0 0.0
        %751 = vmatpush1.msra.mxu0 0.0
        %752 = vmatprep.subr.mxu0 0.0
        %753 = vmatpush1.msra.mxu0 0.0
        %754 = vmatprep.subr.mxu0 0.0
        %755 = vmatpush1.msra.mxu0 0.0
        %756 = vmatprep.mubr.f32.mxu0 0.0
        %757 = vmatmul.mubr.f32.gmra.mrb[0].mxu0 %v637
        %v758 = vpop.f32.mrb[0].mxu0
        %v759 = vadd.f32 0.0, %v758
        %v760 = vpop.f32.mrb[0].mxu0
        %v761 = vadd.f32 0.0, %v760
        %762 = vmatprep.mubr.f32.mxu0 0.0
        %763 = vmatmul.mubr.f32.gmra.mrb[0].mxu0 %v639
        %v764 = vpop.f32.mrb[0].mxu0
        %v765 = vadd.f32 0.0, %v764
        %v766 = vpop.f32.mrb[0].mxu0
        %v767 = vadd.f32 0.0, %v766
        %768 = vmatprep.mubr.f32.mxu0 0.0
        %769 = vmatmul.mubr.f32.gmra.mrb[0].mxu0 %v641
        %v770 = vpop.f32.mrb[0].mxu0
        %v771 = vadd.f32 0.0, %v770
        %v772 = vpop.f32.mrb[0].mxu0
        %v773 = vadd.f32 0.0, %v772
        %774 = vmatprep.mubr.f32.mxu0 0.0
        %775 = vmatmul.mubr.f32.gmra.mrb[0].mxu0 %v643
        %v776 = vpop.f32.mrb[0].mxu0
        %v777 = vadd.f32 0.0, %v776
        %v778 = vpop.f32.mrb[0].mxu0
        %v779 = vadd.f32 0.0, %v778
        %780 = vmatprep.mubr.f32.mxu0 0.0
        %781 = vmatmul.mubr.f32.gmra.mrb[0].mxu0 %v645
        %v782 = vpop.f32.mrb[0].mxu0
        %v783 = vadd.f32 0.0, %v782
        %v784 = vpop.f32.mrb[0].mxu0
        %v785 = vadd.f32 0.0, %v784
        %786 = vmatprep.mubr.f32.mxu0 0.0
        %787 = vmatmul.mubr.f32.gmra.mrb[0].mxu0 %v647
        %v788 = vpop.f32.mrb[0].mxu0
        %v789 = vadd.f32 0.0, %v788
        %v790 = vpop.f32.mrb[0].mxu0
        %v791 = vadd.f32 0.0, %v790
        %792 = vmatprep.mubr.f32.mxu0 0.0
        %793 = vmatmul.mubr.f32.gmra.mrb[0].mxu0 %v649
        %v794 = vpop.f32.mrb[0].mxu0
        %v795 = vadd.f32 0.0, %v794
        %v796 = vpop.f32.mrb[0].mxu0
        %v797 = vadd.f32 0.0, %v796
        %798 = vmatprep.mubr.f32.mxu0 0.0
        %799 = vmatmul.mubr.f32.gmra.mrb[0].mxu0 %v651
        %v800 = vpop.f32.mrb[0].mxu0
        %v801 = vadd.f32 0.0, %v800
        %v802 = vpop.f32.mrb[0].mxu0
        %v803 = vadd.f32 0.0, %v802
        %804 = vmatprep.mubr.f32.mxu0 0.0
        %805 = vmatmul.mubr.f32.gmra.mrb[0].mxu0 %v653
        %v806 = vpop.f32.mrb[0].mxu0
        %v807 = vadd.f32 0.0, %v806
        %v808 = vpop.f32.mrb[0].mxu0
        %v809 = vadd.f32 0.0, %v808
        %810 = vmatprep.mubr.f32.mxu0 0.0
        %811 = vmatmul.mubr.f32.gmra.mrb[0].mxu0 %v655
        %v812 = vpop.f32.mrb[0].mxu0
        %v813 = vadd.f32 0.0, %v812
        %v814 = vpop.f32.mrb[0].mxu0
        %v815 = vadd.f32 0.0, %v814
        %816 = vmatprep.mubr.f32.mxu0 0.0
        %817 = vmatmul.mubr.f32.gmra.mrb[0].mxu0 %v657
        %v818 = vpop.f32.mrb[0].mxu0
        %v819 = vadd.f32 0.0, %v818
        %v820 = vpop.f32.mrb[0].mxu0
        %v821 = vadd.f32 0.0, %v820
        %822 = vmatprep.mubr.f32.mxu0 0.0
        %823 = vmatmul.mubr.f32.gmra.mrb[0].mxu0 %v659
        %v824 = vpop.f32.mrb[0].mxu0
        %v825 = vadd.f32 0.0, %v824
        %v826 = vpop.f32.mrb[0].mxu0
        %v827 = vadd.f32 0.0, %v826
        %828 = vmatprep.mubr.f32.mxu0 0.0
        %829 = vmatmul.mubr.f32.gmra.mrb[0].mxu0 %v661
        %v830 = vpop.f32.mrb[0].mxu0
        %v831 = vadd.f32 0.0, %v830
        %v832 = vpop.f32.mrb[0].mxu0
        %v833 = vadd.f32 0.0, %v832
        %834 = vmatprep.mubr.f32.mxu0 0.0
        %835 = vmatmul.mubr.f32.gmra.mrb[0].mxu0 %v663
        %v836 = vpop.f32.mrb[0].mxu0
        %v837 = vadd.f32 0.0, %v836
        %v838 = vpop.f32.mrb[0].mxu0
        %v839 = vadd.f32 0.0, %v838
        %840 = vmatprep.mubr.f32.mxu0 0.0
        %841 = vmatmul.mubr.f32.gmra.mrb[0].mxu0 %v665
        %v842 = vpop.f32.mrb[0].mxu0
        %v843 = vadd.f32 0.0, %v842
        %v844 = vpop.f32.mrb[0].mxu0
        %v845 = vadd.f32 0.0, %v844
        %846 = vmatprep.mubr.f32.mxu0 0.0
        %847 = vmatmul.mubr.f32.gmra.mrb[0].mxu0 %v667
        %v848 = vpop.f32.mrb[0].mxu0
        %v849 = vadd.f32 0.0, %v848
        %v850 = vpop.f32.mrb[0].mxu0
        %v851 = vadd.f32 0.0, %v850
        %852 = vmatprep.mubr.f32.mxu0 0.0
        %853 = vmatmul.mubr.f32.gmra.mrb[0].mxu0 %v669
        %v854 = vpop.f32.mrb[0].mxu0
        %v855 = vadd.f32 0.0, %v854
        %v856 = vpop.f32.mrb[0].mxu0
        %v857 = vadd.f32 0.0, %v856
        %858 = vmatprep.mubr.f32.mxu0 0.0
        %859 = vmatmul.mubr.f32.gmra.mrb[0].mxu0 %v671
        %v860 = vpop.f32.mrb[0].mxu0
        %v861 = vadd.f32 0.0, %v860
        %v862 = vpop.f32.mrb[0].mxu0
        %v863 = vadd.f32 0.0, %v862
        %864 = vmatprep.mubr.f32.mxu0 0.0
        %865 = vmatmul.mubr.f32.gmra.mrb[0].mxu0 %v673
        %v866 = vpop.f32.mrb[0].mxu0
        %v867 = vadd.f32 0.0, %v866
        %v868 = vpop.f32.mrb[0].mxu0
        %v869 = vadd.f32 0.0, %v868
        %870 = vmatprep.mubr.f32.mxu0 0.0
        %871 = vmatmul.mubr.f32.gmra.mrb[0].mxu0 %v675
        %v872 = vpop.f32.mrb[0].mxu0
        %v873 = vadd.f32 0.0, %v872
        %v874 = vpop.f32.mrb[0].mxu0
        %v875 = vadd.f32 0.0, %v874
        %876 = vmatprep.mubr.f32.mxu0 0.0
        %877 = vmatmul.mubr.f32.gmra.mrb[0].mxu0 %v677
        %v878 = vpop.f32.mrb[0].mxu0
        %v879 = vadd.f32 0.0, %v878
        %v880 = vpop.f32.mrb[0].mxu0
        %v881 = vadd.f32 0.0, %v880
        %882 = vmatprep.mubr.f32.mxu0 0.0
        %883 = vmatmul.mubr.f32.gmra.mrb[0].mxu0 %v679
        %v884 = vpop.f32.mrb[0].mxu0
        %v885 = vadd.f32 0.0, %v884
        %v886 = vpop.f32.mrb[0].mxu0
        %v887 = vadd.f32 0.0, %v886
        %888 = vmatprep.mubr.f32.mxu0 0.0
        %889 = vmatmul.mubr.f32.gmra.mrb[0].mxu0 %v681
        %v890 = vpop.f32.mrb[0].mxu0
        %v891 = vadd.f32 0.0, %v890
        %v892 = vpop.f32.mrb[0].mxu0
        %v893 = vadd.f32 0.0, %v892
        %894 = vmatprep.mubr.f32.mxu0 0.0
        %895 = vmatmul.mubr.f32.gmra.mrb[0].mxu0 %v683
        %v896 = vpop.f32.mrb[0].mxu0
        %v897 = vadd.f32 0.0, %v896
        %v898 = vpop.f32.mrb[0].mxu0
        %v899 = vadd.f32 0.0, %v898
        %900 = vdwg.mxu0
        %v901 = vsel %vm636, %v498, 0
        %v903 = vsel %vm636, %v499, 0
        %v905 = vsel %vm636, %v500, 0
        %v907 = vsel %vm636, %v502, 0
        %v909 = vsel %vm636, %v503, 0
        %v911 = vsel %vm636, %v504, 0
        %v913 = vsel %vm636, %v506, 0
        %v915 = vsel %vm636, %v507, 0
        %v917 = vsel %vm636, %v508, 0
        %v919 = vsel %vm636, %v510, 0
        %v921 = vsel %vm636, %v511, 0
        %v923 = vsel %vm636, %v512, 0
        %v925 = vsel %vm636, %v514, 0
        %v927 = vsel %vm636, %v515, 0
        %v929 = vsel %vm636, %v516, 0
        %v931 = vsel %vm636, %v518, 0
        %v933 = vsel %vm636, %v519, 0
        %v935 = vsel %vm636, %v520, 0
        %v937 = vsel %vm636, %v522, 0
        %v939 = vsel %vm636, %v523, 0
        %v941 = vsel %vm636, %v524, 0
        %v943 = vsel %vm636, %v526, 0
        %v945 = vsel %vm636, %v527, 0
        %v947 = vsel %vm636, %v528, 0
        %v950 = vsel %vm685, %v536, 0
        %v953 = vsel %vm685, %v537, 0
        %955 = vmatprep.subr.mxu0 %v531
        %956 = vmatpush1.msra.mxu0 %v530
        %957 = vmatprep.subr.mxu0 %v533
        %958 = vmatpush1.msra.mxu0 %v532
        %959 = vmatprep.subr.mxu0 %v535
        %960 = vmatpush1.msra.mxu0 %v534
        %961 = vmatprep.subr.mxu0 %v953
        %962 = vmatpush1.msra.mxu0 %v950
        %963 = vmatprep.subr.mxu0 0.0
        %964 = vmatpush1.msra.mxu0 0.0
        %965 = vmatprep.subr.mxu0 0.0
        %966 = vmatpush1.msra.mxu0 0.0
        %967 = vmatprep.subr.mxu0 0.0
        %968 = vmatpush1.msra.mxu0 0.0
        %969 = vmatprep.subr.mxu0 0.0
        %970 = vmatpush1.msra.mxu0 0.0
        %971 = vmatprep.subr.mxu0 0.0
        %972 = vmatpush1.msra.mxu0 0.0
        %973 = vmatprep.subr.mxu0 0.0
        %974 = vmatpush1.msra.mxu0 0.0
        %975 = vmatprep.subr.mxu0 0.0
        %976 = vmatpush1.msra.mxu0 0.0
        %977 = vmatprep.subr.mxu0 0.0
        %978 = vmatpush1.msra.mxu0 0.0
        %979 = vmatprep.subr.mxu0 0.0
        %980 = vmatpush1.msra.mxu0 0.0
        %981 = vmatprep.subr.mxu0 0.0
        %982 = vmatpush1.msra.mxu0 0.0
        %983 = vmatprep.subr.mxu0 0.0
        %984 = vmatpush1.msra.mxu0 0.0
        %985 = vmatprep.subr.mxu0 0.0
        %986 = vmatpush1.msra.mxu0 0.0
        %987 = vmatprep.subr.mxu0 0.0
        %988 = vmatpush1.msra.mxu0 0.0
        %989 = vmatprep.subr.mxu0 0.0
        %990 = vmatpush1.msra.mxu0 0.0
        %991 = vmatprep.subr.mxu0 0.0
        %992 = vmatpush1.msra.mxu0 0.0
        %993 = vmatprep.subr.mxu0 0.0
        %994 = vmatpush1.msra.mxu0 0.0
        %995 = vmatprep.subr.mxu0 0.0
        %996 = vmatpush1.msra.mxu0 0.0
        %997 = vmatprep.subr.mxu0 0.0
        %998 = vmatpush1.msra.mxu0 0.0
        %999 = vmatprep.subr.mxu0 0.0
        %1000 = vmatpush1.msra.mxu0 0.0
        %1001 = vmatprep.subr.mxu0 0.0
        %1002 = vmatpush1.msra.mxu0 0.0
        %1003 = vmatprep.subr.mxu0 0.0
        %1004 = vmatpush1.msra.mxu0 0.0
        %1005 = vmatprep.subr.mxu0 0.0
        %1006 = vmatpush1.msra.mxu0 0.0
        %1007 = vmatprep.subr.mxu0 0.0
        %1008 = vmatpush1.msra.mxu0 0.0
        %1009 = vmatprep.subr.mxu0 0.0
        %1010 = vmatpush1.msra.mxu0 0.0
        %1011 = vmatprep.subr.mxu0 0.0
        %1012 = vmatpush1.msra.mxu0 0.0
        %1013 = vmatprep.subr.mxu0 0.0
        %1014 = vmatpush1.msra.mxu0 0.0
        %1015 = vmatprep.subr.mxu0 0.0
        %1016 = vmatpush1.msra.mxu0 0.0
        %1017 = vmatprep.subr.mxu0 0.0
        %1018 = vmatpush1.msra.mxu0 0.0
        %1019 = vmatprep.mubr.f32.mxu0 0.0
        %1020 = vmatmul.mubr.f32.gmra.mrb[0].mxu0 %v901
        %v1021 = vpop.f32.mrb[0].mxu0
        %v1022 = vadd.f32 %v759, %v1021
        %v1023 = vpop.f32.mrb[0].mxu0
        %v1024 = vadd.f32 %v761, %v1023
        %1025 = vmatprep.mubr.f32.mxu0 0.0
        %1026 = vmatmul.mubr.f32.gmra.mrb[0].mxu0 %v903
        %v1027 = vpop.f32.mrb[0].mxu0
        %v1028 = vadd.f32 %v765, %v1027
        %v1029 = vpop.f32.mrb[0].mxu0
        %v1030 = vadd.f32 %v767, %v1029
        %1031 = vmatprep.mubr.f32.mxu0 0.0
        %1032 = vmatmul.mubr.f32.gmra.mrb[0].mxu0 %v905
        %v1033 = vpop.f32.mrb[0].mxu0
        %v1034 = vadd.f32 %v771, %v1033
        %v1035 = vpop.f32.mrb[0].mxu0
        %v1036 = vadd.f32 %v773, %v1035
        %1037 = vmatprep.mubr.f32.mxu0 0.0
        %1038 = vmatmul.mubr.f32.gmra.mrb[0].mxu0 %v907
        %v1039 = vpop.f32.mrb[0].mxu0
        %v1040 = vadd.f32 %v777, %v1039
        %v1041 = vpop.f32.mrb[0].mxu0
        %v1042 = vadd.f32 %v779, %v1041
        %1043 = vmatprep.mubr.f32.mxu0 0.0
        %1044 = vmatmul.mubr.f32.gmra.mrb[0].mxu0 %v909
        %v1045 = vpop.f32.mrb[0].mxu0
        %v1046 = vadd.f32 %v783, %v1045
        %v1047 = vpop.f32.mrb[0].mxu0
        %v1048 = vadd.f32 %v785, %v1047
        %1049 = vmatprep.mubr.f32.mxu0 0.0
        %1050 = vmatmul.mubr.f32.gmra.mrb[0].mxu0 %v911
        %v1051 = vpop.f32.mrb[0].mxu0
        %v1052 = vadd.f32 %v789, %v1051
        %v1053 = vpop.f32.mrb[0].mxu0
        %v1054 = vadd.f32 %v791, %v1053
        %1055 = vmatprep.mubr.f32.mxu0 0.0
        %1056 = vmatmul.mubr.f32.gmra.mrb[0].mxu0 %v913
        %v1057 = vpop.f32.mrb[0].mxu0
        %v1058 = vadd.f32 %v795, %v1057
        %v1059 = vpop.f32.mrb[0].mxu0
        %v1060 = vadd.f32 %v797, %v1059
        %1061 = vmatprep.mubr.f32.mxu0 0.0
        %1062 = vmatmul.mubr.f32.gmra.mrb[0].mxu0 %v915
        %v1063 = vpop.f32.mrb[0].mxu0
        %v1064 = vadd.f32 %v801, %v1063
        %v1065 = vpop.f32.mrb[0].mxu0
        %v1066 = vadd.f32 %v803, %v1065
        %1067 = vmatprep.mubr.f32.mxu0 0.0
        %1068 = vmatmul.mubr.f32.gmra.mrb[0].mxu0 %v917
        %v1069 = vpop.f32.mrb[0].mxu0
        %v1070 = vadd.f32 %v807, %v1069
        %v1071 = vpop.f32.mrb[0].mxu0
        %v1072 = vadd.f32 %v809, %v1071
        %1073 = vmatprep.mubr.f32.mxu0 0.0
        %1074 = vmatmul.mubr.f32.gmra.mrb[0].mxu0 %v919
        %v1075 = vpop.f32.mrb[0].mxu0
        %v1076 = vadd.f32 %v813, %v1075
        %v1077 = vpop.f32.mrb[0].mxu0
        %v1078 = vadd.f32 %v815, %v1077
        %1079 = vmatprep.mubr.f32.mxu0 0.0
        %1080 = vmatmul.mubr.f32.gmra.mrb[0].mxu0 %v921
        %v1081 = vpop.f32.mrb[0].mxu0
        %v1082 = vadd.f32 %v819, %v1081
        %v1083 = vpop.f32.mrb[0].mxu0
        %v1084 = vadd.f32 %v821, %v1083
        %1085 = vmatprep.mubr.f32.mxu0 0.0
        %1086 = vmatmul.mubr.f32.gmra.mrb[0].mxu0 %v923
        %v1087 = vpop.f32.mrb[0].mxu0
        %v1088 = vadd.f32 %v825, %v1087
        %v1089 = vpop.f32.mrb[0].mxu0
        %v1090 = vadd.f32 %v827, %v1089
        %1091 = vmatprep.mubr.f32.mxu0 0.0
        %1092 = vmatmul.mubr.f32.gmra.mrb[0].mxu0 %v925
        %v1093 = vpop.f32.mrb[0].mxu0
        %v1094 = vadd.f32 %v831, %v1093
        %v1095 = vpop.f32.mrb[0].mxu0
        %v1096 = vadd.f32 %v833, %v1095
        %1097 = vmatprep.mubr.f32.mxu0 0.0
        %1098 = vmatmul.mubr.f32.gmra.mrb[0].mxu0 %v927
        %v1099 = vpop.f32.mrb[0].mxu0
        %v1100 = vadd.f32 %v837, %v1099
        %v1101 = vpop.f32.mrb[0].mxu0
        %v1102 = vadd.f32 %v839, %v1101
        %1103 = vmatprep.mubr.f32.mxu0 0.0
        %1104 = vmatmul.mubr.f32.gmra.mrb[0].mxu0 %v929
        %v1105 = vpop.f32.mrb[0].mxu0
        %v1106 = vadd.f32 %v843, %v1105
        %v1107 = vpop.f32.mrb[0].mxu0
        %v1108 = vadd.f32 %v845, %v1107
        %1109 = vmatprep.mubr.f32.mxu0 0.0
        %1110 = vmatmul.mubr.f32.gmra.mrb[0].mxu0 %v931
        %v1111 = vpop.f32.mrb[0].mxu0
        %v1112 = vadd.f32 %v849, %v1111
        %v1113 = vpop.f32.mrb[0].mxu0
        %v1114 = vadd.f32 %v851, %v1113
        %1115 = vmatprep.mubr.f32.mxu0 0.0
        %1116 = vmatmul.mubr.f32.gmra.mrb[0].mxu0 %v933
        %v1117 = vpop.f32.mrb[0].mxu0
        %v1118 = vadd.f32 %v855, %v1117
        %v1119 = vpop.f32.mrb[0].mxu0
        %v1120 = vadd.f32 %v857, %v1119
        %1121 = vmatprep.mubr.f32.mxu0 0.0
        %1122 = vmatmul.mubr.f32.gmra.mrb[0].mxu0 %v935
        %v1123 = vpop.f32.mrb[0].mxu0
        %v1124 = vadd.f32 %v861, %v1123
        %v1125 = vpop.f32.mrb[0].mxu0
        %v1126 = vadd.f32 %v863, %v1125
        %1127 = vmatprep.mubr.f32.mxu0 0.0
        %1128 = vmatmul.mubr.f32.gmra.mrb[0].mxu0 %v937
        %v1129 = vpop.f32.mrb[0].mxu0
        %v1130 = vadd.f32 %v867, %v1129
        %v1131 = vpop.f32.mrb[0].mxu0
        %v1132 = vadd.f32 %v869, %v1131
        %1133 = vmatprep.mubr.f32.mxu0 0.0
        %1134 = vmatmul.mubr.f32.gmra.mrb[0].mxu0 %v939
        %v1135 = vpop.f32.mrb[0].mxu0
        %v1136 = vadd.f32 %v873, %v1135
        %v1137 = vpop.f32.mrb[0].mxu0
        %v1138 = vadd.f32 %v875, %v1137
        %1139 = vmatprep.mubr.f32.mxu0 0.0
        %1140 = vmatmul.mubr.f32.gmra.mrb[0].mxu0 %v941
        %v1141 = vpop.f32.mrb[0].mxu0
        %v1142 = vadd.f32 %v879, %v1141
        %v1143 = vpop.f32.mrb[0].mxu0
        %v1144 = vadd.f32 %v881, %v1143
        %1145 = vmatprep.mubr.f32.mxu0 0.0
        %1146 = vmatmul.mubr.f32.gmra.mrb[0].mxu0 %v943
        %v1147 = vpop.f32.mrb[0].mxu0
        %v1148 = vadd.f32 %v885, %v1147
        %v1149 = vpop.f32.mrb[0].mxu0
        %v1150 = vadd.f32 %v887, %v1149
        %1151 = vmatprep.mubr.f32.mxu0 0.0
        %1152 = vmatmul.mubr.f32.gmra.mrb[0].mxu0 %v945
        %v1153 = vpop.f32.mrb[0].mxu0
        %v1154 = vadd.f32 %v891, %v1153
        %v1155 = vpop.f32.mrb[0].mxu0
        %v1156 = vadd.f32 %v893, %v1155
        %1157 = vmatprep.mubr.f32.mxu0 0.0
        %1158 = vmatmul.mubr.f32.gmra.mrb[0].mxu0 %v947
        %v1159 = vpop.f32.mrb[0].mxu0
        %v1160 = vadd.f32 %v897, %v1159
        %v1161 = vpop.f32.mrb[0].mxu0
        %v1162 = vadd.f32 %v899, %v1161
        %1163 = vdwg.mxu0
        %vm1164 = vcmask 1045504
        %v1165 = vrot.slane %v498, 2
        %v1166 = vrot.slane %v499, 2
        %v1167 = vsel %vm1164, %v1165, %v1166
        %v1168 = vrot.slane %v500, 2
        %v1169 = vsel %vm1164, %v1166, %v1168
        %v1170 = vrot.slane %v501, 2
        %v1171 = vsel %vm1164, %v1168, %v1170
        %v1172 = vrot.slane %v502, 2
        %v1173 = vrot.slane %v503, 2
        %v1174 = vsel %vm1164, %v1172, %v1173
        %v1175 = vrot.slane %v504, 2
        %v1176 = vsel %vm1164, %v1173, %v1175
        %v1177 = vrot.slane %v505, 2
        %v1178 = vsel %vm1164, %v1175, %v1177
        %v1179 = vrot.slane %v506, 2
        %v1180 = vrot.slane %v507, 2
        %v1181 = vsel %vm1164, %v1179, %v1180
        %v1182 = vrot.slane %v508, 2
        %v1183 = vsel %vm1164, %v1180, %v1182
        %v1184 = vrot.slane %v509, 2
        %v1185 = vsel %vm1164, %v1182, %v1184
        %v1186 = vrot.slane %v510, 2
        %v1187 = vrot.slane %v511, 2
        %v1188 = vsel %vm1164, %v1186, %v1187
        %v1189 = vrot.slane %v512, 2
        %v1190 = vsel %vm1164, %v1187, %v1189
        %v1191 = vrot.slane %v513, 2
        %v1192 = vsel %vm1164, %v1189, %v1191
        %v1193 = vrot.slane %v514, 2
        %v1194 = vrot.slane %v515, 2
        %v1195 = vsel %vm1164, %v1193, %v1194
        %v1196 = vrot.slane %v516, 2
        %v1197 = vsel %vm1164, %v1194, %v1196
        %v1198 = vrot.slane %v517, 2
        %v1199 = vsel %vm1164, %v1196, %v1198
        %v1200 = vrot.slane %v518, 2
        %v1201 = vrot.slane %v519, 2
        %v1202 = vsel %vm1164, %v1200, %v1201
        %v1203 = vrot.slane %v520, 2
        %v1204 = vsel %vm1164, %v1201, %v1203
        %v1205 = vrot.slane %v521, 2
        %v1206 = vsel %vm1164, %v1203, %v1205
        %v1207 = vrot.slane %v522, 2
        %v1208 = vrot.slane %v523, 2
        %v1209 = vsel %vm1164, %v1207, %v1208
        %v1210 = vrot.slane %v524, 2
        %v1211 = vsel %vm1164, %v1208, %v1210
        %v1212 = vrot.slane %v525, 2
        %v1213 = vsel %vm1164, %v1210, %v1212
        %v1214 = vrot.slane %v526, 2
        %v1215 = vrot.slane %v527, 2
        %v1216 = vsel %vm1164, %v1214, %v1215
        %v1217 = vrot.slane %v528, 2
        %v1218 = vsel %vm1164, %v1215, %v1217
        %v1219 = vrot.slane %v529, 2
        %v1220 = vsel %vm1164, %v1217, %v1219
        %s1221 = scalar_lea.vmem %s1, 128
        %v1222 = vld [vmem:[%s1221] sm:$0xff]
        %v1223 = vld [vmem:[%s1221 + $0x8] sm:$0xff]
        %v1224 = vld [vmem:[%s1221 + $0x10] sm:$0xff]
        %v1225 = vld [vmem:[%s1221 + $0x18] sm:$0xff]
        %v1226 = vld [vmem:[%s1221 + $0x20] sm:$0xff]
        %v1227 = vld [vmem:[%s1221 + $0x28] sm:$0xff]
        %v1228 = vld [vmem:[%s1221 + $0x30] sm:$0xf]
        %v1229 = vld [vmem:[%s1221 + $0x38] sm:$0xf]
        %v1230 = vsel %vm636, %v1167, 0
        %v1232 = vsel %vm636, %v1169, 0
        %v1234 = vsel %vm636, %v1171, 0
        %v1236 = vsel %vm636, %v1174, 0
        %v1238 = vsel %vm636, %v1176, 0
        %v1240 = vsel %vm636, %v1178, 0
        %v1242 = vsel %vm636, %v1181, 0
        %v1244 = vsel %vm636, %v1183, 0
        %v1246 = vsel %vm636, %v1185, 0
        %v1248 = vsel %vm636, %v1188, 0
        %v1250 = vsel %vm636, %v1190, 0
        %v1252 = vsel %vm636, %v1192, 0
        %v1254 = vsel %vm636, %v1195, 0
        %v1256 = vsel %vm636, %v1197, 0
        %v1258 = vsel %vm636, %v1199, 0
        %v1260 = vsel %vm636, %v1202, 0
        %v1262 = vsel %vm636, %v1204, 0
        %v1264 = vsel %vm636, %v1206, 0
        %v1266 = vsel %vm636, %v1209, 0
        %v1268 = vsel %vm636, %v1211, 0
        %v1270 = vsel %vm636, %v1213, 0
        %v1272 = vsel %vm636, %v1216, 0
        %v1274 = vsel %vm636, %v1218, 0
        %v1276 = vsel %vm636, %v1220, 0
        %v1279 = vsel %vm685, %v1228, 0
        %v1282 = vsel %vm685, %v1229, 0
        %1284 = vmatprep.subr.mxu0 %v1223
        %1285 = vmatpush1.msra.mxu0 %v1222
        %1286 = vmatprep.subr.mxu0 %v1225
        %1287 = vmatpush1.msra.mxu0 %v1224
        %1288 = vmatprep.subr.mxu0 %v1227
        %1289 = vmatpush1.msra.mxu0 %v1226
        %1290 = vmatprep.subr.mxu0 %v1282
        %1291 = vmatpush1.msra.mxu0 %v1279
        %1292 = vmatprep.subr.mxu0 0.0
        %1293 = vmatpush1.msra.mxu0 0.0
        %1294 = vmatprep.subr.mxu0 0.0
        %1295 = vmatpush1.msra.mxu0 0.0
        %1296 = vmatprep.subr.mxu0 0.0
        %1297 = vmatpush1.msra.mxu0 0.0
        %1298 = vmatprep.subr.mxu0 0.0
        %1299 = vmatpush1.msra.mxu0 0.0
        %1300 = vmatprep.subr.mxu0 0.0
        %1301 = vmatpush1.msra.mxu0 0.0
        %1302 = vmatprep.subr.mxu0 0.0
        %1303 = vmatpush1.msra.mxu0 0.0
        %1304 = vmatprep.subr.mxu0 0.0
        %1305 = vmatpush1.msra.mxu0 0.0
        %1306 = vmatprep.subr.mxu0 0.0
        %1307 = vmatpush1.msra.mxu0 0.0
        %1308 = vmatprep.subr.mxu0 0.0
        %1309 = vmatpush1.msra.mxu0 0.0
        %1310 = vmatprep.subr.mxu0 0.0
        %1311 = vmatpush1.msra.mxu0 0.0
        %1312 = vmatprep.subr.mxu0 0.0
        %1313 = vmatpush1.msra.mxu0 0.0
        %1314 = vmatprep.subr.mxu0 0.0
        %1315 = vmatpush1.msra.mxu0 0.0
        %1316 = vmatprep.subr.mxu0 0.0
        %1317 = vmatpush1.msra.mxu0 0.0
        %1318 = vmatprep.subr.mxu0 0.0
        %1319 = vmatpush1.msra.mxu0 0.0
        %1320 = vmatprep.subr.mxu0 0.0
        %1321 = vmatpush1.msra.mxu0 0.0
        %1322 = vmatprep.subr.mxu0 0.0
        %1323 = vmatpush1.msra.mxu0 0.0
        %1324 = vmatprep.subr.mxu0 0.0
        %1325 = vmatpush1.msra.mxu0 0.0
        %1326 = vmatprep.subr.mxu0 0.0
        %1327 = vmatpush1.msra.mxu0 0.0
        %1328 = vmatprep.subr.mxu0 0.0
        %1329 = vmatpush1.msra.mxu0 0.0
        %1330 = vmatprep.subr.mxu0 0.0
        %1331 = vmatpush1.msra.mxu0 0.0
        %1332 = vmatprep.subr.mxu0 0.0
        %1333 = vmatpush1.msra.mxu0 0.0
        %1334 = vmatprep.subr.mxu0 0.0
        %1335 = vmatpush1.msra.mxu0 0.0
        %1336 = vmatprep.subr.mxu0 0.0
        %1337 = vmatpush1.msra.mxu0 0.0
        %1338 = vmatprep.subr.mxu0 0.0
        %1339 = vmatpush1.msra.mxu0 0.0
        %1340 = vmatprep.subr.mxu0 0.0
        %1341 = vmatpush1.msra.mxu0 0.0
        %1342 = vmatprep.subr.mxu0 0.0
        %1343 = vmatpush1.msra.mxu0 0.0
        %1344 = vmatprep.subr.mxu0 0.0
        %1345 = vmatpush1.msra.mxu0 0.0
        %1346 = vmatprep.subr.mxu0 0.0
        %1347 = vmatpush1.msra.mxu0 0.0
        %1348 = vmatprep.mubr.f32.mxu0 0.0
        %1349 = vmatmul.mubr.f32.gmra.mrb[0].mxu0 %v1230
        %v1350 = vpop.f32.mrb[0].mxu0
        %v1351 = vadd.f32 0.0, %v1350
        %v1352 = vpop.f32.mrb[0].mxu0
        %v1353 = vadd.f32 0.0, %v1352
        %1354 = vmatprep.mubr.f32.mxu0 0.0
        %1355 = vmatmul.mubr.f32.gmra.mrb[0].mxu0 %v1232
        %v1356 = vpop.f32.mrb[0].mxu0
        %v1357 = vadd.f32 0.0, %v1356
        %v1358 = vpop.f32.mrb[0].mxu0
        %v1359 = vadd.f32 0.0, %v1358
        %1360 = vmatprep.mubr.f32.mxu0 0.0
        %1361 = vmatmul.mubr.f32.gmra.mrb[0].mxu0 %v1234
        %v1362 = vpop.f32.mrb[0].mxu0
        %v1363 = vadd.f32 0.0, %v1362
        %v1364 = vpop.f32.mrb[0].mxu0
        %v1365 = vadd.f32 0.0, %v1364
        %1366 = vmatprep.mubr.f32.mxu0 0.0
        %1367 = vmatmul.mubr.f32.gmra.mrb[0].mxu0 %v1236
        %v1368 = vpop.f32.mrb[0].mxu0
        %v1369 = vadd.f32 0.0, %v1368
        %v1370 = vpop.f32.mrb[0].mxu0
        %v1371 = vadd.f32 0.0, %v1370
        %1372 = vmatprep.mubr.f32.mxu0 0.0
        %1373 = vmatmul.mubr.f32.gmra.mrb[0].mxu0 %v1238
        %v1374 = vpop.f32.mrb[0].mxu0
        %v1375 = vadd.f32 0.0, %v1374
        %v1376 = vpop.f32.mrb[0].mxu0
        %v1377 = vadd.f32 0.0, %v1376
        %1378 = vmatprep.mubr.f32.mxu0 0.0
        %1379 = vmatmul.mubr.f32.gmra.mrb[0].mxu0 %v1240
        %v1380 = vpop.f32.mrb[0].mxu0
        %v1381 = vadd.f32 0.0, %v1380
        %v1382 = vpop.f32.mrb[0].mxu0
        %v1383 = vadd.f32 0.0, %v1382
        %1384 = vmatprep.mubr.f32.mxu0 0.0
        %1385 = vmatmul.mubr.f32.gmra.mrb[0].mxu0 %v1242
        %v1386 = vpop.f32.mrb[0].mxu0
        %v1387 = vadd.f32 0.0, %v1386
        %v1388 = vpop.f32.mrb[0].mxu0
        %v1389 = vadd.f32 0.0, %v1388
        %1390 = vmatprep.mubr.f32.mxu0 0.0
        %1391 = vmatmul.mubr.f32.gmra.mrb[0].mxu0 %v1244
        %v1392 = vpop.f32.mrb[0].mxu0
        %v1393 = vadd.f32 0.0, %v1392
        %v1394 = vpop.f32.mrb[0].mxu0
        %v1395 = vadd.f32 0.0, %v1394
        %1396 = vmatprep.mubr.f32.mxu0 0.0
        %1397 = vmatmul.mubr.f32.gmra.mrb[0].mxu0 %v1246
        %v1398 = vpop.f32.mrb[0].mxu0
        %v1399 = vadd.f32 0.0, %v1398
        %v1400 = vpop.f32.mrb[0].mxu0
        %v1401 = vadd.f32 0.0, %v1400
        %1402 = vmatprep.mubr.f32.mxu0 0.0
        %1403 = vmatmul.mubr.f32.gmra.mrb[0].mxu0 %v1248
        %v1404 = vpop.f32.mrb[0].mxu0
        %v1405 = vadd.f32 0.0, %v1404
        %v1406 = vpop.f32.mrb[0].mxu0
        %v1407 = vadd.f32 0.0, %v1406
        %1408 = vmatprep.mubr.f32.mxu0 0.0
        %1409 = vmatmul.mubr.f32.gmra.mrb[0].mxu0 %v1250
        %v1410 = vpop.f32.mrb[0].mxu0
        %v1411 = vadd.f32 0.0, %v1410
        %v1412 = vpop.f32.mrb[0].mxu0
        %v1413 = vadd.f32 0.0, %v1412
        %1414 = vmatprep.mubr.f32.mxu0 0.0
        %1415 = vmatmul.mubr.f32.gmra.mrb[0].mxu0 %v1252
        %v1416 = vpop.f32.mrb[0].mxu0
        %v1417 = vadd.f32 0.0, %v1416
        %v1418 = vpop.f32.mrb[0].mxu0
        %v1419 = vadd.f32 0.0, %v1418
        %1420 = vmatprep.mubr.f32.mxu0 0.0
        %1421 = vmatmul.mubr.f32.gmra.mrb[0].mxu0 %v1254
        %v1422 = vpop.f32.mrb[0].mxu0
        %v1423 = vadd.f32 0.0, %v1422
        %v1424 = vpop.f32.mrb[0].mxu0
        %v1425 = vadd.f32 0.0, %v1424
        %1426 = vmatprep.mubr.f32.mxu0 0.0
        %1427 = vmatmul.mubr.f32.gmra.mrb[0].mxu0 %v1256
        %v1428 = vpop.f32.mrb[0].mxu0
        %v1429 = vadd.f32 0.0, %v1428
        %v1430 = vpop.f32.mrb[0].mxu0
        %v1431 = vadd.f32 0.0, %v1430
        %1432 = vmatprep.mubr.f32.mxu0 0.0
        %1433 = vmatmul.mubr.f32.gmra.mrb[0].mxu0 %v1258
        %v1434 = vpop.f32.mrb[0].mxu0
        %v1435 = vadd.f32 0.0, %v1434
        %v1436 = vpop.f32.mrb[0].mxu0
        %v1437 = vadd.f32 0.0, %v1436
        %1438 = vmatprep.mubr.f32.mxu0 0.0
        %1439 = vmatmul.mubr.f32.gmra.mrb[0].mxu0 %v1260
        %v1440 = vpop.f32.mrb[0].mxu0
        %v1441 = vadd.f32 0.0, %v1440
        %v1442 = vpop.f32.mrb[0].mxu0
        %v1443 = vadd.f32 0.0, %v1442
        %1444 = vmatprep.mubr.f32.mxu0 0.0
        %1445 = vmatmul.mubr.f32.gmra.mrb[0].mxu0 %v1262
        %v1446 = vpop.f32.mrb[0].mxu0
        %v1447 = vadd.f32 0.0, %v1446
        %v1448 = vpop.f32.mrb[0].mxu0
        %v1449 = vadd.f32 0.0, %v1448
        %1450 = vmatprep.mubr.f32.mxu0 0.0
        %1451 = vmatmul.mubr.f32.gmra.mrb[0].mxu0 %v1264
        %v1452 = vpop.f32.mrb[0].mxu0
        %v1453 = vadd.f32 0.0, %v1452
        %v1454 = vpop.f32.mrb[0].mxu0
        %v1455 = vadd.f32 0.0, %v1454
        %1456 = vmatprep.mubr.f32.mxu0 0.0
        %1457 = vmatmul.mubr.f32.gmra.mrb[0].mxu0 %v1266
        %v1458 = vpop.f32.mrb[0].mxu0
        %v1459 = vadd.f32 0.0, %v1458
        %v1460 = vpop.f32.mrb[0].mxu0
        %v1461 = vadd.f32 0.0, %v1460
        %1462 = vmatprep.mubr.f32.mxu0 0.0
        %1463 = vmatmul.mubr.f32.gmra.mrb[0].mxu0 %v1268
        %v1464 = vpop.f32.mrb[0].mxu0
        %v1465 = vadd.f32 0.0, %v1464
        %v1466 = vpop.f32.mrb[0].mxu0
        %v1467 = vadd.f32 0.0, %v1466
        %1468 = vmatprep.mubr.f32.mxu0 0.0
        %1469 = vmatmul.mubr.f32.gmra.mrb[0].mxu0 %v1270
        %v1470 = vpop.f32.mrb[0].mxu0
        %v1471 = vadd.f32 0.0, %v1470
        %v1472 = vpop.f32.mrb[0].mxu0
        %v1473 = vadd.f32 0.0, %v1472
        %1474 = vmatprep.mubr.f32.mxu0 0.0
        %1475 = vmatmul.mubr.f32.gmra.mrb[0].mxu0 %v1272
        %v1476 = vpop.f32.mrb[0].mxu0
        %v1477 = vadd.f32 0.0, %v1476
        %v1478 = vpop.f32.mrb[0].mxu0
        %v1479 = vadd.f32 0.0, %v1478
        %1480 = vmatprep.mubr.f32.mxu0 0.0
        %1481 = vmatmul.mubr.f32.gmra.mrb[0].mxu0 %v1274
        %v1482 = vpop.f32.mrb[0].mxu0
        %v1483 = vadd.f32 0.0, %v1482
        %v1484 = vpop.f32.mrb[0].mxu0
        %v1485 = vadd.f32 0.0, %v1484
        %1486 = vmatprep.mubr.f32.mxu0 0.0
        %1487 = vmatmul.mubr.f32.gmra.mrb[0].mxu0 %v1276
        %v1488 = vpop.f32.mrb[0].mxu0
        %v1489 = vadd.f32 0.0, %v1488
        %v1490 = vpop.f32.mrb[0].mxu0
        %v1491 = vadd.f32 0.0, %v1490
        %1492 = vdwg.mxu0
        %v1493 = vadd.f32 %v1022, %v1351
        %v1494 = vadd.f32 %v1024, %v1353
        %v1495 = vadd.f32 %v1028, %v1357
        %v1496 = vadd.f32 %v1030, %v1359
        %v1497 = vadd.f32 %v1034, %v1363
        %v1498 = vadd.f32 %v1036, %v1365
        %v1499 = vadd.f32 %v1040, %v1369
        %v1500 = vadd.f32 %v1042, %v1371
        %v1501 = vadd.f32 %v1046, %v1375
        %v1502 = vadd.f32 %v1048, %v1377
        %v1503 = vadd.f32 %v1052, %v1381
        %v1504 = vadd.f32 %v1054, %v1383
        %v1505 = vadd.f32 %v1058, %v1387
        %v1506 = vadd.f32 %v1060, %v1389
        %v1507 = vadd.f32 %v1064, %v1393
        %v1508 = vadd.f32 %v1066, %v1395
        %v1509 = vadd.f32 %v1070, %v1399
        %v1510 = vadd.f32 %v1072, %v1401
        %v1511 = vadd.f32 %v1076, %v1405
        %v1512 = vadd.f32 %v1078, %v1407
        %v1513 = vadd.f32 %v1082, %v1411
        %v1514 = vadd.f32 %v1084, %v1413
        %v1515 = vadd.f32 %v1088, %v1417
        %v1516 = vadd.f32 %v1090, %v1419
        %v1517 = vadd.f32 %v1094, %v1423
        %v1518 = vadd.f32 %v1096, %v1425
        %v1519 = vadd.f32 %v1100, %v1429
        %v1520 = vadd.f32 %v1102, %v1431
        %v1521 = vadd.f32 %v1106, %v1435
        %v1522 = vadd.f32 %v1108, %v1437
        %v1523 = vadd.f32 %v1112, %v1441
        %v1524 = vadd.f32 %v1114, %v1443
        %v1525 = vadd.f32 %v1118, %v1447
        %v1526 = vadd.f32 %v1120, %v1449
        %v1527 = vadd.f32 %v1124, %v1453
        %v1528 = vadd.f32 %v1126, %v1455
        %v1529 = vadd.f32 %v1130, %v1459
        %v1530 = vadd.f32 %v1132, %v1461
        %v1531 = vadd.f32 %v1136, %v1465
        %v1532 = vadd.f32 %v1138, %v1467
        %v1533 = vadd.f32 %v1142, %v1471
        %v1534 = vadd.f32 %v1144, %v1473
        %v1535 = vadd.f32 %v1148, %v1477
        %v1536 = vadd.f32 %v1150, %v1479
        %v1537 = vadd.f32 %v1154, %v1483
        %v1538 = vadd.f32 %v1156, %v1485
        %v1539 = vadd.f32 %v1160, %v1489
        %v1540 = vadd.f32 %v1162, %v1491
        %vm1541 = vcmask 1044480
        %v1542 = vrot.slane %v498, 3
        %v1543 = vrot.slane %v499, 3
        %v1544 = vsel %vm1541, %v1542, %v1543
        %v1545 = vrot.slane %v500, 3
        %v1546 = vsel %vm1541, %v1543, %v1545
        %v1547 = vrot.slane %v501, 3
        %v1548 = vsel %vm1541, %v1545, %v1547
        %v1549 = vrot.slane %v502, 3
        %v1550 = vrot.slane %v503, 3
        %v1551 = vsel %vm1541, %v1549, %v1550
        %v1552 = vrot.slane %v504, 3
        %v1553 = vsel %vm1541, %v1550, %v1552
        %v1554 = vrot.slane %v505, 3
        %v1555 = vsel %vm1541, %v1552, %v1554
        %v1556 = vrot.slane %v506, 3
        %v1557 = vrot.slane %v507, 3
        %v1558 = vsel %vm1541, %v1556, %v1557
        %v1559 = vrot.slane %v508, 3
        %v1560 = vsel %vm1541, %v1557, %v1559
        %v1561 = vrot.slane %v509, 3
        %v1562 = vsel %vm1541, %v1559, %v1561
        %v1563 = vrot.slane %v510, 3
        %v1564 = vrot.slane %v511, 3
        %v1565 = vsel %vm1541, %v1563, %v1564
        %v1566 = vrot.slane %v512, 3
        %v1567 = vsel %vm1541, %v1564, %v1566
        %v1568 = vrot.slane %v513, 3
        %v1569 = vsel %vm1541, %v1566, %v1568
        %v1570 = vrot.slane %v514, 3
        %v1571 = vrot.slane %v515, 3
        %v1572 = vsel %vm1541, %v1570, %v1571
        %v1573 = vrot.slane %v516, 3
        %v1574 = vsel %vm1541, %v1571, %v1573
        %v1575 = vrot.slane %v517, 3
        %v1576 = vsel %vm1541, %v1573, %v1575
        %v1577 = vrot.slane %v518, 3
        %v1578 = vrot.slane %v519, 3
        %v1579 = vsel %vm1541, %v1577, %v1578
        %v1580 = vrot.slane %v520, 3
        %v1581 = vsel %vm1541, %v1578, %v1580
        %v1582 = vrot.slane %v521, 3
        %v1583 = vsel %vm1541, %v1580, %v1582
        %v1584 = vrot.slane %v522, 3
        %v1585 = vrot.slane %v523, 3
        %v1586 = vsel %vm1541, %v1584, %v1585
        %v1587 = vrot.slane %v524, 3
        %v1588 = vsel %vm1541, %v1585, %v1587
        %v1589 = vrot.slane %v525, 3
        %v1590 = vsel %vm1541, %v1587, %v1589
        %v1591 = vrot.slane %v526, 3
        %v1592 = vrot.slane %v527, 3
        %v1593 = vsel %vm1541, %v1591, %v1592
        %v1594 = vrot.slane %v528, 3
        %v1595 = vsel %vm1541, %v1592, %v1594
        %v1596 = vrot.slane %v529, 3
        %v1597 = vsel %vm1541, %v1594, %v1596
        %s1598 = scalar_lea.vmem %s1, 192
        %v1599 = vld [vmem:[%s1598] sm:$0xff]
        %v1600 = vld [vmem:[%s1598 + $0x8] sm:$0xff]
        %v1601 = vld [vmem:[%s1598 + $0x10] sm:$0xff]
        %v1602 = vld [vmem:[%s1598 + $0x18] sm:$0xff]
        %v1603 = vld [vmem:[%s1598 + $0x20] sm:$0xff]
        %v1604 = vld [vmem:[%s1598 + $0x28] sm:$0xff]
        %v1605 = vld [vmem:[%s1598 + $0x30] sm:$0xf]
        %v1606 = vld [vmem:[%s1598 + $0x38] sm:$0xf]
        %v1607 = vsel %vm636, %v1544, 0
        %v1609 = vsel %vm636, %v1546, 0
        %v1611 = vsel %vm636, %v1548, 0
        %v1613 = vsel %vm636, %v1551, 0
        %v1615 = vsel %vm636, %v1553, 0
        %v1617 = vsel %vm636, %v1555, 0
        %v1619 = vsel %vm636, %v1558, 0
        %v1621 = vsel %vm636, %v1560, 0
        %v1623 = vsel %vm636, %v1562, 0
        %v1625 = vsel %vm636, %v1565, 0
        %v1627 = vsel %vm636, %v1567, 0
        %v1629 = vsel %vm636, %v1569, 0
        %v1631 = vsel %vm636, %v1572, 0
        %v1633 = vsel %vm636, %v1574, 0
        %v1635 = vsel %vm636, %v1576, 0
        %v1637 = vsel %vm636, %v1579, 0
        %v1639 = vsel %vm636, %v1581, 0
        %v1641 = vsel %vm636, %v1583, 0
        %v1643 = vsel %vm636, %v1586, 0
        %v1645 = vsel %vm636, %v1588, 0
        %v1647 = vsel %vm636, %v1590, 0
        %v1649 = vsel %vm636, %v1593, 0
        %v1651 = vsel %vm636, %v1595, 0
        %v1653 = vsel %vm636, %v1597, 0
        %v1656 = vsel %vm685, %v1605, 0
        %v1659 = vsel %vm685, %v1606, 0
        %1661 = vmatprep.subr.mxu0 %v1600
        %1662 = vmatpush1.msra.mxu0 %v1599
        %1663 = vmatprep.subr.mxu0 %v1602
        %1664 = vmatpush1.msra.mxu0 %v1601
        %1665 = vmatprep.subr.mxu0 %v1604
        %1666 = vmatpush1.msra.mxu0 %v1603
        %1667 = vmatprep.subr.mxu0 %v1659
        %1668 = vmatpush1.msra.mxu0 %v1656
        %1669 = vmatprep.subr.mxu0 0.0
        %1670 = vmatpush1.msra.mxu0 0.0
        %1671 = vmatprep.subr.mxu0 0.0
        %1672 = vmatpush1.msra.mxu0 0.0
        %1673 = vmatprep.subr.mxu0 0.0
        %1674 = vmatpush1.msra.mxu0 0.0
        %1675 = vmatprep.subr.mxu0 0.0
        %1676 = vmatpush1.msra.mxu0 0.0
        %1677 = vmatprep.subr.mxu0 0.0
        %1678 = vmatpush1.msra.mxu0 0.0
        %1679 = vmatprep.subr.mxu0 0.0
        %1680 = vmatpush1.msra.mxu0 0.0
        %1681 = vmatprep.subr.mxu0 0.0
        %1682 = vmatpush1.msra.mxu0 0.0
        %1683 = vmatprep.subr.mxu0 0.0
        %1684 = vmatpush1.msra.mxu0 0.0
        %1685 = vmatprep.subr.mxu0 0.0
        %1686 = vmatpush1.msra.mxu0 0.0
        %1687 = vmatprep.subr.mxu0 0.0
        %1688 = vmatpush1.msra.mxu0 0.0
        %1689 = vmatprep.subr.mxu0 0.0
        %1690 = vmatpush1.msra.mxu0 0.0
        %1691 = vmatprep.subr.mxu0 0.0
        %1692 = vmatpush1.msra.mxu0 0.0
        %1693 = vmatprep.subr.mxu0 0.0
        %1694 = vmatpush1.msra.mxu0 0.0
        %1695 = vmatprep.subr.mxu0 0.0
        %1696 = vmatpush1.msra.mxu0 0.0
        %1697 = vmatprep.subr.mxu0 0.0
        %1698 = vmatpush1.msra.mxu0 0.0
        %1699 = vmatprep.subr.mxu0 0.0
        %1700 = vmatpush1.msra.mxu0 0.0
        %1701 = vmatprep.subr.mxu0 0.0
        %1702 = vmatpush1.msra.mxu0 0.0
        %1703 = vmatprep.subr.mxu0 0.0
        %1704 = vmatpush1.msra.mxu0 0.0
        %1705 = vmatprep.subr.mxu0 0.0
        %1706 = vmatpush1.msra.mxu0 0.0
        %1707 = vmatprep.subr.mxu0 0.0
        %1708 = vmatpush1.msra.mxu0 0.0
        %1709 = vmatprep.subr.mxu0 0.0
        %1710 = vmatpush1.msra.mxu0 0.0
        %1711 = vmatprep.subr.mxu0 0.0
        %1712 = vmatpush1.msra.mxu0 0.0
        %1713 = vmatprep.subr.mxu0 0.0
        %1714 = vmatpush1.msra.mxu0 0.0
        %1715 = vmatprep.subr.mxu0 0.0
        %1716 = vmatpush1.msra.mxu0 0.0
        %1717 = vmatprep.subr.mxu0 0.0
        %1718 = vmatpush1.msra.mxu0 0.0
        %1719 = vmatprep.subr.mxu0 0.0
        %1720 = vmatpush1.msra.mxu0 0.0
        %1721 = vmatprep.subr.mxu0 0.0
        %1722 = vmatpush1.msra.mxu0 0.0
        %1723 = vmatprep.subr.mxu0 0.0
        %1724 = vmatpush1.msra.mxu0 0.0
        %1725 = vmatprep.mubr.f32.mxu0 0.0
        %1726 = vmatmul.mubr.f32.gmra.mrb[0].mxu0 %v1607
        %v1727 = vpop.f32.mrb[0].mxu0
        %v1728 = vadd.f32 0.0, %v1727
        %v1729 = vpop.f32.mrb[0].mxu0
        %v1730 = vadd.f32 0.0, %v1729
        %1731 = vmatprep.mubr.f32.mxu0 0.0
        %1732 = vmatmul.mubr.f32.gmra.mrb[0].mxu0 %v1609
        %v1733 = vpop.f32.mrb[0].mxu0
        %v1734 = vadd.f32 0.0, %v1733
        %v1735 = vpop.f32.mrb[0].mxu0
        %v1736 = vadd.f32 0.0, %v1735
        %1737 = vmatprep.mubr.f32.mxu0 0.0
        %1738 = vmatmul.mubr.f32.gmra.mrb[0].mxu0 %v1611
        %v1739 = vpop.f32.mrb[0].mxu0
        %v1740 = vadd.f32 0.0, %v1739
        %v1741 = vpop.f32.mrb[0].mxu0
        %v1742 = vadd.f32 0.0, %v1741
        %1743 = vmatprep.mubr.f32.mxu0 0.0
        %1744 = vmatmul.mubr.f32.gmra.mrb[0].mxu0 %v1613
        %v1745 = vpop.f32.mrb[0].mxu0
        %v1746 = vadd.f32 0.0, %v1745
        %v1747 = vpop.f32.mrb[0].mxu0
        %v1748 = vadd.f32 0.0, %v1747
        %1749 = vmatprep.mubr.f32.mxu0 0.0
        %1750 = vmatmul.mubr.f32.gmra.mrb[0].mxu0 %v1615
        %v1751 = vpop.f32.mrb[0].mxu0
        %v1752 = vadd.f32 0.0, %v1751
        %v1753 = vpop.f32.mrb[0].mxu0
        %v1754 = vadd.f32 0.0, %v1753
        %1755 = vmatprep.mubr.f32.mxu0 0.0
        %1756 = vmatmul.mubr.f32.gmra.mrb[0].mxu0 %v1617
        %v1757 = vpop.f32.mrb[0].mxu0
        %v1758 = vadd.f32 0.0, %v1757
        %v1759 = vpop.f32.mrb[0].mxu0
        %v1760 = vadd.f32 0.0, %v1759
        %1761 = vmatprep.mubr.f32.mxu0 0.0
        %1762 = vmatmul.mubr.f32.gmra.mrb[0].mxu0 %v1619
        %v1763 = vpop.f32.mrb[0].mxu0
        %v1764 = vadd.f32 0.0, %v1763
        %v1765 = vpop.f32.mrb[0].mxu0
        %v1766 = vadd.f32 0.0, %v1765
        %1767 = vmatprep.mubr.f32.mxu0 0.0
        %1768 = vmatmul.mubr.f32.gmra.mrb[0].mxu0 %v1621
        %v1769 = vpop.f32.mrb[0].mxu0
        %v1770 = vadd.f32 0.0, %v1769
        %v1771 = vpop.f32.mrb[0].mxu0
        %v1772 = vadd.f32 0.0, %v1771
        %1773 = vmatprep.mubr.f32.mxu0 0.0
        %1774 = vmatmul.mubr.f32.gmra.mrb[0].mxu0 %v1623
        %v1775 = vpop.f32.mrb[0].mxu0
        %v1776 = vadd.f32 0.0, %v1775
        %v1777 = vpop.f32.mrb[0].mxu0
        %v1778 = vadd.f32 0.0, %v1777
        %1779 = vmatprep.mubr.f32.mxu0 0.0
        %1780 = vmatmul.mubr.f32.gmra.mrb[0].mxu0 %v1625
        %v1781 = vpop.f32.mrb[0].mxu0
        %v1782 = vadd.f32 0.0, %v1781
        %v1783 = vpop.f32.mrb[0].mxu0
        %v1784 = vadd.f32 0.0, %v1783
        %1785 = vmatprep.mubr.f32.mxu0 0.0
        %1786 = vmatmul.mubr.f32.gmra.mrb[0].mxu0 %v1627
        %v1787 = vpop.f32.mrb[0].mxu0
        %v1788 = vadd.f32 0.0, %v1787
        %v1789 = vpop.f32.mrb[0].mxu0
        %v1790 = vadd.f32 0.0, %v1789
        %1791 = vmatprep.mubr.f32.mxu0 0.0
        %1792 = vmatmul.mubr.f32.gmra.mrb[0].mxu0 %v1629
        %v1793 = vpop.f32.mrb[0].mxu0
        %v1794 = vadd.f32 0.0, %v1793
        %v1795 = vpop.f32.mrb[0].mxu0
        %v1796 = vadd.f32 0.0, %v1795
        %1797 = vmatprep.mubr.f32.mxu0 0.0
        %1798 = vmatmul.mubr.f32.gmra.mrb[0].mxu0 %v1631
        %v1799 = vpop.f32.mrb[0].mxu0
        %v1800 = vadd.f32 0.0, %v1799
        %v1801 = vpop.f32.mrb[0].mxu0
        %v1802 = vadd.f32 0.0, %v1801
        %1803 = vmatprep.mubr.f32.mxu0 0.0
        %1804 = vmatmul.mubr.f32.gmra.mrb[0].mxu0 %v1633
        %v1805 = vpop.f32.mrb[0].mxu0
        %v1806 = vadd.f32 0.0, %v1805
        %v1807 = vpop.f32.mrb[0].mxu0
        %v1808 = vadd.f32 0.0, %v1807
        %1809 = vmatprep.mubr.f32.mxu0 0.0
        %1810 = vmatmul.mubr.f32.gmra.mrb[0].mxu0 %v1635
        %v1811 = vpop.f32.mrb[0].mxu0
        %v1812 = vadd.f32 0.0, %v1811
        %v1813 = vpop.f32.mrb[0].mxu0
        %v1814 = vadd.f32 0.0, %v1813
        %1815 = vmatprep.mubr.f32.mxu0 0.0
        %1816 = vmatmul.mubr.f32.gmra.mrb[0].mxu0 %v1637
        %v1817 = vpop.f32.mrb[0].mxu0
        %v1818 = vadd.f32 0.0, %v1817
        %v1819 = vpop.f32.mrb[0].mxu0
        %v1820 = vadd.f32 0.0, %v1819
        %1821 = vmatprep.mubr.f32.mxu0 0.0
        %1822 = vmatmul.mubr.f32.gmra.mrb[0].mxu0 %v1639
        %v1823 = vpop.f32.mrb[0].mxu0
        %v1824 = vadd.f32 0.0, %v1823
        %v1825 = vpop.f32.mrb[0].mxu0
        %v1826 = vadd.f32 0.0, %v1825
        %1827 = vmatprep.mubr.f32.mxu0 0.0
        %1828 = vmatmul.mubr.f32.gmra.mrb[0].mxu0 %v1641
        %v1829 = vpop.f32.mrb[0].mxu0
        %v1830 = vadd.f32 0.0, %v1829
        %v1831 = vpop.f32.mrb[0].mxu0
        %v1832 = vadd.f32 0.0, %v1831
        %1833 = vmatprep.mubr.f32.mxu0 0.0
        %1834 = vmatmul.mubr.f32.gmra.mrb[0].mxu0 %v1643
        %v1835 = vpop.f32.mrb[0].mxu0
        %v1836 = vadd.f32 0.0, %v1835
        %v1837 = vpop.f32.mrb[0].mxu0
        %v1838 = vadd.f32 0.0, %v1837
        %1839 = vmatprep.mubr.f32.mxu0 0.0
        %1840 = vmatmul.mubr.f32.gmra.mrb[0].mxu0 %v1645
        %v1841 = vpop.f32.mrb[0].mxu0
        %v1842 = vadd.f32 0.0, %v1841
        %v1843 = vpop.f32.mrb[0].mxu0
        %v1844 = vadd.f32 0.0, %v1843
        %1845 = vmatprep.mubr.f32.mxu0 0.0
        %1846 = vmatmul.mubr.f32.gmra.mrb[0].mxu0 %v1647
        %v1847 = vpop.f32.mrb[0].mxu0
        %v1848 = vadd.f32 0.0, %v1847
        %v1849 = vpop.f32.mrb[0].mxu0
        %v1850 = vadd.f32 0.0, %v1849
        %1851 = vmatprep.mubr.f32.mxu0 0.0
        %1852 = vmatmul.mubr.f32.gmra.mrb[0].mxu0 %v1649
        %v1853 = vpop.f32.mrb[0].mxu0
        %v1854 = vadd.f32 0.0, %v1853
        %v1855 = vpop.f32.mrb[0].mxu0
        %v1856 = vadd.f32 0.0, %v1855
        %1857 = vmatprep.mubr.f32.mxu0 0.0
        %1858 = vmatmul.mubr.f32.gmra.mrb[0].mxu0 %v1651
        %v1859 = vpop.f32.mrb[0].mxu0
        %v1860 = vadd.f32 0.0, %v1859
        %v1861 = vpop.f32.mrb[0].mxu0
        %v1862 = vadd.f32 0.0, %v1861
        %1863 = vmatprep.mubr.f32.mxu0 0.0
        %1864 = vmatmul.mubr.f32.gmra.mrb[0].mxu0 %v1653
        %v1865 = vpop.f32.mrb[0].mxu0
        %v1866 = vadd.f32 0.0, %v1865
        %v1867 = vpop.f32.mrb[0].mxu0
        %v1868 = vadd.f32 0.0, %v1867
        %1869 = vdwg.mxu0
        %v1870 = vadd.f32 %v1493, %v1728
        %v1871 = vadd.f32 %v1494, %v1730
        %v1872 = vadd.f32 %v1495, %v1734
        %v1873 = vadd.f32 %v1496, %v1736
        %v1874 = vadd.f32 %v1497, %v1740
        %v1875 = vadd.f32 %v1498, %v1742
        %v1876 = vadd.f32 %v1499, %v1746
        %v1877 = vadd.f32 %v1500, %v1748
        %v1878 = vadd.f32 %v1501, %v1752
        %v1879 = vadd.f32 %v1502, %v1754
        %v1880 = vadd.f32 %v1503, %v1758
        %v1881 = vadd.f32 %v1504, %v1760
        %v1882 = vadd.f32 %v1505, %v1764
        %v1883 = vadd.f32 %v1506, %v1766
        %v1884 = vadd.f32 %v1507, %v1770
        %v1885 = vadd.f32 %v1508, %v1772
        %v1886 = vadd.f32 %v1509, %v1776
        %v1887 = vadd.f32 %v1510, %v1778
        %v1888 = vadd.f32 %v1511, %v1782
        %v1889 = vadd.f32 %v1512, %v1784
        %v1890 = vadd.f32 %v1513, %v1788
        %v1891 = vadd.f32 %v1514, %v1790
        %v1892 = vadd.f32 %v1515, %v1794
        %v1893 = vadd.f32 %v1516, %v1796
        %v1894 = vadd.f32 %v1517, %v1800
        %v1895 = vadd.f32 %v1518, %v1802
        %v1896 = vadd.f32 %v1519, %v1806
        %v1897 = vadd.f32 %v1520, %v1808
        %v1898 = vadd.f32 %v1521, %v1812
        %v1899 = vadd.f32 %v1522, %v1814
        %v1900 = vadd.f32 %v1523, %v1818
        %v1901 = vadd.f32 %v1524, %v1820
        %v1902 = vadd.f32 %v1525, %v1824
        %v1903 = vadd.f32 %v1526, %v1826
        %v1904 = vadd.f32 %v1527, %v1830
        %v1905 = vadd.f32 %v1528, %v1832
        %v1906 = vadd.f32 %v1529, %v1836
        %v1907 = vadd.f32 %v1530, %v1838
        %v1908 = vadd.f32 %v1531, %v1842
        %v1909 = vadd.f32 %v1532, %v1844
        %v1910 = vadd.f32 %v1533, %v1848
        %v1911 = vadd.f32 %v1534, %v1850
        %v1912 = vadd.f32 %v1535, %v1854
        %v1913 = vadd.f32 %v1536, %v1856
        %v1914 = vadd.f32 %v1537, %v1860
        %v1915 = vadd.f32 %v1538, %v1862
        %v1916 = vadd.f32 %v1539, %v1866
        %v1917 = vadd.f32 %v1540, %v1868
        %v1918 = vrot.slane %v498, 4
        %v1919 = vrot.slane %v499, 4
        %v1920 = vsel %vm685, %v1918, %v1919
        %v1921 = vrot.slane %v500, 4
        %v1922 = vsel %vm685, %v1919, %v1921
        %v1923 = vrot.slane %v501, 4
        %v1924 = vsel %vm685, %v1921, %v1923
        %v1925 = vrot.slane %v502, 4
        %v1926 = vrot.slane %v503, 4
        %v1927 = vsel %vm685, %v1925, %v1926
        %v1928 = vrot.slane %v504, 4
        %v1929 = vsel %vm685, %v1926, %v1928
        %v1930 = vrot.slane %v505, 4
        %v1931 = vsel %vm685, %v1928, %v1930
        %v1932 = vrot.slane %v506, 4
        %v1933 = vrot.slane %v507, 4
        %v1934 = vsel %vm685, %v1932, %v1933
        %v1935 = vrot.slane %v508, 4
        %v1936 = vsel %vm685, %v1933, %v1935
        %v1937 = vrot.slane %v509, 4
        %v1938 = vsel %vm685, %v1935, %v1937
        %v1939 = vrot.slane %v510, 4
        %v1940 = vrot.slane %v511, 4
        %v1941 = vsel %vm685, %v1939, %v1940
        %v1942 = vrot.slane %v512, 4
        %v1943 = vsel %vm685, %v1940, %v1942
        %v1944 = vrot.slane %v513, 4
        %v1945 = vsel %vm685, %v1942, %v1944
        %v1946 = vrot.slane %v514, 4
        %v1947 = vrot.slane %v515, 4
        %v1948 = vsel %vm685, %v1946, %v1947
        %v1949 = vrot.slane %v516, 4
        %v1950 = vsel %vm685, %v1947, %v1949
        %v1951 = vrot.slane %v517, 4
        %v1952 = vsel %vm685, %v1949, %v1951
        %v1953 = vrot.slane %v518, 4
        %v1954 = vrot.slane %v519, 4
        %v1955 = vsel %vm685, %v1953, %v1954
        %v1956 = vrot.slane %v520, 4
        %v1957 = vsel %vm685, %v1954, %v1956
        %v1958 = vrot.slane %v521, 4
        %v1959 = vsel %vm685, %v1956, %v1958
        %v1960 = vrot.slane %v522, 4
        %v1961 = vrot.slane %v523, 4
        %v1962 = vsel %vm685, %v1960, %v1961
        %v1963 = vrot.slane %v524, 4
        %v1964 = vsel %vm685, %v1961, %v1963
        %v1965 = vrot.slane %v525, 4
        %v1966 = vsel %vm685, %v1963, %v1965
        %v1967 = vrot.slane %v526, 4
        %v1968 = vrot.slane %v527, 4
        %v1969 = vsel %vm685, %v1967, %v1968
        %v1970 = vrot.slane %v528, 4
        %v1971 = vsel %vm685, %v1968, %v1970
        %v1972 = vrot.slane %v529, 4
        %v1973 = vsel %vm685, %v1970, %v1972
        %s1974 = scalar_lea.vmem %s1, 256
        %v1975 = vld [vmem:[%s1974] sm:$0xff]
        %v1976 = vld [vmem:[%s1974 + $0x8] sm:$0xff]
        %v1977 = vld [vmem:[%s1974 + $0x10] sm:$0xff]
        %v1978 = vld [vmem:[%s1974 + $0x18] sm:$0xff]
        %v1979 = vld [vmem:[%s1974 + $0x20] sm:$0xff]
        %v1980 = vld [vmem:[%s1974 + $0x28] sm:$0xff]
        %v1981 = vld [vmem:[%s1974 + $0x30] sm:$0xf]
        %v1982 = vld [vmem:[%s1974 + $0x38] sm:$0xf]
        %v1983 = vsel %vm636, %v1920, 0
        %v1985 = vsel %vm636, %v1922, 0
        %v1987 = vsel %vm636, %v1924, 0
        %v1989 = vsel %vm636, %v1927, 0
        %v1991 = vsel %vm636, %v1929, 0
        %v1993 = vsel %vm636, %v1931, 0
        %v1995 = vsel %vm636, %v1934, 0
        %v1997 = vsel %vm636, %v1936, 0
        %v1999 = vsel %vm636, %v1938, 0
        %v2001 = vsel %vm636, %v1941, 0
        %v2003 = vsel %vm636, %v1943, 0
        %v2005 = vsel %vm636, %v1945, 0
        %v2007 = vsel %vm636, %v1948, 0
        %v2009 = vsel %vm636, %v1950, 0
        %v2011 = vsel %vm636, %v1952, 0
        %v2013 = vsel %vm636, %v1955, 0
        %v2015 = vsel %vm636, %v1957, 0
        %v2017 = vsel %vm636, %v1959, 0
        %v2019 = vsel %vm636, %v1962, 0
        %v2021 = vsel %vm636, %v1964, 0
        %v2023 = vsel %vm636, %v1966, 0
        %v2025 = vsel %vm636, %v1969, 0
        %v2027 = vsel %vm636, %v1971, 0
        %v2029 = vsel %vm636, %v1973, 0
        %v2032 = vsel %vm685, %v1981, 0
        %v2035 = vsel %vm685, %v1982, 0
        %2037 = vmatprep.subr.mxu0 %v1976
        %2038 = vmatpush1.msra.mxu0 %v1975
        %2039 = vmatprep.subr.mxu0 %v1978
        %2040 = vmatpush1.msra.mxu0 %v1977
        %2041 = vmatprep.subr.mxu0 %v1980
        %2042 = vmatpush1.msra.mxu0 %v1979
        %2043 = vmatprep.subr.mxu0 %v2035
        %2044 = vmatpush1.msra.mxu0 %v2032
        %2045 = vmatprep.subr.mxu0 0.0
        %2046 = vmatpush1.msra.mxu0 0.0
        %2047 = vmatprep.subr.mxu0 0.0
        %2048 = vmatpush1.msra.mxu0 0.0
        %2049 = vmatprep.subr.mxu0 0.0
        %2050 = vmatpush1.msra.mxu0 0.0
        %2051 = vmatprep.subr.mxu0 0.0
        %2052 = vmatpush1.msra.mxu0 0.0
        %2053 = vmatprep.subr.mxu0 0.0
        %2054 = vmatpush1.msra.mxu0 0.0
        %2055 = vmatprep.subr.mxu0 0.0
        %2056 = vmatpush1.msra.mxu0 0.0
        %2057 = vmatprep.subr.mxu0 0.0
        %2058 = vmatpush1.msra.mxu0 0.0
        %2059 = vmatprep.subr.mxu0 0.0
        %2060 = vmatpush1.msra.mxu0 0.0
        %2061 = vmatprep.subr.mxu0 0.0
        %2062 = vmatpush1.msra.mxu0 0.0
        %2063 = vmatprep.subr.mxu0 0.0
        %2064 = vmatpush1.msra.mxu0 0.0
        %2065 = vmatprep.subr.mxu0 0.0
        %2066 = vmatpush1.msra.mxu0 0.0
        %2067 = vmatprep.subr.mxu0 0.0
        %2068 = vmatpush1.msra.mxu0 0.0
        %2069 = vmatprep.subr.mxu0 0.0
        %2070 = vmatpush1.msra.mxu0 0.0
        %2071 = vmatprep.subr.mxu0 0.0
        %2072 = vmatpush1.msra.mxu0 0.0
        %2073 = vmatprep.subr.mxu0 0.0
        %2074 = vmatpush1.msra.mxu0 0.0
        %2075 = vmatprep.subr.mxu0 0.0
        %2076 = vmatpush1.msra.mxu0 0.0
        %2077 = vmatprep.subr.mxu0 0.0
        %2078 = vmatpush1.msra.mxu0 0.0
        %2079 = vmatprep.subr.mxu0 0.0
        %2080 = vmatpush1.msra.mxu0 0.0
        %2081 = vmatprep.subr.mxu0 0.0
        %2082 = vmatpush1.msra.mxu0 0.0
        %2083 = vmatprep.subr.mxu0 0.0
        %2084 = vmatpush1.msra.mxu0 0.0
        %2085 = vmatprep.subr.mxu0 0.0
        %2086 = vmatpush1.msra.mxu0 0.0
        %2087 = vmatprep.subr.mxu0 0.0
        %2088 = vmatpush1.msra.mxu0 0.0
        %2089 = vmatprep.subr.mxu0 0.0
        %2090 = vmatpush1.msra.mxu0 0.0
        %2091 = vmatprep.subr.mxu0 0.0
        %2092 = vmatpush1.msra.mxu0 0.0
        %2093 = vmatprep.subr.mxu0 0.0
        %2094 = vmatpush1.msra.mxu0 0.0
        %2095 = vmatprep.subr.mxu0 0.0
        %2096 = vmatpush1.msra.mxu0 0.0
        %2097 = vmatprep.subr.mxu0 0.0
        %2098 = vmatpush1.msra.mxu0 0.0
        %2099 = vmatprep.subr.mxu0 0.0
        %2100 = vmatpush1.msra.mxu0 0.0
        %2101 = vmatprep.mubr.f32.mxu0 0.0
        %2102 = vmatmul.mubr.f32.gmra.mrb[0].mxu0 %v1983
        %v2103 = vpop.f32.mrb[0].mxu0
        %v2104 = vadd.f32 0.0, %v2103
        %v2105 = vpop.f32.mrb[0].mxu0
        %v2106 = vadd.f32 0.0, %v2105
        %2107 = vmatprep.mubr.f32.mxu0 0.0
        %2108 = vmatmul.mubr.f32.gmra.mrb[0].mxu0 %v1985
        %v2109 = vpop.f32.mrb[0].mxu0
        %v2110 = vadd.f32 0.0, %v2109
        %v2111 = vpop.f32.mrb[0].mxu0
        %v2112 = vadd.f32 0.0, %v2111
        %2113 = vmatprep.mubr.f32.mxu0 0.0
        %2114 = vmatmul.mubr.f32.gmra.mrb[0].mxu0 %v1987
        %v2115 = vpop.f32.mrb[0].mxu0
        %v2116 = vadd.f32 0.0, %v2115
        %v2117 = vpop.f32.mrb[0].mxu0
        %v2118 = vadd.f32 0.0, %v2117
        %2119 = vmatprep.mubr.f32.mxu0 0.0
        %2120 = vmatmul.mubr.f32.gmra.mrb[0].mxu0 %v1989
        %v2121 = vpop.f32.mrb[0].mxu0
        %v2122 = vadd.f32 0.0, %v2121
        %v2123 = vpop.f32.mrb[0].mxu0
        %v2124 = vadd.f32 0.0, %v2123
        %2125 = vmatprep.mubr.f32.mxu0 0.0
        %2126 = vmatmul.mubr.f32.gmra.mrb[0].mxu0 %v1991
        %v2127 = vpop.f32.mrb[0].mxu0
        %v2128 = vadd.f32 0.0, %v2127
        %v2129 = vpop.f32.mrb[0].mxu0
        %v2130 = vadd.f32 0.0, %v2129
        %2131 = vmatprep.mubr.f32.mxu0 0.0
        %2132 = vmatmul.mubr.f32.gmra.mrb[0].mxu0 %v1993
        %v2133 = vpop.f32.mrb[0].mxu0
        %v2134 = vadd.f32 0.0, %v2133
        %v2135 = vpop.f32.mrb[0].mxu0
        %v2136 = vadd.f32 0.0, %v2135
        %2137 = vmatprep.mubr.f32.mxu0 0.0
        %2138 = vmatmul.mubr.f32.gmra.mrb[0].mxu0 %v1995
        %v2139 = vpop.f32.mrb[0].mxu0
        %v2140 = vadd.f32 0.0, %v2139
        %v2141 = vpop.f32.mrb[0].mxu0
        %v2142 = vadd.f32 0.0, %v2141
        %2143 = vmatprep.mubr.f32.mxu0 0.0
        %2144 = vmatmul.mubr.f32.gmra.mrb[0].mxu0 %v1997
        %v2145 = vpop.f32.mrb[0].mxu0
        %v2146 = vadd.f32 0.0, %v2145
        %v2147 = vpop.f32.mrb[0].mxu0
        %v2148 = vadd.f32 0.0, %v2147
        %2149 = vmatprep.mubr.f32.mxu0 0.0
        %2150 = vmatmul.mubr.f32.gmra.mrb[0].mxu0 %v1999
        %v2151 = vpop.f32.mrb[0].mxu0
        %v2152 = vadd.f32 0.0, %v2151
        %v2153 = vpop.f32.mrb[0].mxu0
        %v2154 = vadd.f32 0.0, %v2153
        %2155 = vmatprep.mubr.f32.mxu0 0.0
        %2156 = vmatmul.mubr.f32.gmra.mrb[0].mxu0 %v2001
        %v2157 = vpop.f32.mrb[0].mxu0
        %v2158 = vadd.f32 0.0, %v2157
        %v2159 = vpop.f32.mrb[0].mxu0
        %v2160 = vadd.f32 0.0, %v2159
        %2161 = vmatprep.mubr.f32.mxu0 0.0
        %2162 = vmatmul.mubr.f32.gmra.mrb[0].mxu0 %v2003
        %v2163 = vpop.f32.mrb[0].mxu0
        %v2164 = vadd.f32 0.0, %v2163
        %v2165 = vpop.f32.mrb[0].mxu0
        %v2166 = vadd.f32 0.0, %v2165
        %2167 = vmatprep.mubr.f32.mxu0 0.0
        %2168 = vmatmul.mubr.f32.gmra.mrb[0].mxu0 %v2005
        %v2169 = vpop.f32.mrb[0].mxu0
        %v2170 = vadd.f32 0.0, %v2169
        %v2171 = vpop.f32.mrb[0].mxu0
        %v2172 = vadd.f32 0.0, %v2171
        %2173 = vmatprep.mubr.f32.mxu0 0.0
        %2174 = vmatmul.mubr.f32.gmra.mrb[0].mxu0 %v2007
        %v2175 = vpop.f32.mrb[0].mxu0
        %v2176 = vadd.f32 0.0, %v2175
        %v2177 = vpop.f32.mrb[0].mxu0
        %v2178 = vadd.f32 0.0, %v2177
        %2179 = vmatprep.mubr.f32.mxu0 0.0
        %2180 = vmatmul.mubr.f32.gmra.mrb[0].mxu0 %v2009
        %v2181 = vpop.f32.mrb[0].mxu0
        %v2182 = vadd.f32 0.0, %v2181
        %v2183 = vpop.f32.mrb[0].mxu0
        %v2184 = vadd.f32 0.0, %v2183
        %2185 = vmatprep.mubr.f32.mxu0 0.0
        %2186 = vmatmul.mubr.f32.gmra.mrb[0].mxu0 %v2011
        %v2187 = vpop.f32.mrb[0].mxu0
        %v2188 = vadd.f32 0.0, %v2187
        %v2189 = vpop.f32.mrb[0].mxu0
        %v2190 = vadd.f32 0.0, %v2189
        %2191 = vmatprep.mubr.f32.mxu0 0.0
        %2192 = vmatmul.mubr.f32.gmra.mrb[0].mxu0 %v2013
        %v2193 = vpop.f32.mrb[0].mxu0
        %v2194 = vadd.f32 0.0, %v2193
        %v2195 = vpop.f32.mrb[0].mxu0
        %v2196 = vadd.f32 0.0, %v2195
        %2197 = vmatprep.mubr.f32.mxu0 0.0
        %2198 = vmatmul.mubr.f32.gmra.mrb[0].mxu0 %v2015
        %v2199 = vpop.f32.mrb[0].mxu0
        %v2200 = vadd.f32 0.0, %v2199
        %v2201 = vpop.f32.mrb[0].mxu0
        %v2202 = vadd.f32 0.0, %v2201
        %2203 = vmatprep.mubr.f32.mxu0 0.0
        %2204 = vmatmul.mubr.f32.gmra.mrb[0].mxu0 %v2017
        %v2205 = vpop.f32.mrb[0].mxu0
        %v2206 = vadd.f32 0.0, %v2205
        %v2207 = vpop.f32.mrb[0].mxu0
        %v2208 = vadd.f32 0.0, %v2207
        %2209 = vmatprep.mubr.f32.mxu0 0.0
        %2210 = vmatmul.mubr.f32.gmra.mrb[0].mxu0 %v2019
        %v2211 = vpop.f32.mrb[0].mxu0
        %v2212 = vadd.f32 0.0, %v2211
        %v2213 = vpop.f32.mrb[0].mxu0
        %v2214 = vadd.f32 0.0, %v2213
        %2215 = vmatprep.mubr.f32.mxu0 0.0
        %2216 = vmatmul.mubr.f32.gmra.mrb[0].mxu0 %v2021
        %v2217 = vpop.f32.mrb[0].mxu0
        %v2218 = vadd.f32 0.0, %v2217
        %v2219 = vpop.f32.mrb[0].mxu0
        %v2220 = vadd.f32 0.0, %v2219
        %2221 = vmatprep.mubr.f32.mxu0 0.0
        %2222 = vmatmul.mubr.f32.gmra.mrb[0].mxu0 %v2023
        %v2223 = vpop.f32.mrb[0].mxu0
        %v2224 = vadd.f32 0.0, %v2223
        %v2225 = vpop.f32.mrb[0].mxu0
        %v2226 = vadd.f32 0.0, %v2225
        %2227 = vmatprep.mubr.f32.mxu0 0.0
        %2228 = vmatmul.mubr.f32.gmra.mrb[0].mxu0 %v2025
        %v2229 = vpop.f32.mrb[0].mxu0
        %v2230 = vadd.f32 0.0, %v2229
        %v2231 = vpop.f32.mrb[0].mxu0
        %v2232 = vadd.f32 0.0, %v2231
        %2233 = vmatprep.mubr.f32.mxu0 0.0
        %2234 = vmatmul.mubr.f32.gmra.mrb[0].mxu0 %v2027
        %v2235 = vpop.f32.mrb[0].mxu0
        %v2236 = vadd.f32 0.0, %v2235
        %v2237 = vpop.f32.mrb[0].mxu0
        %v2238 = vadd.f32 0.0, %v2237
        %2239 = vmatprep.mubr.f32.mxu0 0.0
        %2240 = vmatmul.mubr.f32.gmra.mrb[0].mxu0 %v2029
        %v2241 = vpop.f32.mrb[0].mxu0
        %v2242 = vadd.f32 0.0, %v2241
        %v2243 = vpop.f32.mrb[0].mxu0
        %v2244 = vadd.f32 0.0, %v2243
        %2245 = vdwg.mxu0
        %v2246 = vadd.f32 %v1870, %v2104
        %v2247 = vadd.f32 %v1871, %v2106
        %v2248 = vadd.f32 %v1872, %v2110
        %v2249 = vadd.f32 %v1873, %v2112
        %v2250 = vadd.f32 %v1874, %v2116
        %v2251 = vadd.f32 %v1875, %v2118
        %v2252 = vadd.f32 %v1876, %v2122
        %v2253 = vadd.f32 %v1877, %v2124
        %v2254 = vadd.f32 %v1878, %v2128
        %v2255 = vadd.f32 %v1879, %v2130
        %v2256 = vadd.f32 %v1880, %v2134
        %v2257 = vadd.f32 %v1881, %v2136
        %v2258 = vadd.f32 %v1882, %v2140
        %v2259 = vadd.f32 %v1883, %v2142
        %v2260 = vadd.f32 %v1884, %v2146
        %v2261 = vadd.f32 %v1885, %v2148
        %v2262 = vadd.f32 %v1886, %v2152
        %v2263 = vadd.f32 %v1887, %v2154
        %v2264 = vadd.f32 %v1888, %v2158
        %v2265 = vadd.f32 %v1889, %v2160
        %v2266 = vadd.f32 %v1890, %v2164
        %v2267 = vadd.f32 %v1891, %v2166
        %v2268 = vadd.f32 %v1892, %v2170
        %v2269 = vadd.f32 %v1893, %v2172
        %v2270 = vadd.f32 %v1894, %v2176
        %v2271 = vadd.f32 %v1895, %v2178
        %v2272 = vadd.f32 %v1896, %v2182
        %v2273 = vadd.f32 %v1897, %v2184
        %v2274 = vadd.f32 %v1898, %v2188
        %v2275 = vadd.f32 %v1899, %v2190
        %v2276 = vadd.f32 %v1900, %v2194
        %v2277 = vadd.f32 %v1901, %v2196
        %v2278 = vadd.f32 %v1902, %v2200
        %v2279 = vadd.f32 %v1903, %v2202
        %v2280 = vadd.f32 %v1904, %v2206
        %v2281 = vadd.f32 %v1905, %v2208
        %v2282 = vadd.f32 %v1906, %v2212
        %v2283 = vadd.f32 %v1907, %v2214
        %v2284 = vadd.f32 %v1908, %v2218
        %v2285 = vadd.f32 %v1909, %v2220
        %v2286 = vadd.f32 %v1910, %v2224
        %v2287 = vadd.f32 %v1911, %v2226
        %v2288 = vadd.f32 %v1912, %v2230
        %v2289 = vadd.f32 %v1913, %v2232
        %v2290 = vadd.f32 %v1914, %v2236
        %v2291 = vadd.f32 %v1915, %v2238
        %v2292 = vadd.f32 %v1916, %v2242
        %v2293 = vadd.f32 %v1917, %v2244
        %v2294 = vld [vmem:[%s2] sm:$0x3]
        %v2296 = vlaneseq
        %v2297 = vshrl.u32 %v2296, 7
        %v2298 = vsub.s32 0, %v2297
        %v2299 = vrot.slane %v2294, %v2298
        %v2300 = vlaneseq
        %v2301 = vshrl.u32 %v2300, 7
        %v2302 = vsub.s32 1, %v2301
        %v2303 = vrot.slane %v2294, %v2302
        %v2306 = vadd.f32 %v2246, %v2299
        %v2307 = vadd.f32 %v2247, %v2303
        %v2308 = vadd.f32 %v2248, %v2299
        %v2309 = vadd.f32 %v2249, %v2303
        %v2310 = vadd.f32 %v2250, %v2299
        %v2311 = vadd.f32 %v2251, %v2303
        %v2312 = vadd.f32 %v2252, %v2299
        %v2313 = vadd.f32 %v2253, %v2303
        %v2314 = vadd.f32 %v2254, %v2299
        %v2315 = vadd.f32 %v2255, %v2303
        %v2316 = vadd.f32 %v2256, %v2299
        %v2317 = vadd.f32 %v2257, %v2303
        %v2318 = vadd.f32 %v2258, %v2299
        %v2319 = vadd.f32 %v2259, %v2303
        %v2320 = vadd.f32 %v2260, %v2299
        %v2321 = vadd.f32 %v2261, %v2303
        %v2322 = vadd.f32 %v2262, %v2299
        %v2323 = vadd.f32 %v2263, %v2303
        %v2324 = vadd.f32 %v2264, %v2299
        %v2325 = vadd.f32 %v2265, %v2303
        %v2326 = vadd.f32 %v2266, %v2299
        %v2327 = vadd.f32 %v2267, %v2303
        %v2328 = vadd.f32 %v2268, %v2299
        %v2329 = vadd.f32 %v2269, %v2303
        %v2330 = vadd.f32 %v2270, %v2299
        %v2331 = vadd.f32 %v2271, %v2303
        %v2332 = vadd.f32 %v2272, %v2299
        %v2333 = vadd.f32 %v2273, %v2303
        %v2334 = vadd.f32 %v2274, %v2299
        %v2335 = vadd.f32 %v2275, %v2303
        %v2336 = vadd.f32 %v2276, %v2299
        %v2337 = vadd.f32 %v2277, %v2303
        %v2338 = vadd.f32 %v2278, %v2299
        %v2339 = vadd.f32 %v2279, %v2303
        %v2340 = vadd.f32 %v2280, %v2299
        %v2341 = vadd.f32 %v2281, %v2303
        %v2342 = vadd.f32 %v2282, %v2299
        %v2343 = vadd.f32 %v2283, %v2303
        %v2344 = vadd.f32 %v2284, %v2299
        %v2345 = vadd.f32 %v2285, %v2303
        %v2346 = vadd.f32 %v2286, %v2299
        %v2347 = vadd.f32 %v2287, %v2303
        %v2348 = vadd.f32 %v2288, %v2299
        %v2349 = vadd.f32 %v2289, %v2303
        %v2350 = vadd.f32 %v2290, %v2299
        %v2351 = vadd.f32 %v2291, %v2303
        %v2352 = vadd.f32 %v2292, %v2299
        %v2353 = vadd.f32 %v2293, %v2303
        %v2354 = vmax.f32 %v2306, 0.0
        %v2355 = vmax.f32 %v2307, 0.0
        %v2356 = vmax.f32 %v2308, 0.0
        %v2357 = vmax.f32 %v2309, 0.0
        %v2358 = vmax.f32 %v2310, 0.0
        %v2359 = vmax.f32 %v2311, 0.0
        %v2360 = vmax.f32 %v2312, 0.0
        %v2361 = vmax.f32 %v2313, 0.0
        %v2362 = vmax.f32 %v2314, 0.0
        %v2363 = vmax.f32 %v2315, 0.0
        %v2364 = vmax.f32 %v2316, 0.0
        %v2365 = vmax.f32 %v2317, 0.0
        %v2366 = vmax.f32 %v2318, 0.0
        %v2367 = vmax.f32 %v2319, 0.0
        %v2368 = vmax.f32 %v2320, 0.0
        %v2369 = vmax.f32 %v2321, 0.0
        %v2370 = vmax.f32 %v2322, 0.0
        %v2371 = vmax.f32 %v2323, 0.0
        %v2372 = vmax.f32 %v2324, 0.0
        %v2373 = vmax.f32 %v2325, 0.0
        %v2374 = vmax.f32 %v2326, 0.0
        %v2375 = vmax.f32 %v2327, 0.0
        %v2376 = vmax.f32 %v2328, 0.0
        %v2377 = vmax.f32 %v2329, 0.0
        %v2378 = vmax.f32 %v2330, 0.0
        %v2379 = vmax.f32 %v2331, 0.0
        %v2380 = vmax.f32 %v2332, 0.0
        %v2381 = vmax.f32 %v2333, 0.0
        %v2382 = vmax.f32 %v2334, 0.0
        %v2383 = vmax.f32 %v2335, 0.0
        %v2384 = vmax.f32 %v2336, 0.0
        %v2385 = vmax.f32 %v2337, 0.0
        %v2386 = vmax.f32 %v2338, 0.0
        %v2387 = vmax.f32 %v2339, 0.0
        %v2388 = vmax.f32 %v2340, 0.0
        %v2389 = vmax.f32 %v2341, 0.0
        %v2390 = vmax.f32 %v2342, 0.0
        %v2391 = vmax.f32 %v2343, 0.0
        %v2392 = vmax.f32 %v2344, 0.0
        %v2393 = vmax.f32 %v2345, 0.0
        %v2394 = vmax.f32 %v2346, 0.0
        %v2395 = vmax.f32 %v2347, 0.0
        %v2396 = vmax.f32 %v2348, 0.0
        %v2397 = vmax.f32 %v2349, 0.0
        %v2398 = vmax.f32 %v2350, 0.0
        %v2399 = vmax.f32 %v2351, 0.0
        %v2400 = vmax.f32 %v2352, 0.0
        %v2401 = vmax.f32 %v2353, 0.0
        %v2402 = vld [vmem:[%s3] sm:$0xff]
        %v2403 = vld [vmem:[%s3 + $0x8] sm:$0xff]
        %v2404 = vld [vmem:[%s3 + $0x10] sm:$0xff]
        %v2405 = vld [vmem:[%s3 + $0x18] sm:$0xff]
        %v2406 = vld [vmem:[%s3 + $0x20] sm:$0xff]
        %v2407 = vld [vmem:[%s3 + $0x28] sm:$0xff]
        %v2408 = vld [vmem:[%s3 + $0x30] sm:$0xff]
        %v2409 = vld [vmem:[%s3 + $0x38] sm:$0xff]
        %v2410 = vld [vmem:[%s3 + $0x40] sm:$0xff]
        %v2411 = vld [vmem:[%s3 + $0x48] sm:$0xff]
        %v2412 = vld [vmem:[%s3 + $0x50] sm:$0xff]
        %v2413 = vld [vmem:[%s3 + $0x58] sm:$0xff]
        %v2414 = vld [vmem:[%s3 + $0x60] sm:$0xff]
        %v2415 = vld [vmem:[%s3 + $0x68] sm:$0xff]
        %v2416 = vld [vmem:[%s3 + $0x70] sm:$0xff]
        %v2417 = vld [vmem:[%s3 + $0x78] sm:$0xff]
        %v2418 = vld [vmem:[%s3 + $0x80] sm:$0xff]
        %v2419 = vld [vmem:[%s3 + $0x88] sm:$0xff]
        %vm2420 = vcmask 130048
        %v2422 = vsel %vm2420, %v2355, 0
        %v2425 = vsel %vm2420, %v2357, 0
        %v2428 = vsel %vm2420, %v2359, 0
        %v2431 = vsel %vm2420, %v2361, 0
        %v2434 = vsel %vm2420, %v2363, 0
        %v2437 = vsel %vm2420, %v2365, 0
        %v2440 = vsel %vm2420, %v2367, 0
        %v2443 = vsel %vm2420, %v2369, 0
        %v2446 = vsel %vm2420, %v2371, 0
        %v2449 = vsel %vm2420, %v2373, 0
        %v2452 = vsel %vm2420, %v2375, 0
        %v2455 = vsel %vm2420, %v2377, 0
        %v2458 = vsel %vm2420, %v2379, 0
        %v2461 = vsel %vm2420, %v2381, 0
        %v2464 = vsel %vm2420, %v2383, 0
        %v2467 = vsel %vm2420, %v2385, 0
        %v2470 = vsel %vm2420, %v2387, 0
        %v2473 = vsel %vm2420, %v2389, 0
        %v2476 = vsel %vm2420, %v2391, 0
        %v2479 = vsel %vm2420, %v2393, 0
        %v2482 = vsel %vm2420, %v2395, 0
        %v2485 = vsel %vm2420, %v2397, 0
        %v2488 = vsel %vm2420, %v2399, 0
        %v2491 = vsel %vm2420, %v2401, 0
        %2493 = vmatprep.subr.mxu0 0.0
        %2494 = vmatpush1.msra.mxu0 %v2402
        %2495 = vmatprep.subr.mxu0 0.0
        %2496 = vmatpush1.msra.mxu0 %v2403
        %2497 = vmatprep.subr.mxu0 0.0
        %2498 = vmatpush1.msra.mxu0 %v2404
        %2499 = vmatprep.subr.mxu0 0.0
        %2500 = vmatpush1.msra.mxu0 %v2405
        %2501 = vmatprep.subr.mxu0 0.0
        %2502 = vmatpush1.msra.mxu0 %v2406
        %2503 = vmatprep.subr.mxu0 0.0
        %2504 = vmatpush1.msra.mxu0 %v2407
        %2505 = vmatprep.subr.mxu0 0.0
        %2506 = vmatpush1.msra.mxu0 %v2408
        %2507 = vmatprep.subr.mxu0 0.0
        %2508 = vmatpush1.msra.mxu0 %v2409
        %2509 = vmatprep.subr.mxu0 0.0
        %2510 = vmatpush1.msra.mxu0 %v2410
        %2511 = vmatprep.subr.mxu0 0.0
        %2512 = vmatpush1.msra.mxu0 %v2411
        %2513 = vmatprep.subr.mxu0 0.0
        %2514 = vmatpush1.msra.mxu0 %v2412
        %2515 = vmatprep.subr.mxu0 0.0
        %2516 = vmatpush1.msra.mxu0 %v2413
        %2517 = vmatprep.subr.mxu0 0.0
        %2518 = vmatpush1.msra.mxu0 %v2414
        %2519 = vmatprep.subr.mxu0 0.0
        %2520 = vmatpush1.msra.mxu0 %v2415
        %2521 = vmatprep.subr.mxu0 0.0
        %2522 = vmatpush1.msra.mxu0 %v2416
        %2523 = vmatprep.subr.mxu0 0.0
        %2524 = vmatpush1.msra.mxu0 %v2417
        %2525 = vmatprep.subr.mxu0 0.0
        %2526 = vmatpush1.msra.mxu0 %v2418
        %2527 = vmatprep.subr.mxu0 0.0
        %2528 = vmatpush1.msra.mxu0 %v2419
        %2529 = vmatprep.subr.mxu0 0.0
        %2530 = vmatpush1.msra.mxu0 0.0
        %2531 = vmatprep.subr.mxu0 0.0
        %2532 = vmatpush1.msra.mxu0 0.0
        %2533 = vmatprep.subr.mxu0 0.0
        %2534 = vmatpush1.msra.mxu0 0.0
        %2535 = vmatprep.subr.mxu0 0.0
        %2536 = vmatpush1.msra.mxu0 0.0
        %2537 = vmatprep.subr.mxu0 0.0
        %2538 = vmatpush1.msra.mxu0 0.0
        %2539 = vmatprep.subr.mxu0 0.0
        %2540 = vmatpush1.msra.mxu0 0.0
        %2541 = vmatprep.subr.mxu0 0.0
        %2542 = vmatpush1.msra.mxu0 0.0
        %2543 = vmatprep.subr.mxu0 0.0
        %2544 = vmatpush1.msra.mxu0 0.0
        %2545 = vmatprep.subr.mxu0 0.0
        %2546 = vmatpush1.msra.mxu0 0.0
        %2547 = vmatprep.subr.mxu0 0.0
        %2548 = vmatpush1.msra.mxu0 0.0
        %2549 = vmatprep.subr.mxu0 0.0
        %2550 = vmatpush1.msra.mxu0 0.0
        %2551 = vmatprep.subr.mxu0 0.0
        %2552 = vmatpush1.msra.mxu0 0.0
        %2553 = vmatprep.subr.mxu0 0.0
        %2554 = vmatpush1.msra.mxu0 0.0
        %2555 = vmatprep.subr.mxu0 0.0
        %2556 = vmatpush1.msra.mxu0 0.0
        %2557 = vmatprep.mubr.f32.mxu0 %v2422
        %2558 = vmatmul.mubr.f32.gmra.mrb[0].mxu0 %v2354
        %v2559 = vpop.f32.mrb[0].mxu0
        %v2560 = vadd.f32 0.0, %v2559
        %v2561 = vpop.f32.mrb[0].mxu0
        %2562 = vmatprep.mubr.f32.mxu0 %v2425
        %2563 = vmatmul.mubr.f32.gmra.mrb[0].mxu0 %v2356
        %v2564 = vpop.f32.mrb[0].mxu0
        %v2565 = vadd.f32 0.0, %v2564
        %v2566 = vpop.f32.mrb[0].mxu0
        %2567 = vmatprep.mubr.f32.mxu0 %v2428
        %2568 = vmatmul.mubr.f32.gmra.mrb[0].mxu0 %v2358
        %v2569 = vpop.f32.mrb[0].mxu0
        %v2570 = vadd.f32 0.0, %v2569
        %v2571 = vpop.f32.mrb[0].mxu0
        %2572 = vmatprep.mubr.f32.mxu0 %v2431
        %2573 = vmatmul.mubr.f32.gmra.mrb[0].mxu0 %v2360
        %v2574 = vpop.f32.mrb[0].mxu0
        %v2575 = vadd.f32 0.0, %v2574
        %v2576 = vpop.f32.mrb[0].mxu0
        %2577 = vmatprep.mubr.f32.mxu0 %v2434
        %2578 = vmatmul.mubr.f32.gmra.mrb[0].mxu0 %v2362
        %v2579 = vpop.f32.mrb[0].mxu0
        %v2580 = vadd.f32 0.0, %v2579
        %v2581 = vpop.f32.mrb[0].mxu0
        %2582 = vmatprep.mubr.f32.mxu0 %v2437
        %2583 = vmatmul.mubr.f32.gmra.mrb[0].mxu0 %v2364
        %v2584 = vpop.f32.mrb[0].mxu0
        %v2585 = vadd.f32 0.0, %v2584
        %v2586 = vpop.f32.mrb[0].mxu0
        %2587 = vmatprep.mubr.f32.mxu0 %v2440
        %2588 = vmatmul.mubr.f32.gmra.mrb[0].mxu0 %v2366
        %v2589 = vpop.f32.mrb[0].mxu0
        %v2590 = vadd.f32 0.0, %v2589
        %v2591 = vpop.f32.mrb[0].mxu0
        %2592 = vmatprep.mubr.f32.mxu0 %v2443
        %2593 = vmatmul.mubr.f32.gmra.mrb[0].mxu0 %v2368
        %v2594 = vpop.f32.mrb[0].mxu0
        %v2595 = vadd.f32 0.0, %v2594
        %v2596 = vpop.f32.mrb[0].mxu0
        %2597 = vmatprep.mubr.f32.mxu0 %v2446
        %2598 = vmatmul.mubr.f32.gmra.mrb[0].mxu0 %v2370
        %v2599 = vpop.f32.mrb[0].mxu0
        %v2600 = vadd.f32 0.0, %v2599
        %v2601 = vpop.f32.mrb[0].mxu0
        %2602 = vmatprep.mubr.f32.mxu0 %v2449
        %2603 = vmatmul.mubr.f32.gmra.mrb[0].mxu0 %v2372
        %v2604 = vpop.f32.mrb[0].mxu0
        %v2605 = vadd.f32 0.0, %v2604
        %v2606 = vpop.f32.mrb[0].mxu0
        %2607 = vmatprep.mubr.f32.mxu0 %v2452
        %2608 = vmatmul.mubr.f32.gmra.mrb[0].mxu0 %v2374
        %v2609 = vpop.f32.mrb[0].mxu0
        %v2610 = vadd.f32 0.0, %v2609
        %v2611 = vpop.f32.mrb[0].mxu0
        %2612 = vmatprep.mubr.f32.mxu0 %v2455
        %2613 = vmatmul.mubr.f32.gmra.mrb[0].mxu0 %v2376
        %v2614 = vpop.f32.mrb[0].mxu0
        %v2615 = vadd.f32 0.0, %v2614
        %v2616 = vpop.f32.mrb[0].mxu0
        %2617 = vmatprep.mubr.f32.mxu0 %v2458
        %2618 = vmatmul.mubr.f32.gmra.mrb[0].mxu0 %v2378
        %v2619 = vpop.f32.mrb[0].mxu0
        %v2620 = vadd.f32 0.0, %v2619
        %v2621 = vpop.f32.mrb[0].mxu0
        %2622 = vmatprep.mubr.f32.mxu0 %v2461
        %2623 = vmatmul.mubr.f32.gmra.mrb[0].mxu0 %v2380
        %v2624 = vpop.f32.mrb[0].mxu0
        %v2625 = vadd.f32 0.0, %v2624
        %v2626 = vpop.f32.mrb[0].mxu0
        %2627 = vmatprep.mubr.f32.mxu0 %v2464
        %2628 = vmatmul.mubr.f32.gmra.mrb[0].mxu0 %v2382
        %v2629 = vpop.f32.mrb[0].mxu0
        %v2630 = vadd.f32 0.0, %v2629
        %v2631 = vpop.f32.mrb[0].mxu0
        %2632 = vmatprep.mubr.f32.mxu0 %v2467
        %2633 = vmatmul.mubr.f32.gmra.mrb[0].mxu0 %v2384
        %v2634 = vpop.f32.mrb[0].mxu0
        %v2635 = vadd.f32 0.0, %v2634
        %v2636 = vpop.f32.mrb[0].mxu0
        %2637 = vmatprep.mubr.f32.mxu0 %v2470
        %2638 = vmatmul.mubr.f32.gmra.mrb[0].mxu0 %v2386
        %v2639 = vpop.f32.mrb[0].mxu0
        %v2640 = vadd.f32 0.0, %v2639
        %v2641 = vpop.f32.mrb[0].mxu0
        %2642 = vmatprep.mubr.f32.mxu0 %v2473
        %2643 = vmatmul.mubr.f32.gmra.mrb[0].mxu0 %v2388
        %v2644 = vpop.f32.mrb[0].mxu0
        %v2645 = vadd.f32 0.0, %v2644
        %v2646 = vpop.f32.mrb[0].mxu0
        %2647 = vmatprep.mubr.f32.mxu0 %v2476
        %2648 = vmatmul.mubr.f32.gmra.mrb[0].mxu0 %v2390
        %v2649 = vpop.f32.mrb[0].mxu0
        %v2650 = vadd.f32 0.0, %v2649
        %v2651 = vpop.f32.mrb[0].mxu0
        %2652 = vmatprep.mubr.f32.mxu0 %v2479
        %2653 = vmatmul.mubr.f32.gmra.mrb[0].mxu0 %v2392
        %v2654 = vpop.f32.mrb[0].mxu0
        %v2655 = vadd.f32 0.0, %v2654
        %v2656 = vpop.f32.mrb[0].mxu0
        %2657 = vmatprep.mubr.f32.mxu0 %v2482
        %2658 = vmatmul.mubr.f32.gmra.mrb[0].mxu0 %v2394
        %v2659 = vpop.f32.mrb[0].mxu0
        %v2660 = vadd.f32 0.0, %v2659
        %v2661 = vpop.f32.mrb[0].mxu0
        %2662 = vmatprep.mubr.f32.mxu0 %v2485
        %2663 = vmatmul.mubr.f32.gmra.mrb[0].mxu0 %v2396
        %v2664 = vpop.f32.mrb[0].mxu0
        %v2665 = vadd.f32 0.0, %v2664
        %v2666 = vpop.f32.mrb[0].mxu0
        %2667 = vmatprep.mubr.f32.mxu0 %v2488
        %2668 = vmatmul.mubr.f32.gmra.mrb[0].mxu0 %v2398
        %v2669 = vpop.f32.mrb[0].mxu0
        %v2670 = vadd.f32 0.0, %v2669
        %v2671 = vpop.f32.mrb[0].mxu0
        %2672 = vmatprep.mubr.f32.mxu0 %v2491
        %2673 = vmatmul.mubr.f32.gmra.mrb[0].mxu0 %v2400
        %v2674 = vpop.f32.mrb[0].mxu0
        %v2675 = vadd.f32 0.0, %v2674
        %v2676 = vpop.f32.mrb[0].mxu0
        %2677 = vdwg.mxu0
        %v2678 = vld [vmem:[%s4] sm:$0xff]
        %v2679 = vld [vmem:[%s4 + $0x8] sm:$0xff]
        %v2680 = vld [vmem:[%s4 + $0x10] sm:$0xff]
        %v2681 = vld [vmem:[%s4 + $0x18] sm:$0xff]
        %v2682 = vld [vmem:[%s4 + $0x20] sm:$0xff]
        %v2683 = vld [vmem:[%s4 + $0x28] sm:$0xff]
        %v2684 = vld [vmem:[%s4 + $0x30] sm:$0xff]
        %v2685 = vld [vmem:[%s4 + $0x38] sm:$0xff]
        %v2686 = vld [vmem:[%s4 + $0x40] sm:$0xff]
        %v2687 = vld [vmem:[%s4 + $0x48] sm:$0xff]
        %v2688 = vld [vmem:[%s4 + $0x50] sm:$0xff]
        %v2689 = vld [vmem:[%s4 + $0x58] sm:$0xff]
        %v2690 = vld [vmem:[%s4 + $0x60] sm:$0xff]
        %v2691 = vld [vmem:[%s4 + $0x68] sm:$0xff]
        %v2692 = vld [vmem:[%s4 + $0x70] sm:$0xff]
        %v2693 = vld [vmem:[%s4 + $0x78] sm:$0xff]
        %v2694 = vld [vmem:[%s4 + $0x80] sm:$0xff]
        %v2695 = vld [vmem:[%s4 + $0x88] sm:$0xff]
        %2696 = vmatprep.subr.mxu0 0.0
        %2697 = vmatpush1.msra.mxu0 %v2678
        %2698 = vmatprep.subr.mxu0 0.0
        %2699 = vmatpush1.msra.mxu0 %v2679
        %2700 = vmatprep.subr.mxu0 0.0
        %2701 = vmatpush1.msra.mxu0 %v2680
        %2702 = vmatprep.subr.mxu0 0.0
        %2703 = vmatpush1.msra.mxu0 %v2681
        %2704 = vmatprep.subr.mxu0 0.0
        %2705 = vmatpush1.msra.mxu0 %v2682
        %2706 = vmatprep.subr.mxu0 0.0
        %2707 = vmatpush1.msra.mxu0 %v2683
        %2708 = vmatprep.subr.mxu0 0.0
        %2709 = vmatpush1.msra.mxu0 %v2684
        %2710 = vmatprep.subr.mxu0 0.0
        %2711 = vmatpush1.msra.mxu0 %v2685
        %2712 = vmatprep.subr.mxu0 0.0
        %2713 = vmatpush1.msra.mxu0 %v2686
        %2714 = vmatprep.subr.mxu0 0.0
        %2715 = vmatpush1.msra.mxu0 %v2687
        %2716 = vmatprep.subr.mxu0 0.0
        %2717 = vmatpush1.msra.mxu0 %v2688
        %2718 = vmatprep.subr.mxu0 0.0
        %2719 = vmatpush1.msra.mxu0 %v2689
        %2720 = vmatprep.subr.mxu0 0.0
        %2721 = vmatpush1.msra.mxu0 %v2690
        %2722 = vmatprep.subr.mxu0 0.0
        %2723 = vmatpush1.msra.mxu0 %v2691
        %2724 = vmatprep.subr.mxu0 0.0
        %2725 = vmatpush1.msra.mxu0 %v2692
        %2726 = vmatprep.subr.mxu0 0.0
        %2727 = vmatpush1.msra.mxu0 %v2693
        %2728 = vmatprep.subr.mxu0 0.0
        %2729 = vmatpush1.msra.mxu0 %v2694
        %2730 = vmatprep.subr.mxu0 0.0
        %2731 = vmatpush1.msra.mxu0 %v2695
        %2732 = vmatprep.subr.mxu0 0.0
        %2733 = vmatpush1.msra.mxu0 0.0
        %2734 = vmatprep.subr.mxu0 0.0
        %2735 = vmatpush1.msra.mxu0 0.0
        %2736 = vmatprep.subr.mxu0 0.0
        %2737 = vmatpush1.msra.mxu0 0.0
        %2738 = vmatprep.subr.mxu0 0.0
        %2739 = vmatpush1.msra.mxu0 0.0
        %2740 = vmatprep.subr.mxu0 0.0
        %2741 = vmatpush1.msra.mxu0 0.0
        %2742 = vmatprep.subr.mxu0 0.0
        %2743 = vmatpush1.msra.mxu0 0.0
        %2744 = vmatprep.subr.mxu0 0.0
        %2745 = vmatpush1.msra.mxu0 0.0
        %2746 = vmatprep.subr.mxu0 0.0
        %2747 = vmatpush1.msra.mxu0 0.0
        %2748 = vmatprep.subr.mxu0 0.0
        %2749 = vmatpush1.msra.mxu0 0.0
        %2750 = vmatprep.subr.mxu0 0.0
        %2751 = vmatpush1.msra.mxu0 0.0
        %2752 = vmatprep.subr.mxu0 0.0
        %2753 = vmatpush1.msra.mxu0 0.0
        %2754 = vmatprep.subr.mxu0 0.0
        %2755 = vmatpush1.msra.mxu0 0.0
        %2756 = vmatprep.subr.mxu0 0.0
        %2757 = vmatpush1.msra.mxu0 0.0
        %2758 = vmatprep.subr.mxu0 0.0
        %2759 = vmatpush1.msra.mxu0 0.0
        %2760 = vmatprep.mubr.f32.mxu0 %v2422
        %2761 = vmatmul.mubr.f32.gmra.mrb[0].mxu0 %v2354
        %v2762 = vpop.f32.mrb[0].mxu0
        %v2763 = vadd.f32 0.0, %v2762
        %v2764 = vpop.f32.mrb[0].mxu0
        %2765 = vmatprep.mubr.f32.mxu0 %v2425
        %2766 = vmatmul.mubr.f32.gmra.mrb[0].mxu0 %v2356
        %v2767 = vpop.f32.mrb[0].mxu0
        %v2768 = vadd.f32 0.0, %v2767
        %v2769 = vpop.f32.mrb[0].mxu0
        %2770 = vmatprep.mubr.f32.mxu0 %v2428
        %2771 = vmatmul.mubr.f32.gmra.mrb[0].mxu0 %v2358
        %v2772 = vpop.f32.mrb[0].mxu0
        %v2773 = vadd.f32 0.0, %v2772
        %v2774 = vpop.f32.mrb[0].mxu0
        %2775 = vmatprep.mubr.f32.mxu0 %v2431
        %2776 = vmatmul.mubr.f32.gmra.mrb[0].mxu0 %v2360
        %v2777 = vpop.f32.mrb[0].mxu0
        %v2778 = vadd.f32 0.0, %v2777
        %v2779 = vpop.f32.mrb[0].mxu0
        %2780 = vmatprep.mubr.f32.mxu0 %v2434
        %2781 = vmatmul.mubr.f32.gmra.mrb[0].mxu0 %v2362
        %v2782 = vpop.f32.mrb[0].mxu0
        %v2783 = vadd.f32 0.0, %v2782
        %v2784 = vpop.f32.mrb[0].mxu0
        %2785 = vmatprep.mubr.f32.mxu0 %v2437
        %2786 = vmatmul.mubr.f32.gmra.mrb[0].mxu0 %v2364
        %v2787 = vpop.f32.mrb[0].mxu0
        %v2788 = vadd.f32 0.0, %v2787
        %v2789 = vpop.f32.mrb[0].mxu0
        %2790 = vmatprep.mubr.f32.mxu0 %v2440
        %2791 = vmatmul.mubr.f32.gmra.mrb[0].mxu0 %v2366
        %v2792 = vpop.f32.mrb[0].mxu0
        %v2793 = vadd.f32 0.0, %v2792
        %v2794 = vpop.f32.mrb[0].mxu0
        %2795 = vmatprep.mubr.f32.mxu0 %v2443
        %2796 = vmatmul.mubr.f32.gmra.mrb[0].mxu0 %v2368
        %v2797 = vpop.f32.mrb[0].mxu0
        %v2798 = vadd.f32 0.0, %v2797
        %v2799 = vpop.f32.mrb[0].mxu0
        %2800 = vmatprep.mubr.f32.mxu0 %v2446
        %2801 = vmatmul.mubr.f32.gmra.mrb[0].mxu0 %v2370
        %v2802 = vpop.f32.mrb[0].mxu0
        %v2803 = vadd.f32 0.0, %v2802
        %v2804 = vpop.f32.mrb[0].mxu0
        %2805 = vmatprep.mubr.f32.mxu0 %v2449
        %2806 = vmatmul.mubr.f32.gmra.mrb[0].mxu0 %v2372
        %v2807 = vpop.f32.mrb[0].mxu0
        %v2808 = vadd.f32 0.0, %v2807
        %v2809 = vpop.f32.mrb[0].mxu0
        %2810 = vmatprep.mubr.f32.mxu0 %v2452
        %2811 = vmatmul.mubr.f32.gmra.mrb[0].mxu0 %v2374
        %v2812 = vpop.f32.mrb[0].mxu0
        %v2813 = vadd.f32 0.0, %v2812
        %v2814 = vpop.f32.mrb[0].mxu0
        %2815 = vmatprep.mubr.f32.mxu0 %v2455
        %2816 = vmatmul.mubr.f32.gmra.mrb[0].mxu0 %v2376
        %v2817 = vpop.f32.mrb[0].mxu0
        %v2818 = vadd.f32 0.0, %v2817
        %v2819 = vpop.f32.mrb[0].mxu0
        %2820 = vmatprep.mubr.f32.mxu0 %v2458
        %2821 = vmatmul.mubr.f32.gmra.mrb[0].mxu0 %v2378
        %v2822 = vpop.f32.mrb[0].mxu0
        %v2823 = vadd.f32 0.0, %v2822
        %v2824 = vpop.f32.mrb[0].mxu0
        %2825 = vmatprep.mubr.f32.mxu0 %v2461
        %2826 = vmatmul.mubr.f32.gmra.mrb[0].mxu0 %v2380
        %v2827 = vpop.f32.mrb[0].mxu0
        %v2828 = vadd.f32 0.0, %v2827
        %v2829 = vpop.f32.mrb[0].mxu0
        %2830 = vmatprep.mubr.f32.mxu0 %v2464
        %2831 = vmatmul.mubr.f32.gmra.mrb[0].mxu0 %v2382
        %v2832 = vpop.f32.mrb[0].mxu0
        %v2833 = vadd.f32 0.0, %v2832
        %v2834 = vpop.f32.mrb[0].mxu0
        %2835 = vmatprep.mubr.f32.mxu0 %v2467
        %2836 = vmatmul.mubr.f32.gmra.mrb[0].mxu0 %v2384
        %v2837 = vpop.f32.mrb[0].mxu0
        %v2838 = vadd.f32 0.0, %v2837
        %v2839 = vpop.f32.mrb[0].mxu0
        %2840 = vmatprep.mubr.f32.mxu0 %v2470
        %2841 = vmatmul.mubr.f32.gmra.mrb[0].mxu0 %v2386
        %v2842 = vpop.f32.mrb[0].mxu0
        %v2843 = vadd.f32 0.0, %v2842
        %v2844 = vpop.f32.mrb[0].mxu0
        %2845 = vmatprep.mubr.f32.mxu0 %v2473
        %2846 = vmatmul.mubr.f32.gmra.mrb[0].mxu0 %v2388
        %v2847 = vpop.f32.mrb[0].mxu0
        %v2848 = vadd.f32 0.0, %v2847
        %v2849 = vpop.f32.mrb[0].mxu0
        %2850 = vmatprep.mubr.f32.mxu0 %v2476
        %2851 = vmatmul.mubr.f32.gmra.mrb[0].mxu0 %v2390
        %v2852 = vpop.f32.mrb[0].mxu0
        %v2853 = vadd.f32 0.0, %v2852
        %v2854 = vpop.f32.mrb[0].mxu0
        %2855 = vmatprep.mubr.f32.mxu0 %v2479
        %2856 = vmatmul.mubr.f32.gmra.mrb[0].mxu0 %v2392
        %v2857 = vpop.f32.mrb[0].mxu0
        %v2858 = vadd.f32 0.0, %v2857
        %v2859 = vpop.f32.mrb[0].mxu0
        %2860 = vmatprep.mubr.f32.mxu0 %v2482
        %2861 = vmatmul.mubr.f32.gmra.mrb[0].mxu0 %v2394
        %v2862 = vpop.f32.mrb[0].mxu0
        %v2863 = vadd.f32 0.0, %v2862
        %v2864 = vpop.f32.mrb[0].mxu0
        %2865 = vmatprep.mubr.f32.mxu0 %v2485
        %2866 = vmatmul.mubr.f32.gmra.mrb[0].mxu0 %v2396
        %v2867 = vpop.f32.mrb[0].mxu0
        %v2868 = vadd.f32 0.0, %v2867
        %v2869 = vpop.f32.mrb[0].mxu0
        %2870 = vmatprep.mubr.f32.mxu0 %v2488
        %2871 = vmatmul.mubr.f32.gmra.mrb[0].mxu0 %v2398
        %v2872 = vpop.f32.mrb[0].mxu0
        %v2873 = vadd.f32 0.0, %v2872
        %v2874 = vpop.f32.mrb[0].mxu0
        %2875 = vmatprep.mubr.f32.mxu0 %v2491
        %2876 = vmatmul.mubr.f32.gmra.mrb[0].mxu0 %v2400
        %v2877 = vpop.f32.mrb[0].mxu0
        %v2878 = vadd.f32 0.0, %v2877
        %v2879 = vpop.f32.mrb[0].mxu0
        %2880 = vdwg.mxu0
        %v2881 = vmax.f32 %v2560, %v2763
        %v2882 = vmax.f32 %v2565, %v2768
        %v2883 = vmax.f32 %v2570, %v2773
        %v2884 = vmax.f32 %v2575, %v2778
        %v2885 = vmax.f32 %v2580, %v2783
        %v2886 = vmax.f32 %v2585, %v2788
        %v2887 = vmax.f32 %v2590, %v2793
        %v2888 = vmax.f32 %v2595, %v2798
        %v2889 = vmax.f32 %v2600, %v2803
        %v2890 = vmax.f32 %v2605, %v2808
        %v2891 = vmax.f32 %v2610, %v2813
        %v2892 = vmax.f32 %v2615, %v2818
        %v2893 = vmax.f32 %v2620, %v2823
        %v2894 = vmax.f32 %v2625, %v2828
        %v2895 = vmax.f32 %v2630, %v2833
        %v2896 = vmax.f32 %v2635, %v2838
        %v2897 = vmax.f32 %v2640, %v2843
        %v2898 = vmax.f32 %v2645, %v2848
        %v2899 = vmax.f32 %v2650, %v2853
        %v2900 = vmax.f32 %v2655, %v2858
        %v2901 = vmax.f32 %v2660, %v2863
        %v2902 = vmax.f32 %v2665, %v2868
        %v2903 = vmax.f32 %v2670, %v2873
        %v2904 = vmax.f32 %v2675, %v2878
        %v2929 = vcombine.high %v2881, %v2881
        %v2931 = vunpack.c.l.s4 1983009808
        %v2932 = vunpack.c.0.s8 %v2931
        %v2933 = vlaneseq
        %v2934 = vshrl.u32 %v2933, 7
        %v2935 = vsub.s32 %v2932, %v2934
        %v2936 = vrot.slane %v2881, %v2935
        %v2938 = vunpack.c.l.s4 1983009808
        %v2939 = vunpack.c.0.s8 %v2938
        %v2940 = vlaneseq
        %v2941 = vshrl.u32 %v2940, 7
        %v2942 = vsub.s32 %v2939, %v2941
        %v2943 = vrot.slane %v2929, %v2942
        %v2944 = vcombine.high %v2936, %v2936
        %v2945 = vcombine.high %v2943, %v2943
        %v2946 = vcombine.high %v2882, %v2882
        %v2948 = vunpack.c.l.s4 1983009808
        %v2949 = vunpack.c.0.s8 %v2948
        %v2950 = vlaneseq
        %v2951 = vshrl.u32 %v2950, 7
        %v2952 = vsub.s32 %v2949, %v2951
        %v2953 = vrot.slane %v2882, %v2952
        %v2955 = vunpack.c.l.s4 1983009808
        %v2956 = vunpack.c.0.s8 %v2955
        %v2957 = vlaneseq
        %v2958 = vshrl.u32 %v2957, 7
        %v2959 = vsub.s32 %v2956, %v2958
        %v2960 = vrot.slane %v2946, %v2959
        %v2961 = vcombine.high %v2953, %v2953
        %v2962 = vcombine.high %v2960, %v2960
        %v2963 = vcombine.high %v2883, %v2883
        %v2965 = vunpack.c.l.s4 1983009808
        %v2966 = vunpack.c.0.s8 %v2965
        %v2967 = vlaneseq
        %v2968 = vshrl.u32 %v2967, 7
        %v2969 = vsub.s32 %v2966, %v2968
        %v2970 = vrot.slane %v2883, %v2969
        %v2972 = vunpack.c.l.s4 1983009808
        %v2973 = vunpack.c.0.s8 %v2972
        %v2974 = vlaneseq
        %v2975 = vshrl.u32 %v2974, 7
        %v2976 = vsub.s32 %v2973, %v2975
        %v2977 = vrot.slane %v2963, %v2976
        %v2978 = vcombine.high %v2970, %v2970
        %v2979 = vcombine.high %v2977, %v2977
        %v2980 = vcombine.high %v2884, %v2884
        %v2982 = vunpack.c.l.s4 1983009808
        %v2983 = vunpack.c.0.s8 %v2982
        %v2984 = vlaneseq
        %v2985 = vshrl.u32 %v2984, 7
        %v2986 = vsub.s32 %v2983, %v2985
        %v2987 = vrot.slane %v2884, %v2986
        %v2989 = vunpack.c.l.s4 1983009808
        %v2990 = vunpack.c.0.s8 %v2989
        %v2991 = vlaneseq
        %v2992 = vshrl.u32 %v2991, 7
        %v2993 = vsub.s32 %v2990, %v2992
        %v2994 = vrot.slane %v2980, %v2993
        %v2995 = vcombine.high %v2987, %v2987
        %v2996 = vcombine.high %v2994, %v2994
        %v2997 = vcombine.high %v2885, %v2885
        %v2999 = vunpack.c.l.s4 1983009808
        %v3000 = vunpack.c.0.s8 %v2999
        %v3001 = vlaneseq
        %v3002 = vshrl.u32 %v3001, 7
        %v3003 = vsub.s32 %v3000, %v3002
        %v3004 = vrot.slane %v2885, %v3003
        %v3006 = vunpack.c.l.s4 1983009808
        %v3007 = vunpack.c.0.s8 %v3006
        %v3008 = vlaneseq
        %v3009 = vshrl.u32 %v3008, 7
        %v3010 = vsub.s32 %v3007, %v3009
        %v3011 = vrot.slane %v2997, %v3010
        %v3012 = vcombine.high %v3004, %v3004
        %v3013 = vcombine.high %v3011, %v3011
        %v3014 = vcombine.high %v2886, %v2886
        %v3016 = vunpack.c.l.s4 1983009808
        %v3017 = vunpack.c.0.s8 %v3016
        %v3018 = vlaneseq
        %v3019 = vshrl.u32 %v3018, 7
        %v3020 = vsub.s32 %v3017, %v3019
        %v3021 = vrot.slane %v2886, %v3020
        %v3023 = vunpack.c.l.s4 1983009808
        %v3024 = vunpack.c.0.s8 %v3023
        %v3025 = vlaneseq
        %v3026 = vshrl.u32 %v3025, 7
        %v3027 = vsub.s32 %v3024, %v3026
        %v3028 = vrot.slane %v3014, %v3027
        %v3029 = vcombine.high %v3021, %v3021
        %v3030 = vcombine.high %v3028, %v3028
        %v3031 = vcombine.high %v2887, %v2887
        %v3033 = vunpack.c.l.s4 1983009808
        %v3034 = vunpack.c.0.s8 %v3033
        %v3035 = vlaneseq
        %v3036 = vshrl.u32 %v3035, 7
        %v3037 = vsub.s32 %v3034, %v3036
        %v3038 = vrot.slane %v2887, %v3037
        %v3040 = vunpack.c.l.s4 1983009808
        %v3041 = vunpack.c.0.s8 %v3040
        %v3042 = vlaneseq
        %v3043 = vshrl.u32 %v3042, 7
        %v3044 = vsub.s32 %v3041, %v3043
        %v3045 = vrot.slane %v3031, %v3044
        %v3046 = vcombine.high %v3038, %v3038
        %v3047 = vcombine.high %v3045, %v3045
        %v3048 = vcombine.high %v2888, %v2888
        %v3050 = vunpack.c.l.s4 1983009808
        %v3051 = vunpack.c.0.s8 %v3050
        %v3052 = vlaneseq
        %v3053 = vshrl.u32 %v3052, 7
        %v3054 = vsub.s32 %v3051, %v3053
        %v3055 = vrot.slane %v2888, %v3054
        %v3057 = vunpack.c.l.s4 1983009808
        %v3058 = vunpack.c.0.s8 %v3057
        %v3059 = vlaneseq
        %v3060 = vshrl.u32 %v3059, 7
        %v3061 = vsub.s32 %v3058, %v3060
        %v3062 = vrot.slane %v3048, %v3061
        %v3063 = vcombine.high %v3055, %v3055
        %v3064 = vcombine.high %v3062, %v3062
        %v3065 = vcombine.high %v2889, %v2889
        %v3067 = vunpack.c.l.s4 1983009808
        %v3068 = vunpack.c.0.s8 %v3067
        %v3069 = vlaneseq
        %v3070 = vshrl.u32 %v3069, 7
        %v3071 = vsub.s32 %v3068, %v3070
        %v3072 = vrot.slane %v2889, %v3071
        %v3074 = vunpack.c.l.s4 1983009808
        %v3075 = vunpack.c.0.s8 %v3074
        %v3076 = vlaneseq
        %v3077 = vshrl.u32 %v3076, 7
        %v3078 = vsub.s32 %v3075, %v3077
        %v3079 = vrot.slane %v3065, %v3078
        %v3080 = vcombine.high %v3072, %v3072
        %v3081 = vcombine.high %v3079, %v3079
        %v3082 = vcombine.high %v2890, %v2890
        %v3084 = vunpack.c.l.s4 1983009808
        %v3085 = vunpack.c.0.s8 %v3084
        %v3086 = vlaneseq
        %v3087 = vshrl.u32 %v3086, 7
        %v3088 = vsub.s32 %v3085, %v3087
        %v3089 = vrot.slane %v2890, %v3088
        %v3091 = vunpack.c.l.s4 1983009808
        %v3092 = vunpack.c.0.s8 %v3091
        %v3093 = vlaneseq
        %v3094 = vshrl.u32 %v3093, 7
        %v3095 = vsub.s32 %v3092, %v3094
        %v3096 = vrot.slane %v3082, %v3095
        %v3097 = vcombine.high %v3089, %v3089
        %v3098 = vcombine.high %v3096, %v3096
        %v3099 = vcombine.high %v2891, %v2891
        %v3101 = vunpack.c.l.s4 1983009808
        %v3102 = vunpack.c.0.s8 %v3101
        %v3103 = vlaneseq
        %v3104 = vshrl.u32 %v3103, 7
        %v3105 = vsub.s32 %v3102, %v3104
        %v3106 = vrot.slane %v2891, %v3105
        %v3108 = vunpack.c.l.s4 1983009808
        %v3109 = vunpack.c.0.s8 %v3108
        %v3110 = vlaneseq
        %v3111 = vshrl.u32 %v3110, 7
        %v3112 = vsub.s32 %v3109, %v3111
        %v3113 = vrot.slane %v3099, %v3112
        %v3114 = vcombine.high %v3106, %v3106
        %v3115 = vcombine.high %v3113, %v3113
        %v3116 = vcombine.high %v2892, %v2892
        %v3118 = vunpack.c.l.s4 1983009808
        %v3119 = vunpack.c.0.s8 %v3118
        %v3120 = vlaneseq
        %v3121 = vshrl.u32 %v3120, 7
        %v3122 = vsub.s32 %v3119, %v3121
        %v3123 = vrot.slane %v2892, %v3122
        %v3125 = vunpack.c.l.s4 1983009808
        %v3126 = vunpack.c.0.s8 %v3125
        %v3127 = vlaneseq
        %v3128 = vshrl.u32 %v3127, 7
        %v3129 = vsub.s32 %v3126, %v3128
        %v3130 = vrot.slane %v3116, %v3129
        %v3131 = vcombine.high %v3123, %v3123
        %v3132 = vcombine.high %v3130, %v3130
        %v3133 = vcombine.high %v2893, %v2893
        %v3135 = vunpack.c.l.s4 1983009808
        %v3136 = vunpack.c.0.s8 %v3135
        %v3137 = vlaneseq
        %v3138 = vshrl.u32 %v3137, 7
        %v3139 = vsub.s32 %v3136, %v3138
        %v3140 = vrot.slane %v2893, %v3139
        %v3142 = vunpack.c.l.s4 1983009808
        %v3143 = vunpack.c.0.s8 %v3142
        %v3144 = vlaneseq
        %v3145 = vshrl.u32 %v3144, 7
        %v3146 = vsub.s32 %v3143, %v3145
        %v3147 = vrot.slane %v3133, %v3146
        %v3148 = vcombine.high %v3140, %v3140
        %v3149 = vcombine.high %v3147, %v3147
        %v3150 = vcombine.high %v2894, %v2894
        %v3152 = vunpack.c.l.s4 1983009808
        %v3153 = vunpack.c.0.s8 %v3152
        %v3154 = vlaneseq
        %v3155 = vshrl.u32 %v3154, 7
        %v3156 = vsub.s32 %v3153, %v3155
        %v3157 = vrot.slane %v2894, %v3156
        %v3159 = vunpack.c.l.s4 1983009808
        %v3160 = vunpack.c.0.s8 %v3159
        %v3161 = vlaneseq
        %v3162 = vshrl.u32 %v3161, 7
        %v3163 = vsub.s32 %v3160, %v3162
        %v3164 = vrot.slane %v3150, %v3163
        %v3165 = vcombine.high %v3157, %v3157
        %v3166 = vcombine.high %v3164, %v3164
        %v3167 = vcombine.high %v2895, %v2895
        %v3169 = vunpack.c.l.s4 1983009808
        %v3170 = vunpack.c.0.s8 %v3169
        %v3171 = vlaneseq
        %v3172 = vshrl.u32 %v3171, 7
        %v3173 = vsub.s32 %v3170, %v3172
        %v3174 = vrot.slane %v2895, %v3173
        %v3176 = vunpack.c.l.s4 1983009808
        %v3177 = vunpack.c.0.s8 %v3176
        %v3178 = vlaneseq
        %v3179 = vshrl.u32 %v3178, 7
        %v3180 = vsub.s32 %v3177, %v3179
        %v3181 = vrot.slane %v3167, %v3180
        %v3182 = vcombine.high %v3174, %v3174
        %v3183 = vcombine.high %v3181, %v3181
        %v3184 = vcombine.high %v2896, %v2896
        %v3186 = vunpack.c.l.s4 1983009808
        %v3187 = vunpack.c.0.s8 %v3186
        %v3188 = vlaneseq
        %v3189 = vshrl.u32 %v3188, 7
        %v3190 = vsub.s32 %v3187, %v3189
        %v3191 = vrot.slane %v2896, %v3190
        %v3193 = vunpack.c.l.s4 1983009808
        %v3194 = vunpack.c.0.s8 %v3193
        %v3195 = vlaneseq
        %v3196 = vshrl.u32 %v3195, 7
        %v3197 = vsub.s32 %v3194, %v3196
        %v3198 = vrot.slane %v3184, %v3197
        %v3199 = vcombine.high %v3191, %v3191
        %v3200 = vcombine.high %v3198, %v3198
        %v3201 = vcombine.high %v2897, %v2897
        %v3203 = vunpack.c.l.s4 1983009808
        %v3204 = vunpack.c.0.s8 %v3203
        %v3205 = vlaneseq
        %v3206 = vshrl.u32 %v3205, 7
        %v3207 = vsub.s32 %v3204, %v3206
        %v3208 = vrot.slane %v2897, %v3207
        %v3210 = vunpack.c.l.s4 1983009808
        %v3211 = vunpack.c.0.s8 %v3210
        %v3212 = vlaneseq
        %v3213 = vshrl.u32 %v3212, 7
        %v3214 = vsub.s32 %v3211, %v3213
        %v3215 = vrot.slane %v3201, %v3214
        %v3216 = vcombine.high %v3208, %v3208
        %v3217 = vcombine.high %v3215, %v3215
        %v3218 = vcombine.high %v2898, %v2898
        %v3220 = vunpack.c.l.s4 1983009808
        %v3221 = vunpack.c.0.s8 %v3220
        %v3222 = vlaneseq
        %v3223 = vshrl.u32 %v3222, 7
        %v3224 = vsub.s32 %v3221, %v3223
        %v3225 = vrot.slane %v2898, %v3224
        %v3227 = vunpack.c.l.s4 1983009808
        %v3228 = vunpack.c.0.s8 %v3227
        %v3229 = vlaneseq
        %v3230 = vshrl.u32 %v3229, 7
        %v3231 = vsub.s32 %v3228, %v3230
        %v3232 = vrot.slane %v3218, %v3231
        %v3233 = vcombine.high %v3225, %v3225
        %v3234 = vcombine.high %v3232, %v3232
        %v3235 = vcombine.high %v2899, %v2899
        %v3237 = vunpack.c.l.s4 1983009808
        %v3238 = vunpack.c.0.s8 %v3237
        %v3239 = vlaneseq
        %v3240 = vshrl.u32 %v3239, 7
        %v3241 = vsub.s32 %v3238, %v3240
        %v3242 = vrot.slane %v2899, %v3241
        %v3244 = vunpack.c.l.s4 1983009808
        %v3245 = vunpack.c.0.s8 %v3244
        %v3246 = vlaneseq
        %v3247 = vshrl.u32 %v3246, 7
        %v3248 = vsub.s32 %v3245, %v3247
        %v3249 = vrot.slane %v3235, %v3248
        %v3250 = vcombine.high %v3242, %v3242
        %v3251 = vcombine.high %v3249, %v3249
        %v3252 = vcombine.high %v2900, %v2900
        %v3254 = vunpack.c.l.s4 1983009808
        %v3255 = vunpack.c.0.s8 %v3254
        %v3256 = vlaneseq
        %v3257 = vshrl.u32 %v3256, 7
        %v3258 = vsub.s32 %v3255, %v3257
        %v3259 = vrot.slane %v2900, %v3258
        %v3261 = vunpack.c.l.s4 1983009808
        %v3262 = vunpack.c.0.s8 %v3261
        %v3263 = vlaneseq
        %v3264 = vshrl.u32 %v3263, 7
        %v3265 = vsub.s32 %v3262, %v3264
        %v3266 = vrot.slane %v3252, %v3265
        %v3267 = vcombine.high %v3259, %v3259
        %v3268 = vcombine.high %v3266, %v3266
        %v3269 = vcombine.high %v2901, %v2901
        %v3271 = vunpack.c.l.s4 1983009808
        %v3272 = vunpack.c.0.s8 %v3271
        %v3273 = vlaneseq
        %v3274 = vshrl.u32 %v3273, 7
        %v3275 = vsub.s32 %v3272, %v3274
        %v3276 = vrot.slane %v2901, %v3275
        %v3278 = vunpack.c.l.s4 1983009808
        %v3279 = vunpack.c.0.s8 %v3278
        %v3280 = vlaneseq
        %v3281 = vshrl.u32 %v3280, 7
        %v3282 = vsub.s32 %v3279, %v3281
        %v3283 = vrot.slane %v3269, %v3282
        %v3284 = vcombine.high %v3276, %v3276
        %v3285 = vcombine.high %v3283, %v3283
        %v3286 = vcombine.high %v2902, %v2902
        %v3288 = vunpack.c.l.s4 1983009808
        %v3289 = vunpack.c.0.s8 %v3288
        %v3290 = vlaneseq
        %v3291 = vshrl.u32 %v3290, 7
        %v3292 = vsub.s32 %v3289, %v3291
        %v3293 = vrot.slane %v2902, %v3292
        %v3295 = vunpack.c.l.s4 1983009808
        %v3296 = vunpack.c.0.s8 %v3295
        %v3297 = vlaneseq
        %v3298 = vshrl.u32 %v3297, 7
        %v3299 = vsub.s32 %v3296, %v3298
        %v3300 = vrot.slane %v3286, %v3299
        %v3301 = vcombine.high %v3293, %v3293
        %v3302 = vcombine.high %v3300, %v3300
        %v3303 = vcombine.high %v2903, %v2903
        %v3305 = vunpack.c.l.s4 1983009808
        %v3306 = vunpack.c.0.s8 %v3305
        %v3307 = vlaneseq
        %v3308 = vshrl.u32 %v3307, 7
        %v3309 = vsub.s32 %v3306, %v3308
        %v3310 = vrot.slane %v2903, %v3309
        %v3312 = vunpack.c.l.s4 1983009808
        %v3313 = vunpack.c.0.s8 %v3312
        %v3314 = vlaneseq
        %v3315 = vshrl.u32 %v3314, 7
        %v3316 = vsub.s32 %v3313, %v3315
        %v3317 = vrot.slane %v3303, %v3316
        %v3318 = vcombine.high %v3310, %v3310
        %v3319 = vcombine.high %v3317, %v3317
        %v3320 = vcombine.high %v2904, %v2904
        %v3322 = vunpack.c.l.s4 1983009808
        %v3323 = vunpack.c.0.s8 %v3322
        %v3324 = vlaneseq
        %v3325 = vshrl.u32 %v3324, 7
        %v3326 = vsub.s32 %v3323, %v3325
        %v3327 = vrot.slane %v2904, %v3326
        %v3329 = vunpack.c.l.s4 1983009808
        %v3330 = vunpack.c.0.s8 %v3329
        %v3331 = vlaneseq
        %v3332 = vshrl.u32 %v3331, 7
        %v3333 = vsub.s32 %v3330, %v3332
        %v3334 = vrot.slane %v3320, %v3333
        %v3335 = vcombine.high %v3327, %v3327
        %v3336 = vcombine.high %v3334, %v3334
        %v3433 = vrot.slane %v2936, 7
        %v3434 = vrot.slane %v3433, 2
        %v3435 = vrot.slane %v2944, 7
        %v3436 = vrot.slane %v3435, 2
        %v3437 = vrot.slane %v2943, 7
        %v3438 = vrot.slane %v3437, 2
        %v3439 = vrot.slane %v2945, 7
        %v3440 = vrot.slane %v3439, 2
        %v3441 = vrot.slane %v2953, 7
        %v3442 = vrot.slane %v3441, 2
        %v3443 = vrot.slane %v2961, 7
        %v3444 = vrot.slane %v3443, 2
        %v3445 = vrot.slane %v2960, 7
        %v3446 = vrot.slane %v3445, 2
        %v3447 = vrot.slane %v2962, 7
        %v3448 = vrot.slane %v3447, 2
        %v3449 = vrot.slane %v2970, 7
        %v3450 = vrot.slane %v3449, 2
        %v3451 = vrot.slane %v2978, 7
        %v3452 = vrot.slane %v3451, 2
        %v3453 = vrot.slane %v2977, 7
        %v3454 = vrot.slane %v3453, 2
        %v3455 = vrot.slane %v2979, 7
        %v3456 = vrot.slane %v3455, 2
        %v3457 = vrot.slane %v2987, 7
        %v3458 = vrot.slane %v3457, 2
        %v3459 = vrot.slane %v2995, 7
        %v3460 = vrot.slane %v3459, 2
        %v3461 = vrot.slane %v2994, 7
        %v3462 = vrot.slane %v3461, 2
        %v3463 = vrot.slane %v2996, 7
        %v3464 = vrot.slane %v3463, 2
        %v3465 = vrot.slane %v3004, 7
        %v3466 = vrot.slane %v3465, 2
        %v3467 = vrot.slane %v3012, 7
        %v3468 = vrot.slane %v3467, 2
        %v3469 = vrot.slane %v3011, 7
        %v3470 = vrot.slane %v3469, 2
        %v3471 = vrot.slane %v3013, 7
        %v3472 = vrot.slane %v3471, 2
        %v3473 = vrot.slane %v3021, 7
        %v3474 = vrot.slane %v3473, 2
        %v3475 = vrot.slane %v3029, 7
        %v3476 = vrot.slane %v3475, 2
        %v3477 = vrot.slane %v3028, 7
        %v3478 = vrot.slane %v3477, 2
        %v3479 = vrot.slane %v3030, 7
        %v3480 = vrot.slane %v3479, 2
        %v3481 = vrot.slane %v3038, 7
        %v3482 = vrot.slane %v3481, 2
        %v3483 = vrot.slane %v3046, 7
        %v3484 = vrot.slane %v3483, 2
        %v3485 = vrot.slane %v3045, 7
        %v3486 = vrot.slane %v3485, 2
        %v3487 = vrot.slane %v3047, 7
        %v3488 = vrot.slane %v3487, 2
        %v3489 = vrot.slane %v3055, 7
        %v3490 = vrot.slane %v3489, 2
        %v3491 = vrot.slane %v3063, 7
        %v3492 = vrot.slane %v3491, 2
        %v3493 = vrot.slane %v3062, 7
        %v3494 = vrot.slane %v3493, 2
        %v3495 = vrot.slane %v3064, 7
        %v3496 = vrot.slane %v3495, 2
        %v3497 = vrot.slane %v3072, 7
        %v3498 = vrot.slane %v3497, 2
        %v3499 = vrot.slane %v3080, 7
        %v3500 = vrot.slane %v3499, 2
        %v3501 = vrot.slane %v3079, 7
        %v3502 = vrot.slane %v3501, 2
        %v3503 = vrot.slane %v3081, 7
        %v3504 = vrot.slane %v3503, 2
        %v3505 = vrot.slane %v3089, 7
        %v3506 = vrot.slane %v3505, 2
        %v3507 = vrot.slane %v3097, 7
        %v3508 = vrot.slane %v3507, 2
        %v3509 = vrot.slane %v3096, 7
        %v3510 = vrot.slane %v3509, 2
        %v3511 = vrot.slane %v3098, 7
        %v3512 = vrot.slane %v3511, 2
        %v3513 = vrot.slane %v3106, 7
        %v3514 = vrot.slane %v3513, 2
        %v3515 = vrot.slane %v3114, 7
        %v3516 = vrot.slane %v3515, 2
        %v3517 = vrot.slane %v3113, 7
        %v3518 = vrot.slane %v3517, 2
        %v3519 = vrot.slane %v3115, 7
        %v3520 = vrot.slane %v3519, 2
        %v3521 = vrot.slane %v3123, 7
        %v3522 = vrot.slane %v3521, 2
        %v3523 = vrot.slane %v3131, 7
        %v3524 = vrot.slane %v3523, 2
        %v3525 = vrot.slane %v3130, 7
        %v3526 = vrot.slane %v3525, 2
        %v3527 = vrot.slane %v3132, 7
        %v3528 = vrot.slane %v3527, 2
        %v3529 = vrot.slane %v3140, 7
        %v3530 = vrot.slane %v3529, 2
        %v3531 = vrot.slane %v3148, 7
        %v3532 = vrot.slane %v3531, 2
        %v3533 = vrot.slane %v3147, 7
        %v3534 = vrot.slane %v3533, 2
        %v3535 = vrot.slane %v3149, 7
        %v3536 = vrot.slane %v3535, 2
        %v3537 = vrot.slane %v3157, 7
        %v3538 = vrot.slane %v3537, 2
        %v3539 = vrot.slane %v3165, 7
        %v3540 = vrot.slane %v3539, 2
        %v3541 = vrot.slane %v3164, 7
        %v3542 = vrot.slane %v3541, 2
        %v3543 = vrot.slane %v3166, 7
        %v3544 = vrot.slane %v3543, 2
        %v3545 = vrot.slane %v3174, 7
        %v3546 = vrot.slane %v3545, 2
        %v3547 = vrot.slane %v3182, 7
        %v3548 = vrot.slane %v3547, 2
        %v3549 = vrot.slane %v3181, 7
        %v3550 = vrot.slane %v3549, 2
        %v3551 = vrot.slane %v3183, 7
        %v3552 = vrot.slane %v3551, 2
        %v3553 = vrot.slane %v3191, 7
        %v3554 = vrot.slane %v3553, 2
        %v3555 = vrot.slane %v3199, 7
        %v3556 = vrot.slane %v3555, 2
        %v3557 = vrot.slane %v3198, 7
        %v3558 = vrot.slane %v3557, 2
        %v3559 = vrot.slane %v3200, 7
        %v3560 = vrot.slane %v3559, 2
        %v3561 = vrot.slane %v3208, 7
        %v3562 = vrot.slane %v3561, 2
        %v3563 = vrot.slane %v3216, 7
        %v3564 = vrot.slane %v3563, 2
        %v3565 = vrot.slane %v3215, 7
        %v3566 = vrot.slane %v3565, 2
        %v3567 = vrot.slane %v3217, 7
        %v3568 = vrot.slane %v3567, 2
        %v3569 = vrot.slane %v3225, 7
        %v3570 = vrot.slane %v3569, 2
        %v3571 = vrot.slane %v3233, 7
        %v3572 = vrot.slane %v3571, 2
        %v3573 = vrot.slane %v3232, 7
        %v3574 = vrot.slane %v3573, 2
        %v3575 = vrot.slane %v3234, 7
        %v3576 = vrot.slane %v3575, 2
        %v3577 = vrot.slane %v3242, 7
        %v3578 = vrot.slane %v3577, 2
        %v3579 = vrot.slane %v3250, 7
        %v3580 = vrot.slane %v3579, 2
        %v3581 = vrot.slane %v3249, 7
        %v3582 = vrot.slane %v3581, 2
        %v3583 = vrot.slane %v3251, 7
        %v3584 = vrot.slane %v3583, 2
        %v3585 = vrot.slane %v3259, 7
        %v3586 = vrot.slane %v3585, 2
        %v3587 = vrot.slane %v3267, 7
        %v3588 = vrot.slane %v3587, 2
        %v3589 = vrot.slane %v3266, 7
        %v3590 = vrot.slane %v3589, 2
        %v3591 = vrot.slane %v3268, 7
        %v3592 = vrot.slane %v3591, 2
        %v3593 = vrot.slane %v3276, 7
        %v3594 = vrot.slane %v3593, 2
        %v3595 = vrot.slane %v3284, 7
        %v3596 = vrot.slane %v3595, 2
        %v3597 = vrot.slane %v3283, 7
        %v3598 = vrot.slane %v3597, 2
        %v3599 = vrot.slane %v3285, 7
        %v3600 = vrot.slane %v3599, 2
        %v3601 = vrot.slane %v3293, 7
        %v3602 = vrot.slane %v3601, 2
        %v3603 = vrot.slane %v3301, 7
        %v3604 = vrot.slane %v3603, 2
        %v3605 = vrot.slane %v3300, 7
        %v3606 = vrot.slane %v3605, 2
        %v3607 = vrot.slane %v3302, 7
        %v3608 = vrot.slane %v3607, 2
        %v3609 = vrot.slane %v3310, 7
        %v3610 = vrot.slane %v3609, 2
        %v3611 = vrot.slane %v3318, 7
        %v3612 = vrot.slane %v3611, 2
        %v3613 = vrot.slane %v3317, 7
        %v3614 = vrot.slane %v3613, 2
        %v3615 = vrot.slane %v3319, 7
        %v3616 = vrot.slane %v3615, 2
        %v3617 = vrot.slane %v3327, 7
        %v3618 = vrot.slane %v3617, 2
        %v3619 = vrot.slane %v3335, 7
        %v3620 = vrot.slane %v3619, 2
        %v3621 = vrot.slane %v3334, 7
        %v3622 = vrot.slane %v3621, 2
        %v3623 = vrot.slane %v3336, 7
        %v3624 = vrot.slane %v3623, 2
        %v3721 = vmax.f32 %v2936, %v3434
        %v3722 = vmax.f32 %v2944, %v3436
        %v3723 = vmax.f32 %v2943, %v3438
        %v3724 = vmax.f32 %v2945, %v3440
        %v3725 = vmax.f32 %v2953, %v3442
        %v3726 = vmax.f32 %v2961, %v3444
        %v3727 = vmax.f32 %v2960, %v3446
        %v3728 = vmax.f32 %v2962, %v3448
        %v3729 = vmax.f32 %v2970, %v3450
        %v3730 = vmax.f32 %v2978, %v3452
        %v3731 = vmax.f32 %v2977, %v3454
        %v3732 = vmax.f32 %v2979, %v3456
        %v3733 = vmax.f32 %v2987, %v3458
        %v3734 = vmax.f32 %v2995, %v3460
        %v3735 = vmax.f32 %v2994, %v3462
        %v3736 = vmax.f32 %v2996, %v3464
        %v3737 = vmax.f32 %v3004, %v3466
        %v3738 = vmax.f32 %v3012, %v3468
        %v3739 = vmax.f32 %v3011, %v3470
        %v3740 = vmax.f32 %v3013, %v3472
        %v3741 = vmax.f32 %v3021, %v3474
        %v3742 = vmax.f32 %v3029, %v3476
        %v3743 = vmax.f32 %v3028, %v3478
        %v3744 = vmax.f32 %v3030, %v3480
        %v3745 = vmax.f32 %v3038, %v3482
        %v3746 = vmax.f32 %v3046, %v3484
        %v3747 = vmax.f32 %v3045, %v3486
        %v3748 = vmax.f32 %v3047, %v3488
        %v3749 = vmax.f32 %v3055, %v3490
        %v3750 = vmax.f32 %v3063, %v3492
        %v3751 = vmax.f32 %v3062, %v3494
        %v3752 = vmax.f32 %v3064, %v3496
        %v3753 = vmax.f32 %v3072, %v3498
        %v3754 = vmax.f32 %v3080, %v3500
        %v3755 = vmax.f32 %v3079, %v3502
        %v3756 = vmax.f32 %v3081, %v3504
        %v3757 = vmax.f32 %v3089, %v3506
        %v3758 = vmax.f32 %v3097, %v3508
        %v3759 = vmax.f32 %v3096, %v3510
        %v3760 = vmax.f32 %v3098, %v3512
        %v3761 = vmax.f32 %v3106, %v3514
        %v3762 = vmax.f32 %v3114, %v3516
        %v3763 = vmax.f32 %v3113, %v3518
        %v3764 = vmax.f32 %v3115, %v3520
        %v3765 = vmax.f32 %v3123, %v3522
        %v3766 = vmax.f32 %v3131, %v3524
        %v3767 = vmax.f32 %v3130, %v3526
        %v3768 = vmax.f32 %v3132, %v3528
        %v3769 = vmax.f32 %v3140, %v3530
        %v3770 = vmax.f32 %v3148, %v3532
        %v3771 = vmax.f32 %v3147, %v3534
        %v3772 = vmax.f32 %v3149, %v3536
        %v3773 = vmax.f32 %v3157, %v3538
        %v3774 = vmax.f32 %v3165, %v3540
        %v3775 = vmax.f32 %v3164, %v3542
        %v3776 = vmax.f32 %v3166, %v3544
        %v3777 = vmax.f32 %v3174, %v3546
        %v3778 = vmax.f32 %v3182, %v3548
        %v3779 = vmax.f32 %v3181, %v3550
        %v3780 = vmax.f32 %v3183, %v3552
        %v3781 = vmax.f32 %v3191, %v3554
        %v3782 = vmax.f32 %v3199, %v3556
        %v3783 = vmax.f32 %v3198, %v3558
        %v3784 = vmax.f32 %v3200, %v3560
        %v3785 = vmax.f32 %v3208, %v3562
        %v3786 = vmax.f32 %v3216, %v3564
        %v3787 = vmax.f32 %v3215, %v3566
        %v3788 = vmax.f32 %v3217, %v3568
        %v3789 = vmax.f32 %v3225, %v3570
        %v3790 = vmax.f32 %v3233, %v3572
        %v3791 = vmax.f32 %v3232, %v3574
        %v3792 = vmax.f32 %v3234, %v3576
        %v3793 = vmax.f32 %v3242, %v3578
        %v3794 = vmax.f32 %v3250, %v3580
        %v3795 = vmax.f32 %v3249, %v3582
        %v3796 = vmax.f32 %v3251, %v3584
        %v3797 = vmax.f32 %v3259, %v3586
        %v3798 = vmax.f32 %v3267, %v3588
        %v3799 = vmax.f32 %v3266, %v3590
        %v3800 = vmax.f32 %v3268, %v3592
        %v3801 = vmax.f32 %v3276, %v3594
        %v3802 = vmax.f32 %v3284, %v3596
        %v3803 = vmax.f32 %v3283, %v3598
        %v3804 = vmax.f32 %v3285, %v3600
        %v3805 = vmax.f32 %v3293, %v3602
        %v3806 = vmax.f32 %v3301, %v3604
        %v3807 = vmax.f32 %v3300, %v3606
        %v3808 = vmax.f32 %v3302, %v3608
        %v3809 = vmax.f32 %v3310, %v3610
        %v3810 = vmax.f32 %v3318, %v3612
        %v3811 = vmax.f32 %v3317, %v3614
        %v3812 = vmax.f32 %v3319, %v3616
        %v3813 = vmax.f32 %v3327, %v3618
        %v3814 = vmax.f32 %v3335, %v3620
        %v3815 = vmax.f32 %v3334, %v3622
        %v3816 = vmax.f32 %v3336, %v3624
        %v3817 = vld [vmem:[%s5] sm:$0xff]
        %v3818 = vld [vmem:[%s5 + $0x8] sm:$0xff]
        %v3819 = vld [vmem:[%s5 + $0x10] sm:$0xff]
        %v3820 = vld [vmem:[%s5 + $0x18] sm:$0xff]
        %v3821 = vld [vmem:[%s5 + $0x20] sm:$0xff]
        %v3822 = vld [vmem:[%s5 + $0x28] sm:$0xff]
        %v3823 = vld [vmem:[%s5 + $0x30] sm:$0xff]
        %v3824 = vld [vmem:[%s5 + $0x38] sm:$0xff]
        %v3825 = vld [vmem:[%s5 + $0x40] sm:$0xff]
        %s3826 = scalar_lea.vmem %s5, 72
        %v3827 = vld [vmem:[%s3826] sm:$0xff]
        %v3828 = vld [vmem:[%s3826 + $0x8] sm:$0xff]
        %v3829 = vld [vmem:[%s3826 + $0x10] sm:$0xff]
        %v3830 = vld [vmem:[%s3826 + $0x18] sm:$0xff]
        %v3831 = vld [vmem:[%s3826 + $0x20] sm:$0xff]
        %v3832 = vld [vmem:[%s3826 + $0x28] sm:$0xff]
        %v3833 = vld [vmem:[%s3826 + $0x30] sm:$0xff]
        %v3834 = vld [vmem:[%s3826 + $0x38] sm:$0xff]
        %v3835 = vld [vmem:[%s3826 + $0x40] sm:$0xff]
        %v3900 = vlaneseq
        %v3901 = vshrl.u32 %v3900, 7
        %v3902 = vsub.s32 0, %v3901
        %v3903 = vrot.slane %v3722, %v3902
        %v3904 = vlaneseq
        %v3905 = vshrl.u32 %v3904, 7
        %v3906 = vsub.s32 0, %v3905
        %v3907 = vrot.slane %v3723, %v3906
        %v3908 = vlaneseq
        %v3909 = vshrl.u32 %v3908, 7
        %v3910 = vsub.s32 0, %v3909
        %v3911 = vrot.slane %v3724, %v3910
        %v3912 = vlaneseq
        %v3913 = vshrl.u32 %v3912, 7
        %v3914 = vsub.s32 0, %v3913
        %v3915 = vrot.slane %v3725, %v3914
        %v3916 = vlaneseq
        %v3917 = vshrl.u32 %v3916, 7
        %v3918 = vsub.s32 0, %v3917
        %v3919 = vrot.slane %v3726, %v3918
        %v3920 = vlaneseq
        %v3921 = vshrl.u32 %v3920, 7
        %v3922 = vsub.s32 0, %v3921
        %v3923 = vrot.slane %v3727, %v3922
        %v3924 = vlaneseq
        %v3925 = vshrl.u32 %v3924, 7
        %v3926 = vsub.s32 0, %v3925
        %v3927 = vrot.slane %v3728, %v3926
        %v3928 = vlaneseq
        %v3929 = vshrl.u32 %v3928, 7
        %v3930 = vsub.s32 0, %v3929
        %v3931 = vrot.slane %v3729, %v3930
        %v3932 = vlaneseq
        %v3933 = vshrl.u32 %v3932, 7
        %v3934 = vsub.s32 0, %v3933
        %v3935 = vrot.slane %v3734, %v3934
        %v3936 = vlaneseq
        %v3937 = vshrl.u32 %v3936, 7
        %v3938 = vsub.s32 0, %v3937
        %v3939 = vrot.slane %v3735, %v3938
        %v3940 = vlaneseq
        %v3941 = vshrl.u32 %v3940, 7
        %v3942 = vsub.s32 0, %v3941
        %v3943 = vrot.slane %v3736, %v3942
        %v3944 = vlaneseq
        %v3945 = vshrl.u32 %v3944, 7
        %v3946 = vsub.s32 0, %v3945
        %v3947 = vrot.slane %v3737, %v3946
        %v3948 = vlaneseq
        %v3949 = vshrl.u32 %v3948, 7
        %v3950 = vsub.s32 0, %v3949
        %v3951 = vrot.slane %v3738, %v3950
        %v3952 = vlaneseq
        %v3953 = vshrl.u32 %v3952, 7
        %v3954 = vsub.s32 0, %v3953
        %v3955 = vrot.slane %v3739, %v3954
        %v3956 = vlaneseq
        %v3957 = vshrl.u32 %v3956, 7
        %v3958 = vsub.s32 0, %v3957
        %v3959 = vrot.slane %v3740, %v3958
        %v3960 = vlaneseq
        %v3961 = vshrl.u32 %v3960, 7
        %v3962 = vsub.s32 0, %v3961
        %v3963 = vrot.slane %v3741, %v3962
        %v3964 = vlaneseq
        %v3965 = vshrl.u32 %v3964, 7
        %v3966 = vsub.s32 0, %v3965
        %v3967 = vrot.slane %v3746, %v3966
        %v3968 = vlaneseq
        %v3969 = vshrl.u32 %v3968, 7
        %v3970 = vsub.s32 0, %v3969
        %v3971 = vrot.slane %v3747, %v3970
        %v3972 = vlaneseq
        %v3973 = vshrl.u32 %v3972, 7
        %v3974 = vsub.s32 0, %v3973
        %v3975 = vrot.slane %v3748, %v3974
        %v3976 = vlaneseq
        %v3977 = vshrl.u32 %v3976, 7
        %v3978 = vsub.s32 0, %v3977
        %v3979 = vrot.slane %v3749, %v3978
        %v3980 = vlaneseq
        %v3981 = vshrl.u32 %v3980, 7
        %v3982 = vsub.s32 0, %v3981
        %v3983 = vrot.slane %v3750, %v3982
        %v3984 = vlaneseq
        %v3985 = vshrl.u32 %v3984, 7
        %v3986 = vsub.s32 0, %v3985
        %v3987 = vrot.slane %v3751, %v3986
        %v3988 = vlaneseq
        %v3989 = vshrl.u32 %v3988, 7
        %v3990 = vsub.s32 0, %v3989
        %v3991 = vrot.slane %v3752, %v3990
        %v3992 = vlaneseq
        %v3993 = vshrl.u32 %v3992, 7
        %v3994 = vsub.s32 0, %v3993
        %v3995 = vrot.slane %v3753, %v3994
        %v3996 = vlaneseq
        %v3997 = vshrl.u32 %v3996, 7
        %v3998 = vsub.s32 0, %v3997
        %v3999 = vrot.slane %v3758, %v3998
        %v4000 = vlaneseq
        %v4001 = vshrl.u32 %v4000, 7
        %v4002 = vsub.s32 0, %v4001
        %v4003 = vrot.slane %v3759, %v4002
        %v4004 = vlaneseq
        %v4005 = vshrl.u32 %v4004, 7
        %v4006 = vsub.s32 0, %v4005
        %v4007 = vrot.slane %v3760, %v4006
        %v4008 = vlaneseq
        %v4009 = vshrl.u32 %v4008, 7
        %v4010 = vsub.s32 0, %v4009
        %v4011 = vrot.slane %v3761, %v4010
        %v4012 = vlaneseq
        %v4013 = vshrl.u32 %v4012, 7
        %v4014 = vsub.s32 0, %v4013
        %v4015 = vrot.slane %v3762, %v4014
        %v4016 = vlaneseq
        %v4017 = vshrl.u32 %v4016, 7
        %v4018 = vsub.s32 0, %v4017
        %v4019 = vrot.slane %v3763, %v4018
        %v4020 = vlaneseq
        %v4021 = vshrl.u32 %v4020, 7
        %v4022 = vsub.s32 0, %v4021
        %v4023 = vrot.slane %v3764, %v4022
        %v4024 = vlaneseq
        %v4025 = vshrl.u32 %v4024, 7
        %v4026 = vsub.s32 0, %v4025
        %v4027 = vrot.slane %v3765, %v4026
        %v4028 = vlaneseq
        %v4029 = vshrl.u32 %v4028, 7
        %v4030 = vsub.s32 0, %v4029
        %v4031 = vrot.slane %v3770, %v4030
        %v4032 = vlaneseq
        %v4033 = vshrl.u32 %v4032, 7
        %v4034 = vsub.s32 0, %v4033
        %v4035 = vrot.slane %v3771, %v4034
        %v4036 = vlaneseq
        %v4037 = vshrl.u32 %v4036, 7
        %v4038 = vsub.s32 0, %v4037
        %v4039 = vrot.slane %v3772, %v4038
        %v4040 = vlaneseq
        %v4041 = vshrl.u32 %v4040, 7
        %v4042 = vsub.s32 0, %v4041
        %v4043 = vrot.slane %v3773, %v4042
        %v4044 = vlaneseq
        %v4045 = vshrl.u32 %v4044, 7
        %v4046 = vsub.s32 0, %v4045
        %v4047 = vrot.slane %v3774, %v4046
        %v4048 = vlaneseq
        %v4049 = vshrl.u32 %v4048, 7
        %v4050 = vsub.s32 0, %v4049
        %v4051 = vrot.slane %v3775, %v4050
        %v4052 = vlaneseq
        %v4053 = vshrl.u32 %v4052, 7
        %v4054 = vsub.s32 0, %v4053
        %v4055 = vrot.slane %v3776, %v4054
        %v4056 = vlaneseq
        %v4057 = vshrl.u32 %v4056, 7
        %v4058 = vsub.s32 0, %v4057
        %v4059 = vrot.slane %v3777, %v4058
        %v4060 = vlaneseq
        %v4061 = vshrl.u32 %v4060, 7
        %v4062 = vsub.s32 0, %v4061
        %v4063 = vrot.slane %v3782, %v4062
        %v4064 = vlaneseq
        %v4065 = vshrl.u32 %v4064, 7
        %v4066 = vsub.s32 0, %v4065
        %v4067 = vrot.slane %v3783, %v4066
        %v4068 = vlaneseq
        %v4069 = vshrl.u32 %v4068, 7
        %v4070 = vsub.s32 0, %v4069
        %v4071 = vrot.slane %v3784, %v4070
        %v4072 = vlaneseq
        %v4073 = vshrl.u32 %v4072, 7
        %v4074 = vsub.s32 0, %v4073
        %v4075 = vrot.slane %v3785, %v4074
        %v4076 = vlaneseq
        %v4077 = vshrl.u32 %v4076, 7
        %v4078 = vsub.s32 0, %v4077
        %v4079 = vrot.slane %v3786, %v4078
        %v4080 = vlaneseq
        %v4081 = vshrl.u32 %v4080, 7
        %v4082 = vsub.s32 0, %v4081
        %v4083 = vrot.slane %v3787, %v4082
        %v4084 = vlaneseq
        %v4085 = vshrl.u32 %v4084, 7
        %v4086 = vsub.s32 0, %v4085
        %v4087 = vrot.slane %v3788, %v4086
        %v4088 = vlaneseq
        %v4089 = vshrl.u32 %v4088, 7
        %v4090 = vsub.s32 0, %v4089
        %v4091 = vrot.slane %v3789, %v4090
        %v4092 = vlaneseq
        %v4093 = vshrl.u32 %v4092, 7
        %v4094 = vsub.s32 0, %v4093
        %v4095 = vrot.slane %v3794, %v4094
        %v4096 = vlaneseq
        %v4097 = vshrl.u32 %v4096, 7
        %v4098 = vsub.s32 0, %v4097
        %v4099 = vrot.slane %v3795, %v4098
        %v4100 = vlaneseq
        %v4101 = vshrl.u32 %v4100, 7
        %v4102 = vsub.s32 0, %v4101
        %v4103 = vrot.slane %v3796, %v4102
        %v4104 = vlaneseq
        %v4105 = vshrl.u32 %v4104, 7
        %v4106 = vsub.s32 0, %v4105
        %v4107 = vrot.slane %v3797, %v4106
        %v4108 = vlaneseq
        %v4109 = vshrl.u32 %v4108, 7
        %v4110 = vsub.s32 0, %v4109
        %v4111 = vrot.slane %v3798, %v4110
        %v4112 = vlaneseq
        %v4113 = vshrl.u32 %v4112, 7
        %v4114 = vsub.s32 0, %v4113
        %v4115 = vrot.slane %v3799, %v4114
        %v4116 = vlaneseq
        %v4117 = vshrl.u32 %v4116, 7
        %v4118 = vsub.s32 0, %v4117
        %v4119 = vrot.slane %v3800, %v4118
        %v4120 = vlaneseq
        %v4121 = vshrl.u32 %v4120, 7
        %v4122 = vsub.s32 0, %v4121
        %v4123 = vrot.slane %v3801, %v4122
        %v4124 = vlaneseq
        %v4125 = vshrl.u32 %v4124, 7
        %v4126 = vsub.s32 0, %v4125
        %v4127 = vrot.slane %v3806, %v4126
        %v4128 = vlaneseq
        %v4129 = vshrl.u32 %v4128, 7
        %v4130 = vsub.s32 0, %v4129
        %v4131 = vrot.slane %v3807, %v4130
        %v4132 = vlaneseq
        %v4133 = vshrl.u32 %v4132, 7
        %v4134 = vsub.s32 0, %v4133
        %v4135 = vrot.slane %v3808, %v4134
        %v4136 = vlaneseq
        %v4137 = vshrl.u32 %v4136, 7
        %v4138 = vsub.s32 0, %v4137
        %v4139 = vrot.slane %v3809, %v4138
        %v4140 = vlaneseq
        %v4141 = vshrl.u32 %v4140, 7
        %v4142 = vsub.s32 0, %v4141
        %v4143 = vrot.slane %v3810, %v4142
        %v4144 = vlaneseq
        %v4145 = vshrl.u32 %v4144, 7
        %v4146 = vsub.s32 0, %v4145
        %v4147 = vrot.slane %v3811, %v4146
        %v4148 = vlaneseq
        %v4149 = vshrl.u32 %v4148, 7
        %v4150 = vsub.s32 0, %v4149
        %v4151 = vrot.slane %v3812, %v4150
        %v4152 = vlaneseq
        %v4153 = vshrl.u32 %v4152, 7
        %v4154 = vsub.s32 0, %v4153
        %v4155 = vrot.slane %v3813, %v4154
        %vm4156 = vcmask 1041409
        %v4157 = vsel %vm4156, %v3907, %v3903
        %vm4158 = vcmask 1042434
        %v4159 = vsel %vm4158, %v3911, %v4157
        %vm4160 = vcmask 1043459
        %v4161 = vsel %vm4160, %v3915, %v4159
        %vm4162 = vcmask 1044484
        %v4163 = vsel %vm4162, %v3919, %v4161
        %vm4164 = vcmask 1045509
        %v4165 = vsel %vm4164, %v3923, %v4163
        %vm4166 = vcmask 1046534
        %v4167 = vsel %vm4166, %v3927, %v4165
        %vm4168 = vcmask 1047559
        %v4169 = vsel %vm4168, %v3931, %v4167
        %v4170 = vsel %vm4156, %v3939, %v3935
        %v4171 = vsel %vm4158, %v3943, %v4170
        %v4172 = vsel %vm4160, %v3947, %v4171
        %v4173 = vsel %vm4162, %v3951, %v4172
        %v4174 = vsel %vm4164, %v3955, %v4173
        %v4175 = vsel %vm4166, %v3959, %v4174
        %v4176 = vsel %vm4168, %v3963, %v4175
        %v4177 = vsel %vm4156, %v3971, %v3967
        %v4178 = vsel %vm4158, %v3975, %v4177
        %v4179 = vsel %vm4160, %v3979, %v4178
        %v4180 = vsel %vm4162, %v3983, %v4179
        %v4181 = vsel %vm4164, %v3987, %v4180
        %v4182 = vsel %vm4166, %v3991, %v4181
        %v4183 = vsel %vm4168, %v3995, %v4182
        %v4184 = vsel %vm4156, %v4003, %v3999
        %v4185 = vsel %vm4158, %v4007, %v4184
        %v4186 = vsel %vm4160, %v4011, %v4185
        %v4187 = vsel %vm4162, %v4015, %v4186
        %v4188 = vsel %vm4164, %v4019, %v4187
        %v4189 = vsel %vm4166, %v4023, %v4188
        %v4190 = vsel %vm4168, %v4027, %v4189
        %v4191 = vsel %vm4156, %v4035, %v4031
        %v4192 = vsel %vm4158, %v4039, %v4191
        %v4193 = vsel %vm4160, %v4043, %v4192
        %v4194 = vsel %vm4162, %v4047, %v4193
        %v4195 = vsel %vm4164, %v4051, %v4194
        %v4196 = vsel %vm4166, %v4055, %v4195
        %v4197 = vsel %vm4168, %v4059, %v4196
        %v4198 = vsel %vm4156, %v4067, %v4063
        %v4199 = vsel %vm4158, %v4071, %v4198
        %v4200 = vsel %vm4160, %v4075, %v4199
        %v4201 = vsel %vm4162, %v4079, %v4200
        %v4202 = vsel %vm4164, %v4083, %v4201
        %v4203 = vsel %vm4166, %v4087, %v4202
        %v4204 = vsel %vm4168, %v4091, %v4203
        %v4205 = vsel %vm4156, %v4099, %v4095
        %v4206 = vsel %vm4158, %v4103, %v4205
        %v4207 = vsel %vm4160, %v4107, %v4206
        %v4208 = vsel %vm4162, %v4111, %v4207
        %v4209 = vsel %vm4164, %v4115, %v4208
        %v4210 = vsel %vm4166, %v4119, %v4209
        %v4211 = vsel %vm4168, %v4123, %v4210
        %v4212 = vsel %vm4156, %v4131, %v4127
        %v4213 = vsel %vm4158, %v4135, %v4212
        %v4214 = vsel %vm4160, %v4139, %v4213
        %v4215 = vsel %vm4162, %v4143, %v4214
        %v4216 = vsel %vm4164, %v4147, %v4215
        %v4217 = vsel %vm4166, %v4151, %v4216
        %v4218 = vsel %vm4168, %v4155, %v4217
        %vm4219 = vcmask 588800
        %v4220 = vsel %vm4219, %v4169, 0
        %v4222 = vsel %vm4219, %v4176, 0
        %v4224 = vsel %vm4219, %v4183, 0
        %v4226 = vsel %vm4219, %v4190, 0
        %v4228 = vsel %vm4219, %v4197, 0
        %v4230 = vsel %vm4219, %v4204, 0
        %v4232 = vsel %vm4219, %v4211, 0
        %v4234 = vsel %vm4219, %v4218, 0
        %4236 = vmatprep.subr.mxu0 0.0
        %4237 = vmatpush1.msra.mxu0 %v3827
        %4238 = vmatprep.subr.mxu0 0.0
        %4239 = vmatpush1.msra.mxu0 %v3828
        %4240 = vmatprep.subr.mxu0 0.0
        %4241 = vmatpush1.msra.mxu0 %v3829
        %4242 = vmatprep.subr.mxu0 0.0
        %4243 = vmatpush1.msra.mxu0 %v3830
        %4244 = vmatprep.subr.mxu0 0.0
        %4245 = vmatpush1.msra.mxu0 %v3831
        %4246 = vmatprep.subr.mxu0 0.0
        %4247 = vmatpush1.msra.mxu0 %v3832
        %4248 = vmatprep.subr.mxu0 0.0
        %4249 = vmatpush1.msra.mxu0 %v3833
        %4250 = vmatprep.subr.mxu0 0.0
        %4251 = vmatpush1.msra.mxu0 %v3834
        %4252 = vmatprep.subr.mxu0 0.0
        %4253 = vmatpush1.msra.mxu0 %v3835
        %4254 = vmatprep.subr.mxu0 0.0
        %4255 = vmatpush1.msra.mxu0 0.0
        %4256 = vmatprep.subr.mxu0 0.0
        %4257 = vmatpush1.msra.mxu0 0.0
        %4258 = vmatprep.subr.mxu0 0.0
        %4259 = vmatpush1.msra.mxu0 0.0
        %4260 = vmatprep.subr.mxu0 0.0
        %4261 = vmatpush1.msra.mxu0 0.0
        %4262 = vmatprep.subr.mxu0 0.0
        %4263 = vmatpush1.msra.mxu0 0.0
        %4264 = vmatprep.subr.mxu0 0.0
        %4265 = vmatpush1.msra.mxu0 0.0
        %4266 = vmatprep.subr.mxu0 0.0
        %4267 = vmatpush1.msra.mxu0 0.0
        %4268 = vmatprep.subr.mxu0 0.0
        %4269 = vmatpush1.msra.mxu0 0.0
        %4270 = vmatprep.subr.mxu0 0.0
        %4271 = vmatpush1.msra.mxu0 0.0
        %4272 = vmatprep.subr.mxu0 0.0
        %4273 = vmatpush1.msra.mxu0 0.0
        %4274 = vmatprep.subr.mxu0 0.0
        %4275 = vmatpush1.msra.mxu0 0.0
        %4276 = vmatprep.subr.mxu0 0.0
        %4277 = vmatpush1.msra.mxu0 0.0
        %4278 = vmatprep.subr.mxu0 0.0
        %4279 = vmatpush1.msra.mxu0 0.0
        %4280 = vmatprep.subr.mxu0 0.0
        %4281 = vmatpush1.msra.mxu0 0.0
        %4282 = vmatprep.subr.mxu0 0.0
        %4283 = vmatpush1.msra.mxu0 0.0
        %4284 = vmatprep.subr.mxu0 0.0
        %4285 = vmatpush1.msra.mxu0 0.0
        %4286 = vmatprep.subr.mxu0 0.0
        %4287 = vmatpush1.msra.mxu0 0.0
        %4288 = vmatprep.subr.mxu0 0.0
        %4289 = vmatpush1.msra.mxu0 0.0
        %4290 = vmatprep.subr.mxu0 0.0
        %4291 = vmatpush1.msra.mxu0 0.0
        %4292 = vmatprep.subr.mxu0 0.0
        %4293 = vmatpush1.msra.mxu0 0.0
        %4294 = vmatprep.subr.mxu0 0.0
        %4295 = vmatpush1.msra.mxu0 0.0
        %4296 = vmatprep.subr.mxu0 0.0
        %4297 = vmatpush1.msra.mxu0 0.0
        %4298 = vmatprep.subr.mxu0 0.0
        %4299 = vmatpush1.msra.mxu0 0.0
        %4300 = vmatprep.mubr.f32.mxu0 0.0
        %4301 = vmatmul.mubr.f32.gmra.mrb[0].mxu0 %v4220
        %v4302 = vpop.f32.mrb[0].mxu0
        %v4303 = vadd.f32 0.0, %v4302
        %v4304 = vpop.f32.mrb[0].mxu0
        %4305 = vmatprep.mubr.f32.mxu0 0.0
        %4306 = vmatmul.mubr.f32.gmra.mrb[0].mxu0 %v4222
        %v4307 = vpop.f32.mrb[0].mxu0
        %v4308 = vadd.f32 0.0, %v4307
        %v4309 = vpop.f32.mrb[0].mxu0
        %4310 = vmatprep.mubr.f32.mxu0 0.0
        %4311 = vmatmul.mubr.f32.gmra.mrb[0].mxu0 %v4224
        %v4312 = vpop.f32.mrb[0].mxu0
        %v4313 = vadd.f32 0.0, %v4312
        %v4314 = vpop.f32.mrb[0].mxu0
        %4315 = vmatprep.mubr.f32.mxu0 0.0
        %4316 = vmatmul.mubr.f32.gmra.mrb[0].mxu0 %v4226
        %v4317 = vpop.f32.mrb[0].mxu0
        %v4318 = vadd.f32 0.0, %v4317
        %v4319 = vpop.f32.mrb[0].mxu0
        %4320 = vmatprep.mubr.f32.mxu0 0.0
        %4321 = vmatmul.mubr.f32.gmra.mrb[0].mxu0 %v4228
        %v4322 = vpop.f32.mrb[0].mxu0
        %v4323 = vadd.f32 0.0, %v4322
        %v4324 = vpop.f32.mrb[0].mxu0
        %4325 = vmatprep.mubr.f32.mxu0 0.0
        %4326 = vmatmul.mubr.f32.gmra.mrb[0].mxu0 %v4230
        %v4327 = vpop.f32.mrb[0].mxu0
        %v4328 = vadd.f32 0.0, %v4327
        %v4329 = vpop.f32.mrb[0].mxu0
        %4330 = vmatprep.mubr.f32.mxu0 0.0
        %4331 = vmatmul.mubr.f32.gmra.mrb[0].mxu0 %v4232
        %v4332 = vpop.f32.mrb[0].mxu0
        %v4333 = vadd.f32 0.0, %v4332
        %v4334 = vpop.f32.mrb[0].mxu0
        %4335 = vmatprep.mubr.f32.mxu0 0.0
        %4336 = vmatmul.mubr.f32.gmra.mrb[0].mxu0 %v4234
        %v4337 = vpop.f32.mrb[0].mxu0
        %v4338 = vadd.f32 0.0, %v4337
        %v4339 = vpop.f32.mrb[0].mxu0
        %4340 = vdwg.mxu0
        %v4349 = vlaneseq
        %v4350 = vshrl.u32 %v4349, 7
        %v4351 = vsub.s32 0, %v4350
        %v4352 = vrot.slane %v3721, %v4351
        %v4353 = vlaneseq
        %v4354 = vshrl.u32 %v4353, 7
        %v4355 = vsub.s32 0, %v4354
        %v4356 = vrot.slane %v3733, %v4355
        %v4357 = vlaneseq
        %v4358 = vshrl.u32 %v4357, 7
        %v4359 = vsub.s32 0, %v4358
        %v4360 = vrot.slane %v3745, %v4359
        %v4361 = vlaneseq
        %v4362 = vshrl.u32 %v4361, 7
        %v4363 = vsub.s32 0, %v4362
        %v4364 = vrot.slane %v3757, %v4363
        %v4365 = vlaneseq
        %v4366 = vshrl.u32 %v4365, 7
        %v4367 = vsub.s32 0, %v4366
        %v4368 = vrot.slane %v3769, %v4367
        %v4369 = vlaneseq
        %v4370 = vshrl.u32 %v4369, 7
        %v4371 = vsub.s32 0, %v4370
        %v4372 = vrot.slane %v3781, %v4371
        %v4373 = vlaneseq
        %v4374 = vshrl.u32 %v4373, 7
        %v4375 = vsub.s32 0, %v4374
        %v4376 = vrot.slane %v3793, %v4375
        %v4377 = vlaneseq
        %v4378 = vshrl.u32 %v4377, 7
        %v4379 = vsub.s32 0, %v4378
        %v4380 = vrot.slane %v3805, %v4379
        %v4381 = vsel %vm4156, %v3903, %v4352
        %v4382 = vsel %vm4158, %v3907, %v4381
        %v4383 = vsel %vm4160, %v3911, %v4382
        %v4384 = vsel %vm4162, %v3915, %v4383
        %v4385 = vsel %vm4164, %v3919, %v4384
        %v4386 = vsel %vm4166, %v3923, %v4385
        %v4387 = vsel %vm4168, %v3927, %v4386
        %v4388 = vsel %vm4156, %v3935, %v4356
        %v4389 = vsel %vm4158, %v3939, %v4388
        %v4390 = vsel %vm4160, %v3943, %v4389
        %v4391 = vsel %vm4162, %v3947, %v4390
        %v4392 = vsel %vm4164, %v3951, %v4391
        %v4393 = vsel %vm4166, %v3955, %v4392
        %v4394 = vsel %vm4168, %v3959, %v4393
        %v4395 = vsel %vm4156, %v3967, %v4360
        %v4396 = vsel %vm4158, %v3971, %v4395
        %v4397 = vsel %vm4160, %v3975, %v4396
        %v4398 = vsel %vm4162, %v3979, %v4397
        %v4399 = vsel %vm4164, %v3983, %v4398
        %v4400 = vsel %vm4166, %v3987, %v4399
        %v4401 = vsel %vm4168, %v3991, %v4400
        %v4402 = vsel %vm4156, %v3999, %v4364
        %v4403 = vsel %vm4158, %v4003, %v4402
        %v4404 = vsel %vm4160, %v4007, %v4403
        %v4405 = vsel %vm4162, %v4011, %v4404
        %v4406 = vsel %vm4164, %v4015, %v4405
        %v4407 = vsel %vm4166, %v4019, %v4406
        %v4408 = vsel %vm4168, %v4023, %v4407
        %v4409 = vsel %vm4156, %v4031, %v4368
        %v4410 = vsel %vm4158, %v4035, %v4409
        %v4411 = vsel %vm4160, %v4039, %v4410
        %v4412 = vsel %vm4162, %v4043, %v4411
        %v4413 = vsel %vm4164, %v4047, %v4412
        %v4414 = vsel %vm4166, %v4051, %v4413
        %v4415 = vsel %vm4168, %v4055, %v4414
        %v4416 = vsel %vm4156, %v4063, %v4372
        %v4417 = vsel %vm4158, %v4067, %v4416
        %v4418 = vsel %vm4160, %v4071, %v4417
        %v4419 = vsel %vm4162, %v4075, %v4418
        %v4420 = vsel %vm4164, %v4079, %v4419
        %v4421 = vsel %vm4166, %v4083, %v4420
        %v4422 = vsel %vm4168, %v4087, %v4421
        %v4423 = vsel %vm4156, %v4095, %v4376
        %v4424 = vsel %vm4158, %v4099, %v4423
        %v4425 = vsel %vm4160, %v4103, %v4424
        %v4426 = vsel %vm4162, %v4107, %v4425
        %v4427 = vsel %vm4164, %v4111, %v4426
        %v4428 = vsel %vm4166, %v4115, %v4427
        %v4429 = vsel %vm4168, %v4119, %v4428
        %v4430 = vsel %vm4156, %v4127, %v4380
        %v4431 = vsel %vm4158, %v4131, %v4430
        %v4432 = vsel %vm4160, %v4135, %v4431
        %v4433 = vsel %vm4162, %v4139, %v4432
        %v4434 = vsel %vm4164, %v4143, %v4433
        %v4435 = vsel %vm4166, %v4147, %v4434
        %v4436 = vsel %vm4168, %v4151, %v4435
        %v4437 = vsel %vm4219, %v4387, 0
        %v4439 = vsel %vm4219, %v4394, 0
        %v4441 = vsel %vm4219, %v4401, 0
        %v4443 = vsel %vm4219, %v4408, 0
        %v4445 = vsel %vm4219, %v4415, 0
        %v4447 = vsel %vm4219, %v4422, 0
        %v4449 = vsel %vm4219, %v4429, 0
        %v4451 = vsel %vm4219, %v4436, 0
        %4453 = vmatprep.subr.mxu0 0.0
        %4454 = vmatpush1.msra.mxu0 %v3817
        %4455 = vmatprep.subr.mxu0 0.0
        %4456 = vmatpush1.msra.mxu0 %v3818
        %4457 = vmatprep.subr.mxu0 0.0
        %4458 = vmatpush1.msra.mxu0 %v3819
        %4459 = vmatprep.subr.mxu0 0.0
        %4460 = vmatpush1.msra.mxu0 %v3820
        %4461 = vmatprep.subr.mxu0 0.0
        %4462 = vmatpush1.msra.mxu0 %v3821
        %4463 = vmatprep.subr.mxu0 0.0
        %4464 = vmatpush1.msra.mxu0 %v3822
        %4465 = vmatprep.subr.mxu0 0.0
        %4466 = vmatpush1.msra.mxu0 %v3823
        %4467 = vmatprep.subr.mxu0 0.0
        %4468 = vmatpush1.msra.mxu0 %v3824
        %4469 = vmatprep.subr.mxu0 0.0
        %4470 = vmatpush1.msra.mxu0 %v3825
        %4471 = vmatprep.subr.mxu0 0.0
        %4472 = vmatpush1.msra.mxu0 0.0
        %4473 = vmatprep.subr.mxu0 0.0
        %4474 = vmatpush1.msra.mxu0 0.0
        %4475 = vmatprep.subr.mxu0 0.0
        %4476 = vmatpush1.msra.mxu0 0.0
        %4477 = vmatprep.subr.mxu0 0.0
        %4478 = vmatpush1.msra.mxu0 0.0
        %4479 = vmatprep.subr.mxu0 0.0
        %4480 = vmatpush1.msra.mxu0 0.0
        %4481 = vmatprep.subr.mxu0 0.0
        %4482 = vmatpush1.msra.mxu0 0.0
        %4483 = vmatprep.subr.mxu0 0.0
        %4484 = vmatpush1.msra.mxu0 0.0
        %4485 = vmatprep.subr.mxu0 0.0
        %4486 = vmatpush1.msra.mxu0 0.0
        %4487 = vmatprep.subr.mxu0 0.0
        %4488 = vmatpush1.msra.mxu0 0.0
        %4489 = vmatprep.subr.mxu0 0.0
        %4490 = vmatpush1.msra.mxu0 0.0
        %4491 = vmatprep.subr.mxu0 0.0
        %4492 = vmatpush1.msra.mxu0 0.0
        %4493 = vmatprep.subr.mxu0 0.0
        %4494 = vmatpush1.msra.mxu0 0.0
        %4495 = vmatprep.subr.mxu0 0.0
        %4496 = vmatpush1.msra.mxu0 0.0
        %4497 = vmatprep.subr.mxu0 0.0
        %4498 = vmatpush1.msra.mxu0 0.0
        %4499 = vmatprep.subr.mxu0 0.0
        %4500 = vmatpush1.msra.mxu0 0.0
        %4501 = vmatprep.subr.mxu0 0.0
        %4502 = vmatpush1.msra.mxu0 0.0
        %4503 = vmatprep.subr.mxu0 0.0
        %4504 = vmatpush1.msra.mxu0 0.0
        %4505 = vmatprep.subr.mxu0 0.0
        %4506 = vmatpush1.msra.mxu0 0.0
        %4507 = vmatprep.subr.mxu0 0.0
        %4508 = vmatpush1.msra.mxu0 0.0
        %4509 = vmatprep.subr.mxu0 0.0
        %4510 = vmatpush1.msra.mxu0 0.0
        %4511 = vmatprep.subr.mxu0 0.0
        %4512 = vmatpush1.msra.mxu0 0.0
        %4513 = vmatprep.subr.mxu0 0.0
        %4514 = vmatpush1.msra.mxu0 0.0
        %4515 = vmatprep.subr.mxu0 0.0
        %4516 = vmatpush1.msra.mxu0 0.0
        %4517 = vmatprep.mubr.f32.mxu0 0.0
        %4518 = vmatmul.mubr.f32.gmra.mrb[0].mxu0 %v4437
        %v4519 = vpop.f32.mrb[0].mxu0
        %v4520 = vadd.f32 %v4303, %v4519
        %v4521 = vpop.f32.mrb[0].mxu0
        %4522 = vmatprep.mubr.f32.mxu0 0.0
        %4523 = vmatmul.mubr.f32.gmra.mrb[0].mxu0 %v4439
        %v4524 = vpop.f32.mrb[0].mxu0
        %v4525 = vadd.f32 %v4308, %v4524
        %v4526 = vpop.f32.mrb[0].mxu0
        %4527 = vmatprep.mubr.f32.mxu0 0.0
        %4528 = vmatmul.mubr.f32.gmra.mrb[0].mxu0 %v4441
        %v4529 = vpop.f32.mrb[0].mxu0
        %v4530 = vadd.f32 %v4313, %v4529
        %v4531 = vpop.f32.mrb[0].mxu0
        %4532 = vmatprep.mubr.f32.mxu0 0.0
        %4533 = vmatmul.mubr.f32.gmra.mrb[0].mxu0 %v4443
        %v4534 = vpop.f32.mrb[0].mxu0
        %v4535 = vadd.f32 %v4318, %v4534
        %v4536 = vpop.f32.mrb[0].mxu0
        %4537 = vmatprep.mubr.f32.mxu0 0.0
        %4538 = vmatmul.mubr.f32.gmra.mrb[0].mxu0 %v4445
        %v4539 = vpop.f32.mrb[0].mxu0
        %v4540 = vadd.f32 %v4323, %v4539
        %v4541 = vpop.f32.mrb[0].mxu0
        %4542 = vmatprep.mubr.f32.mxu0 0.0
        %4543 = vmatmul.mubr.f32.gmra.mrb[0].mxu0 %v4447
        %v4544 = vpop.f32.mrb[0].mxu0
        %v4545 = vadd.f32 %v4328, %v4544
        %v4546 = vpop.f32.mrb[0].mxu0
        %4547 = vmatprep.mubr.f32.mxu0 0.0
        %4548 = vmatmul.mubr.f32.gmra.mrb[0].mxu0 %v4449
        %v4549 = vpop.f32.mrb[0].mxu0
        %v4550 = vadd.f32 %v4333, %v4549
        %v4551 = vpop.f32.mrb[0].mxu0
        %4552 = vmatprep.mubr.f32.mxu0 0.0
        %4553 = vmatmul.mubr.f32.gmra.mrb[0].mxu0 %v4451
        %v4554 = vpop.f32.mrb[0].mxu0
        %v4555 = vadd.f32 %v4338, %v4554
        %v4556 = vpop.f32.mrb[0].mxu0
        %4557 = vdwg.mxu0
        %s4558 = scalar_lea.vmem %s5, 144
        %v4559 = vld [vmem:[%s4558] sm:$0xff]
        %v4560 = vld [vmem:[%s4558 + $0x8] sm:$0xff]
        %v4561 = vld [vmem:[%s4558 + $0x10] sm:$0xff]
        %v4562 = vld [vmem:[%s4558 + $0x18] sm:$0xff]
        %v4563 = vld [vmem:[%s4558 + $0x20] sm:$0xff]
        %v4564 = vld [vmem:[%s4558 + $0x28] sm:$0xff]
        %v4565 = vld [vmem:[%s4558 + $0x30] sm:$0xff]
        %v4566 = vld [vmem:[%s4558 + $0x38] sm:$0xff]
        %v4567 = vld [vmem:[%s4558 + $0x40] sm:$0xff]
        %v4576 = vlaneseq
        %v4577 = vshrl.u32 %v4576, 7
        %v4578 = vsub.s32 0, %v4577
        %v4579 = vrot.slane %v3730, %v4578
        %v4580 = vlaneseq
        %v4581 = vshrl.u32 %v4580, 7
        %v4582 = vsub.s32 0, %v4581
        %v4583 = vrot.slane %v3742, %v4582
        %v4584 = vlaneseq
        %v4585 = vshrl.u32 %v4584, 7
        %v4586 = vsub.s32 0, %v4585
        %v4587 = vrot.slane %v3754, %v4586
        %v4588 = vlaneseq
        %v4589 = vshrl.u32 %v4588, 7
        %v4590 = vsub.s32 0, %v4589
        %v4591 = vrot.slane %v3766, %v4590
        %v4592 = vlaneseq
        %v4593 = vshrl.u32 %v4592, 7
        %v4594 = vsub.s32 0, %v4593
        %v4595 = vrot.slane %v3778, %v4594
        %v4596 = vlaneseq
        %v4597 = vshrl.u32 %v4596, 7
        %v4598 = vsub.s32 0, %v4597
        %v4599 = vrot.slane %v3790, %v4598
        %v4600 = vlaneseq
        %v4601 = vshrl.u32 %v4600, 7
        %v4602 = vsub.s32 0, %v4601
        %v4603 = vrot.slane %v3802, %v4602
        %v4604 = vlaneseq
        %v4605 = vshrl.u32 %v4604, 7
        %v4606 = vsub.s32 0, %v4605
        %v4607 = vrot.slane %v3814, %v4606
        %v4608 = vsel %vm4156, %v3911, %v3907
        %v4609 = vsel %vm4158, %v3915, %v4608
        %v4610 = vsel %vm4160, %v3919, %v4609
        %v4611 = vsel %vm4162, %v3923, %v4610
        %v4612 = vsel %vm4164, %v3927, %v4611
        %v4613 = vsel %vm4166, %v3931, %v4612
        %v4614 = vsel %vm4168, %v4579, %v4613
        %v4615 = vsel %vm4156, %v3943, %v3939
        %v4616 = vsel %vm4158, %v3947, %v4615
        %v4617 = vsel %vm4160, %v3951, %v4616
        %v4618 = vsel %vm4162, %v3955, %v4617
        %v4619 = vsel %vm4164, %v3959, %v4618
        %v4620 = vsel %vm4166, %v3963, %v4619
        %v4621 = vsel %vm4168, %v4583, %v4620
        %v4622 = vsel %vm4156, %v3975, %v3971
        %v4623 = vsel %vm4158, %v3979, %v4622
        %v4624 = vsel %vm4160, %v3983, %v4623
        %v4625 = vsel %vm4162, %v3987, %v4624
        %v4626 = vsel %vm4164, %v3991, %v4625
        %v4627 = vsel %vm4166, %v3995, %v4626
        %v4628 = vsel %vm4168, %v4587, %v4627
        %v4629 = vsel %vm4156, %v4007, %v4003
        %v4630 = vsel %vm4158, %v4011, %v4629
        %v4631 = vsel %vm4160, %v4015, %v4630
        %v4632 = vsel %vm4162, %v4019, %v4631
        %v4633 = vsel %vm4164, %v4023, %v4632
        %v4634 = vsel %vm4166, %v4027, %v4633
        %v4635 = vsel %vm4168, %v4591, %v4634
        %v4636 = vsel %vm4156, %v4039, %v4035
        %v4637 = vsel %vm4158, %v4043, %v4636
        %v4638 = vsel %vm4160, %v4047, %v4637
        %v4639 = vsel %vm4162, %v4051, %v4638
        %v4640 = vsel %vm4164, %v4055, %v4639
        %v4641 = vsel %vm4166, %v4059, %v4640
        %v4642 = vsel %vm4168, %v4595, %v4641
        %v4643 = vsel %vm4156, %v4071, %v4067
        %v4644 = vsel %vm4158, %v4075, %v4643
        %v4645 = vsel %vm4160, %v4079, %v4644
        %v4646 = vsel %vm4162, %v4083, %v4645
        %v4647 = vsel %vm4164, %v4087, %v4646
        %v4648 = vsel %vm4166, %v4091, %v4647
        %v4649 = vsel %vm4168, %v4599, %v4648
        %v4650 = vsel %vm4156, %v4103, %v4099
        %v4651 = vsel %vm4158, %v4107, %v4650
        %v4652 = vsel %vm4160, %v4111, %v4651
        %v4653 = vsel %vm4162, %v4115, %v4652
        %v4654 = vsel %vm4164, %v4119, %v4653
        %v4655 = vsel %vm4166, %v4123, %v4654
        %v4656 = vsel %vm4168, %v4603, %v4655
        %v4657 = vsel %vm4156, %v4135, %v4131
        %v4658 = vsel %vm4158, %v4139, %v4657
        %v4659 = vsel %vm4160, %v4143, %v4658
        %v4660 = vsel %vm4162, %v4147, %v4659
        %v4661 = vsel %vm4164, %v4151, %v4660
        %v4662 = vsel %vm4166, %v4155, %v4661
        %v4663 = vsel %vm4168, %v4607, %v4662
        %v4664 = vsel %vm4219, %v4614, 0
        %v4666 = vsel %vm4219, %v4621, 0
        %v4668 = vsel %vm4219, %v4628, 0
        %v4670 = vsel %vm4219, %v4635, 0
        %v4672 = vsel %vm4219, %v4642, 0
        %v4674 = vsel %vm4219, %v4649, 0
        %v4676 = vsel %vm4219, %v4656, 0
        %v4678 = vsel %vm4219, %v4663, 0
        %4680 = vmatprep.subr.mxu0 0.0
        %4681 = vmatpush1.msra.mxu0 %v4559
        %4682 = vmatprep.subr.mxu0 0.0
        %4683 = vmatpush1.msra.mxu0 %v4560
        %4684 = vmatprep.subr.mxu0 0.0
        %4685 = vmatpush1.msra.mxu0 %v4561
        %4686 = vmatprep.subr.mxu0 0.0
        %4687 = vmatpush1.msra.mxu0 %v4562
        %4688 = vmatprep.subr.mxu0 0.0
        %4689 = vmatpush1.msra.mxu0 %v4563
        %4690 = vmatprep.subr.mxu0 0.0
        %4691 = vmatpush1.msra.mxu0 %v4564
        %4692 = vmatprep.subr.mxu0 0.0
        %4693 = vmatpush1.msra.mxu0 %v4565
        %4694 = vmatprep.subr.mxu0 0.0
        %4695 = vmatpush1.msra.mxu0 %v4566
        %4696 = vmatprep.subr.mxu0 0.0
        %4697 = vmatpush1.msra.mxu0 %v4567
        %4698 = vmatprep.subr.mxu0 0.0
        %4699 = vmatpush1.msra.mxu0 0.0
        %4700 = vmatprep.subr.mxu0 0.0
        %4701 = vmatpush1.msra.mxu0 0.0
        %4702 = vmatprep.subr.mxu0 0.0
        %4703 = vmatpush1.msra.mxu0 0.0
        %4704 = vmatprep.subr.mxu0 0.0
        %4705 = vmatpush1.msra.mxu0 0.0
        %4706 = vmatprep.subr.mxu0 0.0
        %4707 = vmatpush1.msra.mxu0 0.0
        %4708 = vmatprep.subr.mxu0 0.0
        %4709 = vmatpush1.msra.mxu0 0.0
        %4710 = vmatprep.subr.mxu0 0.0
        %4711 = vmatpush1.msra.mxu0 0.0
        %4712 = vmatprep.subr.mxu0 0.0
        %4713 = vmatpush1.msra.mxu0 0.0
        %4714 = vmatprep.subr.mxu0 0.0
        %4715 = vmatpush1.msra.mxu0 0.0
        %4716 = vmatprep.subr.mxu0 0.0
        %4717 = vmatpush1.msra.mxu0 0.0
        %4718 = vmatprep.subr.mxu0 0.0
        %4719 = vmatpush1.msra.mxu0 0.0
        %4720 = vmatprep.subr.mxu0 0.0
        %4721 = vmatpush1.msra.mxu0 0.0
        %4722 = vmatprep.subr.mxu0 0.0
        %4723 = vmatpush1.msra.mxu0 0.0
        %4724 = vmatprep.subr.mxu0 0.0
        %4725 = vmatpush1.msra.mxu0 0.0
        %4726 = vmatprep.subr.mxu0 0.0
        %4727 = vmatpush1.msra.mxu0 0.0
        %4728 = vmatprep.subr.mxu0 0.0
        %4729 = vmatpush1.msra.mxu0 0.0
        %4730 = vmatprep.subr.mxu0 0.0
        %4731 = vmatpush1.msra.mxu0 0.0
        %4732 = vmatprep.subr.mxu0 0.0
        %4733 = vmatpush1.msra.mxu0 0.0
        %4734 = vmatprep.subr.mxu0 0.0
        %4735 = vmatpush1.msra.mxu0 0.0
        %4736 = vmatprep.subr.mxu0 0.0
        %4737 = vmatpush1.msra.mxu0 0.0
        %4738 = vmatprep.subr.mxu0 0.0
        %4739 = vmatpush1.msra.mxu0 0.0
        %4740 = vmatprep.subr.mxu0 0.0
        %4741 = vmatpush1.msra.mxu0 0.0
        %4742 = vmatprep.subr.mxu0 0.0
        %4743 = vmatpush1.msra.mxu0 0.0
        %4744 = vmatprep.mubr.f32.mxu0 0.0
        %4745 = vmatmul.mubr.f32.gmra.mrb[0].mxu0 %v4664
        %v4746 = vpop.f32.mrb[0].mxu0
        %v4747 = vadd.f32 0.0, %v4746
        %v4748 = vpop.f32.mrb[0].mxu0
        %4749 = vmatprep.mubr.f32.mxu0 0.0
        %4750 = vmatmul.mubr.f32.gmra.mrb[0].mxu0 %v4666
        %v4751 = vpop.f32.mrb[0].mxu0
        %v4752 = vadd.f32 0.0, %v4751
        %v4753 = vpop.f32.mrb[0].mxu0
        %4754 = vmatprep.mubr.f32.mxu0 0.0
        %4755 = vmatmul.mubr.f32.gmra.mrb[0].mxu0 %v4668
        %v4756 = vpop.f32.mrb[0].mxu0
        %v4757 = vadd.f32 0.0, %v4756
        %v4758 = vpop.f32.mrb[0].mxu0
        %4759 = vmatprep.mubr.f32.mxu0 0.0
        %4760 = vmatmul.mubr.f32.gmra.mrb[0].mxu0 %v4670
        %v4761 = vpop.f32.mrb[0].mxu0
        %v4762 = vadd.f32 0.0, %v4761
        %v4763 = vpop.f32.mrb[0].mxu0
        %4764 = vmatprep.mubr.f32.mxu0 0.0
        %4765 = vmatmul.mubr.f32.gmra.mrb[0].mxu0 %v4672
        %v4766 = vpop.f32.mrb[0].mxu0
        %v4767 = vadd.f32 0.0, %v4766
        %v4768 = vpop.f32.mrb[0].mxu0
        %4769 = vmatprep.mubr.f32.mxu0 0.0
        %4770 = vmatmul.mubr.f32.gmra.mrb[0].mxu0 %v4674
        %v4771 = vpop.f32.mrb[0].mxu0
        %v4772 = vadd.f32 0.0, %v4771
        %v4773 = vpop.f32.mrb[0].mxu0
        %4774 = vmatprep.mubr.f32.mxu0 0.0
        %4775 = vmatmul.mubr.f32.gmra.mrb[0].mxu0 %v4676
        %v4776 = vpop.f32.mrb[0].mxu0
        %v4777 = vadd.f32 0.0, %v4776
        %v4778 = vpop.f32.mrb[0].mxu0
        %4779 = vmatprep.mubr.f32.mxu0 0.0
        %4780 = vmatmul.mubr.f32.gmra.mrb[0].mxu0 %v4678
        %v4781 = vpop.f32.mrb[0].mxu0
        %v4782 = vadd.f32 0.0, %v4781
        %v4783 = vpop.f32.mrb[0].mxu0
        %4784 = vdwg.mxu0
        %v4785 = vadd.f32 %v4520, %v4747
        %v4786 = vadd.f32 %v4525, %v4752
        %v4787 = vadd.f32 %v4530, %v4757
        %v4788 = vadd.f32 %v4535, %v4762
        %v4789 = vadd.f32 %v4540, %v4767
        %v4790 = vadd.f32 %v4545, %v4772
        %v4791 = vadd.f32 %v4550, %v4777
        %v4792 = vadd.f32 %v4555, %v4782
        %s4793 = scalar_lea.vmem %s5, 216
        %v4794 = vld [vmem:[%s4793] sm:$0xff]
        %v4795 = vld [vmem:[%s4793 + $0x8] sm:$0xff]
        %v4796 = vld [vmem:[%s4793 + $0x10] sm:$0xff]
        %v4797 = vld [vmem:[%s4793 + $0x18] sm:$0xff]
        %v4798 = vld [vmem:[%s4793 + $0x20] sm:$0xff]
        %v4799 = vld [vmem:[%s4793 + $0x28] sm:$0xff]
        %v4800 = vld [vmem:[%s4793 + $0x30] sm:$0xff]
        %v4801 = vld [vmem:[%s4793 + $0x38] sm:$0xff]
        %v4802 = vld [vmem:[%s4793 + $0x40] sm:$0xff]
        %v4811 = vlaneseq
        %v4812 = vshrl.u32 %v4811, 7
        %v4813 = vsub.s32 0, %v4812
        %v4814 = vrot.slane %v3731, %v4813
        %v4815 = vlaneseq
        %v4816 = vshrl.u32 %v4815, 7
        %v4817 = vsub.s32 0, %v4816
        %v4818 = vrot.slane %v3743, %v4817
        %v4819 = vlaneseq
        %v4820 = vshrl.u32 %v4819, 7
        %v4821 = vsub.s32 0, %v4820
        %v4822 = vrot.slane %v3755, %v4821
        %v4823 = vlaneseq
        %v4824 = vshrl.u32 %v4823, 7
        %v4825 = vsub.s32 0, %v4824
        %v4826 = vrot.slane %v3767, %v4825
        %v4827 = vlaneseq
        %v4828 = vshrl.u32 %v4827, 7
        %v4829 = vsub.s32 0, %v4828
        %v4830 = vrot.slane %v3779, %v4829
        %v4831 = vlaneseq
        %v4832 = vshrl.u32 %v4831, 7
        %v4833 = vsub.s32 0, %v4832
        %v4834 = vrot.slane %v3791, %v4833
        %v4835 = vlaneseq
        %v4836 = vshrl.u32 %v4835, 7
        %v4837 = vsub.s32 0, %v4836
        %v4838 = vrot.slane %v3803, %v4837
        %v4839 = vlaneseq
        %v4840 = vshrl.u32 %v4839, 7
        %v4841 = vsub.s32 0, %v4840
        %v4842 = vrot.slane %v3815, %v4841
        %v4843 = vsel %vm4156, %v3915, %v3911
        %v4844 = vsel %vm4158, %v3919, %v4843
        %v4845 = vsel %vm4160, %v3923, %v4844
        %v4846 = vsel %vm4162, %v3927, %v4845
        %v4847 = vsel %vm4164, %v3931, %v4846
        %v4848 = vsel %vm4166, %v4579, %v4847
        %v4849 = vsel %vm4168, %v4814, %v4848
        %v4850 = vsel %vm4156, %v3947, %v3943
        %v4851 = vsel %vm4158, %v3951, %v4850
        %v4852 = vsel %vm4160, %v3955, %v4851
        %v4853 = vsel %vm4162, %v3959, %v4852
        %v4854 = vsel %vm4164, %v3963, %v4853
        %v4855 = vsel %vm4166, %v4583, %v4854
        %v4856 = vsel %vm4168, %v4818, %v4855
        %v4857 = vsel %vm4156, %v3979, %v3975
        %v4858 = vsel %vm4158, %v3983, %v4857
        %v4859 = vsel %vm4160, %v3987, %v4858
        %v4860 = vsel %vm4162, %v3991, %v4859
        %v4861 = vsel %vm4164, %v3995, %v4860
        %v4862 = vsel %vm4166, %v4587, %v4861
        %v4863 = vsel %vm4168, %v4822, %v4862
        %v4864 = vsel %vm4156, %v4011, %v4007
        %v4865 = vsel %vm4158, %v4015, %v4864
        %v4866 = vsel %vm4160, %v4019, %v4865
        %v4867 = vsel %vm4162, %v4023, %v4866
        %v4868 = vsel %vm4164, %v4027, %v4867
        %v4869 = vsel %vm4166, %v4591, %v4868
        %v4870 = vsel %vm4168, %v4826, %v4869
        %v4871 = vsel %vm4156, %v4043, %v4039
        %v4872 = vsel %vm4158, %v4047, %v4871
        %v4873 = vsel %vm4160, %v4051, %v4872
        %v4874 = vsel %vm4162, %v4055, %v4873
        %v4875 = vsel %vm4164, %v4059, %v4874
        %v4876 = vsel %vm4166, %v4595, %v4875
        %v4877 = vsel %vm4168, %v4830, %v4876
        %v4878 = vsel %vm4156, %v4075, %v4071
        %v4879 = vsel %vm4158, %v4079, %v4878
        %v4880 = vsel %vm4160, %v4083, %v4879
        %v4881 = vsel %vm4162, %v4087, %v4880
        %v4882 = vsel %vm4164, %v4091, %v4881
        %v4883 = vsel %vm4166, %v4599, %v4882
        %v4884 = vsel %vm4168, %v4834, %v4883
        %v4885 = vsel %vm4156, %v4107, %v4103
        %v4886 = vsel %vm4158, %v4111, %v4885
        %v4887 = vsel %vm4160, %v4115, %v4886
        %v4888 = vsel %vm4162, %v4119, %v4887
        %v4889 = vsel %vm4164, %v4123, %v4888
        %v4890 = vsel %vm4166, %v4603, %v4889
        %v4891 = vsel %vm4168, %v4838, %v4890
        %v4892 = vsel %vm4156, %v4139, %v4135
        %v4893 = vsel %vm4158, %v4143, %v4892
        %v4894 = vsel %vm4160, %v4147, %v4893
        %v4895 = vsel %vm4162, %v4151, %v4894
        %v4896 = vsel %vm4164, %v4155, %v4895
        %v4897 = vsel %vm4166, %v4607, %v4896
        %v4898 = vsel %vm4168, %v4842, %v4897
        %v4899 = vsel %vm4219, %v4849, 0
        %v4901 = vsel %vm4219, %v4856, 0
        %v4903 = vsel %vm4219, %v4863, 0
        %v4905 = vsel %vm4219, %v4870, 0
        %v4907 = vsel %vm4219, %v4877, 0
        %v4909 = vsel %vm4219, %v4884, 0
        %v4911 = vsel %vm4219, %v4891, 0
        %v4913 = vsel %vm4219, %v4898, 0
        %4915 = vmatprep.subr.mxu0 0.0
        %4916 = vmatpush1.msra.mxu0 %v4794
        %4917 = vmatprep.subr.mxu0 0.0
        %4918 = vmatpush1.msra.mxu0 %v4795
        %4919 = vmatprep.subr.mxu0 0.0
        %4920 = vmatpush1.msra.mxu0 %v4796
        %4921 = vmatprep.subr.mxu0 0.0
        %4922 = vmatpush1.msra.mxu0 %v4797
        %4923 = vmatprep.subr.mxu0 0.0
        %4924 = vmatpush1.msra.mxu0 %v4798
        %4925 = vmatprep.subr.mxu0 0.0
        %4926 = vmatpush1.msra.mxu0 %v4799
        %4927 = vmatprep.subr.mxu0 0.0
        %4928 = vmatpush1.msra.mxu0 %v4800
        %4929 = vmatprep.subr.mxu0 0.0
        %4930 = vmatpush1.msra.mxu0 %v4801
        %4931 = vmatprep.subr.mxu0 0.0
        %4932 = vmatpush1.msra.mxu0 %v4802
        %4933 = vmatprep.subr.mxu0 0.0
        %4934 = vmatpush1.msra.mxu0 0.0
        %4935 = vmatprep.subr.mxu0 0.0
        %4936 = vmatpush1.msra.mxu0 0.0
        %4937 = vmatprep.subr.mxu0 0.0
        %4938 = vmatpush1.msra.mxu0 0.0
        %4939 = vmatprep.subr.mxu0 0.0
        %4940 = vmatpush1.msra.mxu0 0.0
        %4941 = vmatprep.subr.mxu0 0.0
        %4942 = vmatpush1.msra.mxu0 0.0
        %4943 = vmatprep.subr.mxu0 0.0
        %4944 = vmatpush1.msra.mxu0 0.0
        %4945 = vmatprep.subr.mxu0 0.0
        %4946 = vmatpush1.msra.mxu0 0.0
        %4947 = vmatprep.subr.mxu0 0.0
        %4948 = vmatpush1.msra.mxu0 0.0
        %4949 = vmatprep.subr.mxu0 0.0
        %4950 = vmatpush1.msra.mxu0 0.0
        %4951 = vmatprep.subr.mxu0 0.0
        %4952 = vmatpush1.msra.mxu0 0.0
        %4953 = vmatprep.subr.mxu0 0.0
        %4954 = vmatpush1.msra.mxu0 0.0
        %4955 = vmatprep.subr.mxu0 0.0
        %4956 = vmatpush1.msra.mxu0 0.0
        %4957 = vmatprep.subr.mxu0 0.0
        %4958 = vmatpush1.msra.mxu0 0.0
        %4959 = vmatprep.subr.mxu0 0.0
        %4960 = vmatpush1.msra.mxu0 0.0
        %4961 = vmatprep.subr.mxu0 0.0
        %4962 = vmatpush1.msra.mxu0 0.0
        %4963 = vmatprep.subr.mxu0 0.0
        %4964 = vmatpush1.msra.mxu0 0.0
        %4965 = vmatprep.subr.mxu0 0.0
        %4966 = vmatpush1.msra.mxu0 0.0
        %4967 = vmatprep.subr.mxu0 0.0
        %4968 = vmatpush1.msra.mxu0 0.0
        %4969 = vmatprep.subr.mxu0 0.0
        %4970 = vmatpush1.msra.mxu0 0.0
        %4971 = vmatprep.subr.mxu0 0.0
        %4972 = vmatpush1.msra.mxu0 0.0
        %4973 = vmatprep.subr.mxu0 0.0
        %4974 = vmatpush1.msra.mxu0 0.0
        %4975 = vmatprep.subr.mxu0 0.0
        %4976 = vmatpush1.msra.mxu0 0.0
        %4977 = vmatprep.subr.mxu0 0.0
        %4978 = vmatpush1.msra.mxu0 0.0
        %4979 = vmatprep.mubr.f32.mxu0 0.0
        %4980 = vmatmul.mubr.f32.gmra.mrb[0].mxu0 %v4899
        %v4981 = vpop.f32.mrb[0].mxu0
        %v4982 = vadd.f32 0.0, %v4981
        %v4983 = vpop.f32.mrb[0].mxu0
        %4984 = vmatprep.mubr.f32.mxu0 0.0
        %4985 = vmatmul.mubr.f32.gmra.mrb[0].mxu0 %v4901
        %v4986 = vpop.f32.mrb[0].mxu0
        %v4987 = vadd.f32 0.0, %v4986
        %v4988 = vpop.f32.mrb[0].mxu0
        %4989 = vmatprep.mubr.f32.mxu0 0.0
        %4990 = vmatmul.mubr.f32.gmra.mrb[0].mxu0 %v4903
        %v4991 = vpop.f32.mrb[0].mxu0
        %v4992 = vadd.f32 0.0, %v4991
        %v4993 = vpop.f32.mrb[0].mxu0
        %4994 = vmatprep.mubr.f32.mxu0 0.0
        %4995 = vmatmul.mubr.f32.gmra.mrb[0].mxu0 %v4905
        %v4996 = vpop.f32.mrb[0].mxu0
        %v4997 = vadd.f32 0.0, %v4996
        %v4998 = vpop.f32.mrb[0].mxu0
        %4999 = vmatprep.mubr.f32.mxu0 0.0
        %5000 = vmatmul.mubr.f32.gmra.mrb[0].mxu0 %v4907
        %v5001 = vpop.f32.mrb[0].mxu0
        %v5002 = vadd.f32 0.0, %v5001
        %v5003 = vpop.f32.mrb[0].mxu0
        %5004 = vmatprep.mubr.f32.mxu0 0.0
        %5005 = vmatmul.mubr.f32.gmra.mrb[0].mxu0 %v4909
        %v5006 = vpop.f32.mrb[0].mxu0
        %v5007 = vadd.f32 0.0, %v5006
        %v5008 = vpop.f32.mrb[0].mxu0
        %5009 = vmatprep.mubr.f32.mxu0 0.0
        %5010 = vmatmul.mubr.f32.gmra.mrb[0].mxu0 %v4911
        %v5011 = vpop.f32.mrb[0].mxu0
        %v5012 = vadd.f32 0.0, %v5011
        %v5013 = vpop.f32.mrb[0].mxu0
        %5014 = vmatprep.mubr.f32.mxu0 0.0
        %5015 = vmatmul.mubr.f32.gmra.mrb[0].mxu0 %v4913
        %v5016 = vpop.f32.mrb[0].mxu0
        %v5017 = vadd.f32 0.0, %v5016
        %v5018 = vpop.f32.mrb[0].mxu0
        %5019 = vdwg.mxu0
        %v5020 = vadd.f32 %v4785, %v4982
        %v5021 = vadd.f32 %v4786, %v4987
        %v5022 = vadd.f32 %v4787, %v4992
        %v5023 = vadd.f32 %v4788, %v4997
        %v5024 = vadd.f32 %v4789, %v5002
        %v5025 = vadd.f32 %v4790, %v5007
        %v5026 = vadd.f32 %v4791, %v5012
        %v5027 = vadd.f32 %v4792, %v5017
        %s5028 = scalar_lea.vmem %s5, 288
        %v5029 = vld [vmem:[%s5028] sm:$0xff]
        %v5030 = vld [vmem:[%s5028 + $0x8] sm:$0xff]
        %v5031 = vld [vmem:[%s5028 + $0x10] sm:$0xff]
        %v5032 = vld [vmem:[%s5028 + $0x18] sm:$0xff]
        %v5033 = vld [vmem:[%s5028 + $0x20] sm:$0xff]
        %v5034 = vld [vmem:[%s5028 + $0x28] sm:$0xff]
        %v5035 = vld [vmem:[%s5028 + $0x30] sm:$0xff]
        %v5036 = vld [vmem:[%s5028 + $0x38] sm:$0xff]
        %v5037 = vld [vmem:[%s5028 + $0x40] sm:$0xff]
        %v5046 = vlaneseq
        %v5047 = vshrl.u32 %v5046, 7
        %v5048 = vsub.s32 0, %v5047
        %v5049 = vrot.slane %v3732, %v5048
        %v5050 = vlaneseq
        %v5051 = vshrl.u32 %v5050, 7
        %v5052 = vsub.s32 0, %v5051
        %v5053 = vrot.slane %v3744, %v5052
        %v5054 = vlaneseq
        %v5055 = vshrl.u32 %v5054, 7
        %v5056 = vsub.s32 0, %v5055
        %v5057 = vrot.slane %v3756, %v5056
        %v5058 = vlaneseq
        %v5059 = vshrl.u32 %v5058, 7
        %v5060 = vsub.s32 0, %v5059
        %v5061 = vrot.slane %v3768, %v5060
        %v5062 = vlaneseq
        %v5063 = vshrl.u32 %v5062, 7
        %v5064 = vsub.s32 0, %v5063
        %v5065 = vrot.slane %v3780, %v5064
        %v5066 = vlaneseq
        %v5067 = vshrl.u32 %v5066, 7
        %v5068 = vsub.s32 0, %v5067
        %v5069 = vrot.slane %v3792, %v5068
        %v5070 = vlaneseq
        %v5071 = vshrl.u32 %v5070, 7
        %v5072 = vsub.s32 0, %v5071
        %v5073 = vrot.slane %v3804, %v5072
        %v5074 = vlaneseq
        %v5075 = vshrl.u32 %v5074, 7
        %v5076 = vsub.s32 0, %v5075
        %v5077 = vrot.slane %v3816, %v5076
        %v5078 = vsel %vm4156, %v3919, %v3915
        %v5079 = vsel %vm4158, %v3923, %v5078
        %v5080 = vsel %vm4160, %v3927, %v5079
        %v5081 = vsel %vm4162, %v3931, %v5080
        %v5082 = vsel %vm4164, %v4579, %v5081
        %v5083 = vsel %vm4166, %v4814, %v5082
        %v5084 = vsel %vm4168, %v5049, %v5083
        %v5085 = vsel %vm4156, %v3951, %v3947
        %v5086 = vsel %vm4158, %v3955, %v5085
        %v5087 = vsel %vm4160, %v3959, %v5086
        %v5088 = vsel %vm4162, %v3963, %v5087
        %v5089 = vsel %vm4164, %v4583, %v5088
        %v5090 = vsel %vm4166, %v4818, %v5089
        %v5091 = vsel %vm4168, %v5053, %v5090
        %v5092 = vsel %vm4156, %v3983, %v3979
        %v5093 = vsel %vm4158, %v3987, %v5092
        %v5094 = vsel %vm4160, %v3991, %v5093
        %v5095 = vsel %vm4162, %v3995, %v5094
        %v5096 = vsel %vm4164, %v4587, %v5095
        %v5097 = vsel %vm4166, %v4822, %v5096
        %v5098 = vsel %vm4168, %v5057, %v5097
        %v5099 = vsel %vm4156, %v4015, %v4011
        %v5100 = vsel %vm4158, %v4019, %v5099
        %v5101 = vsel %vm4160, %v4023, %v5100
        %v5102 = vsel %vm4162, %v4027, %v5101
        %v5103 = vsel %vm4164, %v4591, %v5102
        %v5104 = vsel %vm4166, %v4826, %v5103
        %v5105 = vsel %vm4168, %v5061, %v5104
        %v5106 = vsel %vm4156, %v4047, %v4043
        %v5107 = vsel %vm4158, %v4051, %v5106
        %v5108 = vsel %vm4160, %v4055, %v5107
        %v5109 = vsel %vm4162, %v4059, %v5108
        %v5110 = vsel %vm4164, %v4595, %v5109
        %v5111 = vsel %vm4166, %v4830, %v5110
        %v5112 = vsel %vm4168, %v5065, %v5111
        %v5113 = vsel %vm4156, %v4079, %v4075
        %v5114 = vsel %vm4158, %v4083, %v5113
        %v5115 = vsel %vm4160, %v4087, %v5114
        %v5116 = vsel %vm4162, %v4091, %v5115
        %v5117 = vsel %vm4164, %v4599, %v5116
        %v5118 = vsel %vm4166, %v4834, %v5117
        %v5119 = vsel %vm4168, %v5069, %v5118
        %v5120 = vsel %vm4156, %v4111, %v4107
        %v5121 = vsel %vm4158, %v4115, %v5120
        %v5122 = vsel %vm4160, %v4119, %v5121
        %v5123 = vsel %vm4162, %v4123, %v5122
        %v5124 = vsel %vm4164, %v4603, %v5123
        %v5125 = vsel %vm4166, %v4838, %v5124
        %v5126 = vsel %vm4168, %v5073, %v5125
        %v5127 = vsel %vm4156, %v4143, %v4139
        %v5128 = vsel %vm4158, %v4147, %v5127
        %v5129 = vsel %vm4160, %v4151, %v5128
        %v5130 = vsel %vm4162, %v4155, %v5129
        %v5131 = vsel %vm4164, %v4607, %v5130
        %v5132 = vsel %vm4166, %v4842, %v5131
        %v5133 = vsel %vm4168, %v5077, %v5132
        %v5134 = vsel %vm4219, %v5084, 0
        %v5136 = vsel %vm4219, %v5091, 0
        %v5138 = vsel %vm4219, %v5098, 0
        %v5140 = vsel %vm4219, %v5105, 0
        %v5142 = vsel %vm4219, %v5112, 0
        %v5144 = vsel %vm4219, %v5119, 0
        %v5146 = vsel %vm4219, %v5126, 0
        %v5148 = vsel %vm4219, %v5133, 0
        %5150 = vmatprep.subr.mxu0 0.0
        %5151 = vmatpush1.msra.mxu0 %v5029
        %5152 = vmatprep.subr.mxu0 0.0
        %5153 = vmatpush1.msra.mxu0 %v5030
        %5154 = vmatprep.subr.mxu0 0.0
        %5155 = vmatpush1.msra.mxu0 %v5031
        %5156 = vmatprep.subr.mxu0 0.0
        %5157 = vmatpush1.msra.mxu0 %v5032
        %5158 = vmatprep.subr.mxu0 0.0
        %5159 = vmatpush1.msra.mxu0 %v5033
        %5160 = vmatprep.subr.mxu0 0.0
        %5161 = vmatpush1.msra.mxu0 %v5034
        %5162 = vmatprep.subr.mxu0 0.0
        %5163 = vmatpush1.msra.mxu0 %v5035
        %5164 = vmatprep.subr.mxu0 0.0
        %5165 = vmatpush1.msra.mxu0 %v5036
        %5166 = vmatprep.subr.mxu0 0.0
        %5167 = vmatpush1.msra.mxu0 %v5037
        %5168 = vmatprep.subr.mxu0 0.0
        %5169 = vmatpush1.msra.mxu0 0.0
        %5170 = vmatprep.subr.mxu0 0.0
        %5171 = vmatpush1.msra.mxu0 0.0
        %5172 = vmatprep.subr.mxu0 0.0
        %5173 = vmatpush1.msra.mxu0 0.0
        %5174 = vmatprep.subr.mxu0 0.0
        %5175 = vmatpush1.msra.mxu0 0.0
        %5176 = vmatprep.subr.mxu0 0.0
        %5177 = vmatpush1.msra.mxu0 0.0
        %5178 = vmatprep.subr.mxu0 0.0
        %5179 = vmatpush1.msra.mxu0 0.0
        %5180 = vmatprep.subr.mxu0 0.0
        %5181 = vmatpush1.msra.mxu0 0.0
        %5182 = vmatprep.subr.mxu0 0.0
        %5183 = vmatpush1.msra.mxu0 0.0
        %5184 = vmatprep.subr.mxu0 0.0
        %5185 = vmatpush1.msra.mxu0 0.0
        %5186 = vmatprep.subr.mxu0 0.0
        %5187 = vmatpush1.msra.mxu0 0.0
        %5188 = vmatprep.subr.mxu0 0.0
        %5189 = vmatpush1.msra.mxu0 0.0
        %5190 = vmatprep.subr.mxu0 0.0
        %5191 = vmatpush1.msra.mxu0 0.0
        %5192 = vmatprep.subr.mxu0 0.0
        %5193 = vmatpush1.msra.mxu0 0.0
        %5194 = vmatprep.subr.mxu0 0.0
        %5195 = vmatpush1.msra.mxu0 0.0
        %5196 = vmatprep.subr.mxu0 0.0
        %5197 = vmatpush1.msra.mxu0 0.0
        %5198 = vmatprep.subr.mxu0 0.0
        %5199 = vmatpush1.msra.mxu0 0.0
        %5200 = vmatprep.subr.mxu0 0.0
        %5201 = vmatpush1.msra.mxu0 0.0
        %5202 = vmatprep.subr.mxu0 0.0
        %5203 = vmatpush1.msra.mxu0 0.0
        %5204 = vmatprep.subr.mxu0 0.0
        %5205 = vmatpush1.msra.mxu0 0.0
        %5206 = vmatprep.subr.mxu0 0.0
        %5207 = vmatpush1.msra.mxu0 0.0
        %5208 = vmatprep.subr.mxu0 0.0
        %5209 = vmatpush1.msra.mxu0 0.0
        %5210 = vmatprep.subr.mxu0 0.0
        %5211 = vmatpush1.msra.mxu0 0.0
        %5212 = vmatprep.subr.mxu0 0.0
        %5213 = vmatpush1.msra.mxu0 0.0
        %5214 = vmatprep.mubr.f32.mxu0 0.0
        %5215 = vmatmul.mubr.f32.gmra.mrb[0].mxu0 %v5134
        %v5216 = vpop.f32.mrb[0].mxu0
        %v5217 = vadd.f32 0.0, %v5216
        %v5218 = vpop.f32.mrb[0].mxu0
        %5219 = vmatprep.mubr.f32.mxu0 0.0
        %5220 = vmatmul.mubr.f32.gmra.mrb[0].mxu0 %v5136
        %v5221 = vpop.f32.mrb[0].mxu0
        %v5222 = vadd.f32 0.0, %v5221
        %v5223 = vpop.f32.mrb[0].mxu0
        %5224 = vmatprep.mubr.f32.mxu0 0.0
        %5225 = vmatmul.mubr.f32.gmra.mrb[0].mxu0 %v5138
        %v5226 = vpop.f32.mrb[0].mxu0
        %v5227 = vadd.f32 0.0, %v5226
        %v5228 = vpop.f32.mrb[0].mxu0
        %5229 = vmatprep.mubr.f32.mxu0 0.0
        %5230 = vmatmul.mubr.f32.gmra.mrb[0].mxu0 %v5140
        %v5231 = vpop.f32.mrb[0].mxu0
        %v5232 = vadd.f32 0.0, %v5231
        %v5233 = vpop.f32.mrb[0].mxu0
        %5234 = vmatprep.mubr.f32.mxu0 0.0
        %5235 = vmatmul.mubr.f32.gmra.mrb[0].mxu0 %v5142
        %v5236 = vpop.f32.mrb[0].mxu0
        %v5237 = vadd.f32 0.0, %v5236
        %v5238 = vpop.f32.mrb[0].mxu0
        %5239 = vmatprep.mubr.f32.mxu0 0.0
        %5240 = vmatmul.mubr.f32.gmra.mrb[0].mxu0 %v5144
        %v5241 = vpop.f32.mrb[0].mxu0
        %v5242 = vadd.f32 0.0, %v5241
        %v5243 = vpop.f32.mrb[0].mxu0
        %5244 = vmatprep.mubr.f32.mxu0 0.0
        %5245 = vmatmul.mubr.f32.gmra.mrb[0].mxu0 %v5146
        %v5246 = vpop.f32.mrb[0].mxu0
        %v5247 = vadd.f32 0.0, %v5246
        %v5248 = vpop.f32.mrb[0].mxu0
        %5249 = vmatprep.mubr.f32.mxu0 0.0
        %5250 = vmatmul.mubr.f32.gmra.mrb[0].mxu0 %v5148
        %v5251 = vpop.f32.mrb[0].mxu0
        %v5252 = vadd.f32 0.0, %v5251
        %v5253 = vpop.f32.mrb[0].mxu0
        %5254 = vdwg.mxu0
        %v5255 = vadd.f32 %v5020, %v5217
        %v5256 = vadd.f32 %v5021, %v5222
        %v5257 = vadd.f32 %v5022, %v5227
        %v5258 = vadd.f32 %v5023, %v5232
        %v5259 = vadd.f32 %v5024, %v5237
        %v5260 = vadd.f32 %v5025, %v5242
        %v5261 = vadd.f32 %v5026, %v5247
        %v5262 = vadd.f32 %v5027, %v5252
        %v5263 = vld [vmem:[%s6] sm:$0x1]
        %v5265 = vlaneseq
        %v5266 = vshrl.u32 %v5265, 7
        %v5267 = vsub.s32 0, %v5266
        %v5268 = vrot.slane %v5263, %v5267
        %v5270 = vadd.f32 %v5255, %v5268
        %v5271 = vadd.f32 %v5256, %v5268
        %v5272 = vadd.f32 %v5257, %v5268
        %v5273 = vadd.f32 %v5258, %v5268
        %v5274 = vadd.f32 %v5259, %v5268
        %v5275 = vadd.f32 %v5260, %v5268
        %v5276 = vadd.f32 %v5261, %v5268
        %v5277 = vadd.f32 %v5262, %v5268
        %v5278 = vmax.f32 %v5270, 0.0
        %v5279 = vmax.f32 %v5271, 0.0
        %v5280 = vmax.f32 %v5272, 0.0
        %v5281 = vmax.f32 %v5273, 0.0
        %v5282 = vmax.f32 %v5274, 0.0
        %v5283 = vmax.f32 %v5275, 0.0
        %v5284 = vmax.f32 %v5276, 0.0
        %v5285 = vmax.f32 %v5277, 0.0
        %v5286 = vld [vmem:[%s7] sm:$0xff]
        %v5287 = vld [vmem:[%s7 + $0x8] sm:$0xff]
        %v5288 = vld [vmem:[%s7 + $0x10] sm:$0xff]
        %v5289 = vld [vmem:[%s7 + $0x18] sm:$0xff]
        %v5290 = vld [vmem:[%s7 + $0x20] sm:$0xff]
        %v5291 = vld [vmem:[%s7 + $0x28] sm:$0xff]
        %v5292 = vld [vmem:[%s7 + $0x30] sm:$0xff]
        %v5293 = vld [vmem:[%s7 + $0x38] sm:$0xff]
        %v5294 = vld [vmem:[%s7 + $0x40] sm:$0xff]
        %v5295 = vld [vmem:[%s7 + $0x48] sm:$0xff]
        %v5296 = vld [vmem:[%s7 + $0x50] sm:$0xff]
        %v5297 = vld [vmem:[%s7 + $0x58] sm:$0xff]
        %v5298 = vld [vmem:[%s7 + $0x60] sm:$0xff]
        %v5299 = vld [vmem:[%s7 + $0x68] sm:$0xff]
        %v5300 = vld [vmem:[%s7 + $0x70] sm:$0xff]
        %v5301 = vld [vmem:[%s7 + $0x78] sm:$0xff]
        %5302 = vmatprep.subr.mxu0 0.0
        %5303 = vmatpush1.msra.mxu0 %v5286
        %5304 = vmatprep.subr.mxu0 0.0
        %5305 = vmatpush1.msra.mxu0 %v5287
        %5306 = vmatprep.subr.mxu0 0.0
        %5307 = vmatpush1.msra.mxu0 %v5288
        %5308 = vmatprep.subr.mxu0 0.0
        %5309 = vmatpush1.msra.mxu0 %v5289
        %5310 = vmatprep.subr.mxu0 0.0
        %5311 = vmatpush1.msra.mxu0 %v5290
        %5312 = vmatprep.subr.mxu0 0.0
        %5313 = vmatpush1.msra.mxu0 %v5291
        %5314 = vmatprep.subr.mxu0 0.0
        %5315 = vmatpush1.msra.mxu0 %v5292
        %5316 = vmatprep.subr.mxu0 0.0
        %5317 = vmatpush1.msra.mxu0 %v5293
        %5318 = vmatprep.subr.mxu0 0.0
        %5319 = vmatpush1.msra.mxu0 %v5294
        %5320 = vmatprep.subr.mxu0 0.0
        %5321 = vmatpush1.msra.mxu0 %v5295
        %5322 = vmatprep.subr.mxu0 0.0
        %5323 = vmatpush1.msra.mxu0 %v5296
        %5324 = vmatprep.subr.mxu0 0.0
        %5325 = vmatpush1.msra.mxu0 %v5297
        %5326 = vmatprep.subr.mxu0 0.0
        %5327 = vmatpush1.msra.mxu0 %v5298
        %5328 = vmatprep.subr.mxu0 0.0
        %5329 = vmatpush1.msra.mxu0 %v5299
        %5330 = vmatprep.subr.mxu0 0.0
        %5331 = vmatpush1.msra.mxu0 %v5300
        %5332 = vmatprep.subr.mxu0 0.0
        %5333 = vmatpush1.msra.mxu0 %v5301
        %5334 = vmatprep.subr.mxu0 0.0
        %5335 = vmatpush1.msra.mxu0 0.0
        %5336 = vmatprep.subr.mxu0 0.0
        %5337 = vmatpush1.msra.mxu0 0.0
        %5338 = vmatprep.subr.mxu0 0.0
        %5339 = vmatpush1.msra.mxu0 0.0
        %5340 = vmatprep.subr.mxu0 0.0
        %5341 = vmatpush1.msra.mxu0 0.0
        %5342 = vmatprep.subr.mxu0 0.0
        %5343 = vmatpush1.msra.mxu0 0.0
        %5344 = vmatprep.subr.mxu0 0.0
        %5345 = vmatpush1.msra.mxu0 0.0
        %5346 = vmatprep.subr.mxu0 0.0
        %5347 = vmatpush1.msra.mxu0 0.0
        %5348 = vmatprep.subr.mxu0 0.0
        %5349 = vmatpush1.msra.mxu0 0.0
        %5350 = vmatprep.subr.mxu0 0.0
        %5351 = vmatpush1.msra.mxu0 0.0
        %5352 = vmatprep.subr.mxu0 0.0
        %5353 = vmatpush1.msra.mxu0 0.0
        %5354 = vmatprep.subr.mxu0 0.0
        %5355 = vmatpush1.msra.mxu0 0.0
        %5356 = vmatprep.subr.mxu0 0.0
        %5357 = vmatpush1.msra.mxu0 0.0
        %5358 = vmatprep.subr.mxu0 0.0
        %5359 = vmatpush1.msra.mxu0 0.0
        %5360 = vmatprep.subr.mxu0 0.0
        %5361 = vmatpush1.msra.mxu0 0.0
        %5362 = vmatprep.subr.mxu0 0.0
        %5363 = vmatpush1.msra.mxu0 0.0
        %5364 = vmatprep.subr.mxu0 0.0
        %5365 = vmatpush1.msra.mxu0 0.0
        %5366 = vmatprep.mubr.f32.mxu0 0.0
        %5367 = vmatmul.mubr.f32.gmra.mrb[0].mxu0 %v5278
        %v5368 = vpop.f32.mrb[0].mxu0
        %v5369 = vadd.f32 0.0, %v5368
        %v5370 = vpop.f32.mrb[0].mxu0
        %5371 = vmatprep.mubr.f32.mxu0 0.0
        %5372 = vmatmul.mubr.f32.gmra.mrb[0].mxu0 %v5279
        %v5373 = vpop.f32.mrb[0].mxu0
        %v5374 = vadd.f32 0.0, %v5373
        %v5375 = vpop.f32.mrb[0].mxu0
        %5376 = vmatprep.mubr.f32.mxu0 0.0
        %5377 = vmatmul.mubr.f32.gmra.mrb[0].mxu0 %v5280
        %v5378 = vpop.f32.mrb[0].mxu0
        %v5379 = vadd.f32 0.0, %v5378
        %v5380 = vpop.f32.mrb[0].mxu0
        %5381 = vmatprep.mubr.f32.mxu0 0.0
        %5382 = vmatmul.mubr.f32.gmra.mrb[0].mxu0 %v5281
        %v5383 = vpop.f32.mrb[0].mxu0
        %v5384 = vadd.f32 0.0, %v5383
        %v5385 = vpop.f32.mrb[0].mxu0
        %5386 = vmatprep.mubr.f32.mxu0 0.0
        %5387 = vmatmul.mubr.f32.gmra.mrb[0].mxu0 %v5282
        %v5388 = vpop.f32.mrb[0].mxu0
        %v5389 = vadd.f32 0.0, %v5388
        %v5390 = vpop.f32.mrb[0].mxu0
        %5391 = vmatprep.mubr.f32.mxu0 0.0
        %5392 = vmatmul.mubr.f32.gmra.mrb[0].mxu0 %v5283
        %v5393 = vpop.f32.mrb[0].mxu0
        %v5394 = vadd.f32 0.0, %v5393
        %v5395 = vpop.f32.mrb[0].mxu0
        %5396 = vmatprep.mubr.f32.mxu0 0.0
        %5397 = vmatmul.mubr.f32.gmra.mrb[0].mxu0 %v5284
        %v5398 = vpop.f32.mrb[0].mxu0
        %v5399 = vadd.f32 0.0, %v5398
        %v5400 = vpop.f32.mrb[0].mxu0
        %5401 = vmatprep.mubr.f32.mxu0 0.0
        %5402 = vmatmul.mubr.f32.gmra.mrb[0].mxu0 %v5285
        %v5403 = vpop.f32.mrb[0].mxu0
        %v5404 = vadd.f32 0.0, %v5403
        %v5405 = vpop.f32.mrb[0].mxu0
        %5406 = vdwg.mxu0
        %v5407 = vld [vmem:[%s8] sm:$0xff]
        %v5408 = vld [vmem:[%s8 + $0x8] sm:$0xff]
        %v5409 = vld [vmem:[%s8 + $0x10] sm:$0xff]
        %v5410 = vld [vmem:[%s8 + $0x18] sm:$0xff]
        %v5411 = vld [vmem:[%s8 + $0x20] sm:$0xff]
        %v5412 = vld [vmem:[%s8 + $0x28] sm:$0xff]
        %v5413 = vld [vmem:[%s8 + $0x30] sm:$0xff]
        %v5414 = vld [vmem:[%s8 + $0x38] sm:$0xff]
        %v5415 = vld [vmem:[%s8 + $0x40] sm:$0xff]
        %v5416 = vld [vmem:[%s8 + $0x48] sm:$0xff]
        %v5417 = vld [vmem:[%s8 + $0x50] sm:$0xff]
        %v5418 = vld [vmem:[%s8 + $0x58] sm:$0xff]
        %v5419 = vld [vmem:[%s8 + $0x60] sm:$0xff]
        %v5420 = vld [vmem:[%s8 + $0x68] sm:$0xff]
        %v5421 = vld [vmem:[%s8 + $0x70] sm:$0xff]
        %v5422 = vld [vmem:[%s8 + $0x78] sm:$0xff]
        %5423 = vmatprep.subr.mxu0 0.0
        %5424 = vmatpush1.msra.mxu0 %v5407
        %5425 = vmatprep.subr.mxu0 0.0
        %5426 = vmatpush1.msra.mxu0 %v5408
        %5427 = vmatprep.subr.mxu0 0.0
        %5428 = vmatpush1.msra.mxu0 %v5409
        %5429 = vmatprep.subr.mxu0 0.0
        %5430 = vmatpush1.msra.mxu0 %v5410
        %5431 = vmatprep.subr.mxu0 0.0
        %5432 = vmatpush1.msra.mxu0 %v5411
        %5433 = vmatprep.subr.mxu0 0.0
        %5434 = vmatpush1.msra.mxu0 %v5412
        %5435 = vmatprep.subr.mxu0 0.0
        %5436 = vmatpush1.msra.mxu0 %v5413
        %5437 = vmatprep.subr.mxu0 0.0
        %5438 = vmatpush1.msra.mxu0 %v5414
        %5439 = vmatprep.subr.mxu0 0.0
        %5440 = vmatpush1.msra.mxu0 %v5415
        %5441 = vmatprep.subr.mxu0 0.0
        %5442 = vmatpush1.msra.mxu0 %v5416
        %5443 = vmatprep.subr.mxu0 0.0
        %5444 = vmatpush1.msra.mxu0 %v5417
        %5445 = vmatprep.subr.mxu0 0.0
        %5446 = vmatpush1.msra.mxu0 %v5418
        %5447 = vmatprep.subr.mxu0 0.0
        %5448 = vmatpush1.msra.mxu0 %v5419
        %5449 = vmatprep.subr.mxu0 0.0
        %5450 = vmatpush1.msra.mxu0 %v5420
        %5451 = vmatprep.subr.mxu0 0.0
        %5452 = vmatpush1.msra.mxu0 %v5421
        %5453 = vmatprep.subr.mxu0 0.0
        %5454 = vmatpush1.msra.mxu0 %v5422
        %5455 = vmatprep.subr.mxu0 0.0
        %5456 = vmatpush1.msra.mxu0 0.0
        %5457 = vmatprep.subr.mxu0 0.0
        %5458 = vmatpush1.msra.mxu0 0.0
        %5459 = vmatprep.subr.mxu0 0.0
        %5460 = vmatpush1.msra.mxu0 0.0
        %5461 = vmatprep.subr.mxu0 0.0
        %5462 = vmatpush1.msra.mxu0 0.0
        %5463 = vmatprep.subr.mxu0 0.0
        %5464 = vmatpush1.msra.mxu0 0.0
        %5465 = vmatprep.subr.mxu0 0.0
        %5466 = vmatpush1.msra.mxu0 0.0
        %5467 = vmatprep.subr.mxu0 0.0
        %5468 = vmatpush1.msra.mxu0 0.0
        %5469 = vmatprep.subr.mxu0 0.0
        %5470 = vmatpush1.msra.mxu0 0.0
        %5471 = vmatprep.subr.mxu0 0.0
        %5472 = vmatpush1.msra.mxu0 0.0
        %5473 = vmatprep.subr.mxu0 0.0
        %5474 = vmatpush1.msra.mxu0 0.0
        %5475 = vmatprep.subr.mxu0 0.0
        %5476 = vmatpush1.msra.mxu0 0.0
        %5477 = vmatprep.subr.mxu0 0.0
        %5478 = vmatpush1.msra.mxu0 0.0
        %5479 = vmatprep.subr.mxu0 0.0
        %5480 = vmatpush1.msra.mxu0 0.0
        %5481 = vmatprep.subr.mxu0 0.0
        %5482 = vmatpush1.msra.mxu0 0.0
        %5483 = vmatprep.subr.mxu0 0.0
        %5484 = vmatpush1.msra.mxu0 0.0
        %5485 = vmatprep.subr.mxu0 0.0
        %5486 = vmatpush1.msra.mxu0 0.0
        %5487 = vmatprep.mubr.f32.mxu0 0.0
        %5488 = vmatmul.mubr.f32.gmra.mrb[0].mxu0 %v5278
        %v5489 = vpop.f32.mrb[0].mxu0
        %v5490 = vadd.f32 0.0, %v5489
        %v5491 = vpop.f32.mrb[0].mxu0
        %5492 = vmatprep.mubr.f32.mxu0 0.0
        %5493 = vmatmul.mubr.f32.gmra.mrb[0].mxu0 %v5279
        %v5494 = vpop.f32.mrb[0].mxu0
        %v5495 = vadd.f32 0.0, %v5494
        %v5496 = vpop.f32.mrb[0].mxu0
        %5497 = vmatprep.mubr.f32.mxu0 0.0
        %5498 = vmatmul.mubr.f32.gmra.mrb[0].mxu0 %v5280
        %v5499 = vpop.f32.mrb[0].mxu0
        %v5500 = vadd.f32 0.0, %v5499
        %v5501 = vpop.f32.mrb[0].mxu0
        %5502 = vmatprep.mubr.f32.mxu0 0.0
        %5503 = vmatmul.mubr.f32.gmra.mrb[0].mxu0 %v5281
        %v5504 = vpop.f32.mrb[0].mxu0
        %v5505 = vadd.f32 0.0, %v5504
        %v5506 = vpop.f32.mrb[0].mxu0
        %5507 = vmatprep.mubr.f32.mxu0 0.0
        %5508 = vmatmul.mubr.f32.gmra.mrb[0].mxu0 %v5282
        %v5509 = vpop.f32.mrb[0].mxu0
        %v5510 = vadd.f32 0.0, %v5509
        %v5511 = vpop.f32.mrb[0].mxu0
        %5512 = vmatprep.mubr.f32.mxu0 0.0
        %5513 = vmatmul.mubr.f32.gmra.mrb[0].mxu0 %v5283
        %v5514 = vpop.f32.mrb[0].mxu0
        %v5515 = vadd.f32 0.0, %v5514
        %v5516 = vpop.f32.mrb[0].mxu0
        %5517 = vmatprep.mubr.f32.mxu0 0.0
        %5518 = vmatmul.mubr.f32.gmra.mrb[0].mxu0 %v5284
        %v5519 = vpop.f32.mrb[0].mxu0
        %v5520 = vadd.f32 0.0, %v5519
        %v5521 = vpop.f32.mrb[0].mxu0
        %5522 = vmatprep.mubr.f32.mxu0 0.0
        %5523 = vmatmul.mubr.f32.gmra.mrb[0].mxu0 %v5285
        %v5524 = vpop.f32.mrb[0].mxu0
        %v5525 = vadd.f32 0.0, %v5524
        %v5526 = vpop.f32.mrb[0].mxu0
        %5527 = vdwg.mxu0
        %v5528 = vmax.f32 %v5369, %v5490
        %v5529 = vmax.f32 %v5374, %v5495
        %v5530 = vmax.f32 %v5379, %v5500
        %v5531 = vmax.f32 %v5384, %v5505
        %v5532 = vmax.f32 %v5389, %v5510
        %v5533 = vmax.f32 %v5394, %v5515
        %v5534 = vmax.f32 %v5399, %v5520
        %v5535 = vmax.f32 %v5404, %v5525
        %v5544 = vcombine.high %v5528, %v5528
        %v5546 = vunpack.c.l.s4 1983009808
        %v5547 = vunpack.c.0.s8 %v5546
        %v5548 = vlaneseq
        %v5549 = vshrl.u32 %v5548, 7
        %v5550 = vsub.s32 %v5547, %v5549
        %v5551 = vrot.slane %v5528, %v5550
        %v5553 = vunpack.c.l.s4 1983009808
        %v5554 = vunpack.c.0.s8 %v5553
        %v5555 = vlaneseq
        %v5556 = vshrl.u32 %v5555, 7
        %v5557 = vsub.s32 %v5554, %v5556
        %v5558 = vrot.slane %v5544, %v5557
        %v5559 = vcombine.high %v5551, %v5551
        %v5560 = vcombine.high %v5558, %v5558
        %v5561 = vcombine.high %v5529, %v5529
        %v5563 = vunpack.c.l.s4 1983009808
        %v5564 = vunpack.c.0.s8 %v5563
        %v5565 = vlaneseq
        %v5566 = vshrl.u32 %v5565, 7
        %v5567 = vsub.s32 %v5564, %v5566
        %v5568 = vrot.slane %v5529, %v5567
        %v5570 = vunpack.c.l.s4 1983009808
        %v5571 = vunpack.c.0.s8 %v5570
        %v5572 = vlaneseq
        %v5573 = vshrl.u32 %v5572, 7
        %v5574 = vsub.s32 %v5571, %v5573
        %v5575 = vrot.slane %v5561, %v5574
        %v5576 = vcombine.high %v5568, %v5568
        %v5577 = vcombine.high %v5575, %v5575
        %v5578 = vcombine.high %v5530, %v5530
        %v5580 = vunpack.c.l.s4 1983009808
        %v5581 = vunpack.c.0.s8 %v5580
        %v5582 = vlaneseq
        %v5583 = vshrl.u32 %v5582, 7
        %v5584 = vsub.s32 %v5581, %v5583
        %v5585 = vrot.slane %v5530, %v5584
        %v5587 = vunpack.c.l.s4 1983009808
        %v5588 = vunpack.c.0.s8 %v5587
        %v5589 = vlaneseq
        %v5590 = vshrl.u32 %v5589, 7
        %v5591 = vsub.s32 %v5588, %v5590
        %v5592 = vrot.slane %v5578, %v5591
        %v5593 = vcombine.high %v5585, %v5585
        %v5594 = vcombine.high %v5592, %v5592
        %v5595 = vcombine.high %v5531, %v5531
        %v5597 = vunpack.c.l.s4 1983009808
        %v5598 = vunpack.c.0.s8 %v5597
        %v5599 = vlaneseq
        %v5600 = vshrl.u32 %v5599, 7
        %v5601 = vsub.s32 %v5598, %v5600
        %v5602 = vrot.slane %v5531, %v5601
        %v5604 = vunpack.c.l.s4 1983009808
        %v5605 = vunpack.c.0.s8 %v5604
        %v5606 = vlaneseq
        %v5607 = vshrl.u32 %v5606, 7
        %v5608 = vsub.s32 %v5605, %v5607
        %v5609 = vrot.slane %v5595, %v5608
        %v5610 = vcombine.high %v5602, %v5602
        %v5611 = vcombine.high %v5609, %v5609
        %v5612 = vcombine.high %v5532, %v5532
        %v5614 = vunpack.c.l.s4 1983009808
        %v5615 = vunpack.c.0.s8 %v5614
        %v5616 = vlaneseq
        %v5617 = vshrl.u32 %v5616, 7
        %v5618 = vsub.s32 %v5615, %v5617
        %v5619 = vrot.slane %v5532, %v5618
        %v5621 = vunpack.c.l.s4 1983009808
        %v5622 = vunpack.c.0.s8 %v5621
        %v5623 = vlaneseq
        %v5624 = vshrl.u32 %v5623, 7
        %v5625 = vsub.s32 %v5622, %v5624
        %v5626 = vrot.slane %v5612, %v5625
        %v5627 = vcombine.high %v5619, %v5619
        %v5628 = vcombine.high %v5626, %v5626
        %v5629 = vcombine.high %v5533, %v5533
        %v5631 = vunpack.c.l.s4 1983009808
        %v5632 = vunpack.c.0.s8 %v5631
        %v5633 = vlaneseq
        %v5634 = vshrl.u32 %v5633, 7
        %v5635 = vsub.s32 %v5632, %v5634
        %v5636 = vrot.slane %v5533, %v5635
        %v5638 = vunpack.c.l.s4 1983009808
        %v5639 = vunpack.c.0.s8 %v5638
        %v5640 = vlaneseq
        %v5641 = vshrl.u32 %v5640, 7
        %v5642 = vsub.s32 %v5639, %v5641
        %v5643 = vrot.slane %v5629, %v5642
        %v5644 = vcombine.high %v5636, %v5636
        %v5645 = vcombine.high %v5643, %v5643
        %v5646 = vcombine.high %v5534, %v5534
        %v5648 = vunpack.c.l.s4 1983009808
        %v5649 = vunpack.c.0.s8 %v5648
        %v5650 = vlaneseq
        %v5651 = vshrl.u32 %v5650, 7
        %v5652 = vsub.s32 %v5649, %v5651
        %v5653 = vrot.slane %v5534, %v5652
        %v5655 = vunpack.c.l.s4 1983009808
        %v5656 = vunpack.c.0.s8 %v5655
        %v5657 = vlaneseq
        %v5658 = vshrl.u32 %v5657, 7
        %v5659 = vsub.s32 %v5656, %v5658
        %v5660 = vrot.slane %v5646, %v5659
        %v5661 = vcombine.high %v5653, %v5653
        %v5662 = vcombine.high %v5660, %v5660
        %v5663 = vcombine.high %v5535, %v5535
        %v5665 = vunpack.c.l.s4 1983009808
        %v5666 = vunpack.c.0.s8 %v5665
        %v5667 = vlaneseq
        %v5668 = vshrl.u32 %v5667, 7
        %v5669 = vsub.s32 %v5666, %v5668
        %v5670 = vrot.slane %v5535, %v5669
        %v5672 = vunpack.c.l.s4 1983009808
        %v5673 = vunpack.c.0.s8 %v5672
        %v5674 = vlaneseq
        %v5675 = vshrl.u32 %v5674, 7
        %v5676 = vsub.s32 %v5673, %v5675
        %v5677 = vrot.slane %v5663, %v5676
        %v5678 = vcombine.high %v5670, %v5670
        %v5679 = vcombine.high %v5677, %v5677
        %v5712 = vrot.slane %v5551, 7
        %v5713 = vrot.slane %v5712, 2
        %v5714 = vrot.slane %v5559, 7
        %v5715 = vrot.slane %v5714, 2
        %v5716 = vrot.slane %v5558, 7
        %v5717 = vrot.slane %v5716, 2
        %v5718 = vrot.slane %v5560, 7
        %v5719 = vrot.slane %v5718, 2
        %v5720 = vrot.slane %v5568, 7
        %v5721 = vrot.slane %v5720, 2
        %v5722 = vrot.slane %v5576, 7
        %v5723 = vrot.slane %v5722, 2
        %v5724 = vrot.slane %v5575, 7
        %v5725 = vrot.slane %v5724, 2
        %v5726 = vrot.slane %v5577, 7
        %v5727 = vrot.slane %v5726, 2
        %v5728 = vrot.slane %v5585, 7
        %v5729 = vrot.slane %v5728, 2
        %v5730 = vrot.slane %v5593, 7
        %v5731 = vrot.slane %v5730, 2
        %v5732 = vrot.slane %v5592, 7
        %v5733 = vrot.slane %v5732, 2
        %v5734 = vrot.slane %v5594, 7
        %v5735 = vrot.slane %v5734, 2
        %v5736 = vrot.slane %v5602, 7
        %v5737 = vrot.slane %v5736, 2
        %v5738 = vrot.slane %v5610, 7
        %v5739 = vrot.slane %v5738, 2
        %v5740 = vrot.slane %v5609, 7
        %v5741 = vrot.slane %v5740, 2
        %v5742 = vrot.slane %v5611, 7
        %v5743 = vrot.slane %v5742, 2
        %v5744 = vrot.slane %v5619, 7
        %v5745 = vrot.slane %v5744, 2
        %v5746 = vrot.slane %v5627, 7
        %v5747 = vrot.slane %v5746, 2
        %v5748 = vrot.slane %v5626, 7
        %v5749 = vrot.slane %v5748, 2
        %v5750 = vrot.slane %v5628, 7
        %v5751 = vrot.slane %v5750, 2
        %v5752 = vrot.slane %v5636, 7
        %v5753 = vrot.slane %v5752, 2
        %v5754 = vrot.slane %v5644, 7
        %v5755 = vrot.slane %v5754, 2
        %v5756 = vrot.slane %v5643, 7
        %v5757 = vrot.slane %v5756, 2
        %v5758 = vrot.slane %v5645, 7
        %v5759 = vrot.slane %v5758, 2
        %v5760 = vrot.slane %v5653, 7
        %v5761 = vrot.slane %v5760, 2
        %v5762 = vrot.slane %v5661, 7
        %v5763 = vrot.slane %v5762, 2
        %v5764 = vrot.slane %v5660, 7
        %v5765 = vrot.slane %v5764, 2
        %v5766 = vrot.slane %v5662, 7
        %v5767 = vrot.slane %v5766, 2
        %v5768 = vrot.slane %v5670, 7
        %v5769 = vrot.slane %v5768, 2
        %v5770 = vrot.slane %v5678, 7
        %v5771 = vrot.slane %v5770, 2
        %v5772 = vrot.slane %v5677, 7
        %v5773 = vrot.slane %v5772, 2
        %v5774 = vrot.slane %v5679, 7
        %v5775 = vrot.slane %v5774, 2
        %v5808 = vmax.f32 %v5551, %v5713
        %v5809 = vmax.f32 %v5559, %v5715
        %v5810 = vmax.f32 %v5558, %v5717
        %v5811 = vmax.f32 %v5560, %v5719
        %v5812 = vmax.f32 %v5568, %v5721
        %v5813 = vmax.f32 %v5576, %v5723
        %v5814 = vmax.f32 %v5575, %v5725
        %v5815 = vmax.f32 %v5577, %v5727
        %v5816 = vmax.f32 %v5585, %v5729
        %v5817 = vmax.f32 %v5593, %v5731
        %v5818 = vmax.f32 %v5592, %v5733
        %v5819 = vmax.f32 %v5594, %v5735
        %v5820 = vmax.f32 %v5602, %v5737
        %v5821 = vmax.f32 %v5610, %v5739
        %v5822 = vmax.f32 %v5609, %v5741
        %v5823 = vmax.f32 %v5611, %v5743
        %v5824 = vmax.f32 %v5619, %v5745
        %v5825 = vmax.f32 %v5627, %v5747
        %v5826 = vmax.f32 %v5626, %v5749
        %v5827 = vmax.f32 %v5628, %v5751
        %v5828 = vmax.f32 %v5636, %v5753
        %v5829 = vmax.f32 %v5644, %v5755
        %v5830 = vmax.f32 %v5643, %v5757
        %v5831 = vmax.f32 %v5645, %v5759
        %v5832 = vmax.f32 %v5653, %v5761
        %v5833 = vmax.f32 %v5661, %v5763
        %v5834 = vmax.f32 %v5660, %v5765
        %v5835 = vmax.f32 %v5662, %v5767
        %v5836 = vmax.f32 %v5670, %v5769
        %v5837 = vmax.f32 %v5678, %v5771
        %v5838 = vmax.f32 %v5677, %v5773
        %v5839 = vmax.f32 %v5679, %v5775
        %v5840 = vld [vmem:[%s9] sm:$0xff]
        %v5841 = vld [vmem:[%s9 + $0x8] sm:$0xff]
        %v5842 = vld [vmem:[%s9 + $0x10] sm:$0xff]
        %v5843 = vld [vmem:[%s9 + $0x18] sm:$0xff]
        %v5844 = vld [vmem:[%s9 + $0x20] sm:$0xff]
        %v5845 = vld [vmem:[%s9 + $0x28] sm:$0xff]
        %v5846 = vld [vmem:[%s9 + $0x30] sm:$0xff]
        %v5847 = vld [vmem:[%s9 + $0x38] sm:$0xff]
        %s5848 = scalar_lea.vmem %s9, 64
        %v5849 = vld [vmem:[%s5848] sm:$0xff]
        %v5850 = vld [vmem:[%s5848 + $0x8] sm:$0xff]
        %v5851 = vld [vmem:[%s5848 + $0x10] sm:$0xff]
        %v5852 = vld [vmem:[%s5848 + $0x18] sm:$0xff]
        %v5853 = vld [vmem:[%s5848 + $0x20] sm:$0xff]
        %v5854 = vld [vmem:[%s5848 + $0x28] sm:$0xff]
        %v5855 = vld [vmem:[%s5848 + $0x30] sm:$0xff]
        %v5856 = vld [vmem:[%s5848 + $0x38] sm:$0xff]
        %v5865 = vlaneseq
        %v5866 = vshrl.u32 %v5865, 7
        %v5867 = vsub.s32 0, %v5866
        %v5868 = vrot.slane %v5809, %v5867
        %v5869 = vlaneseq
        %v5870 = vshrl.u32 %v5869, 7
        %v5871 = vsub.s32 0, %v5870
        %v5872 = vrot.slane %v5813, %v5871
        %v5873 = vlaneseq
        %v5874 = vshrl.u32 %v5873, 7
        %v5875 = vsub.s32 0, %v5874
        %v5876 = vrot.slane %v5817, %v5875
        %v5877 = vlaneseq
        %v5878 = vshrl.u32 %v5877, 7
        %v5879 = vsub.s32 0, %v5878
        %v5880 = vrot.slane %v5821, %v5879
        %v5881 = vlaneseq
        %v5882 = vshrl.u32 %v5881, 7
        %v5883 = vsub.s32 0, %v5882
        %v5884 = vrot.slane %v5825, %v5883
        %v5885 = vlaneseq
        %v5886 = vshrl.u32 %v5885, 7
        %v5887 = vsub.s32 0, %v5886
        %v5888 = vrot.slane %v5829, %v5887
        %v5889 = vlaneseq
        %v5890 = vshrl.u32 %v5889, 7
        %v5891 = vsub.s32 0, %v5890
        %v5892 = vrot.slane %v5833, %v5891
        %v5893 = vlaneseq
        %v5894 = vshrl.u32 %v5893, 7
        %v5895 = vsub.s32 0, %v5894
        %v5896 = vrot.slane %v5837, %v5895
        %v5897 = vsel %vm4156, %v5872, %v5868
        %v5898 = vsel %vm4158, %v5876, %v5897
        %v5899 = vsel %vm4160, %v5880, %v5898
        %v5900 = vsel %vm4162, %v5884, %v5899
        %v5901 = vsel %vm4164, %v5888, %v5900
        %v5902 = vsel %vm4166, %v5892, %v5901
        %v5903 = vsel %vm4168, %v5896, %v5902
        %vm5904 = vcmask 523264
        %v5905 = vsel %vm5904, %v5903, 0
        %5907 = vmatprep.subr.mxu0 0.0
        %5908 = vmatpush1.msra.mxu0 %v5849
        %5909 = vmatprep.subr.mxu0 0.0
        %5910 = vmatpush1.msra.mxu0 %v5850
        %5911 = vmatprep.subr.mxu0 0.0
        %5912 = vmatpush1.msra.mxu0 %v5851
        %5913 = vmatprep.subr.mxu0 0.0
        %5914 = vmatpush1.msra.mxu0 %v5852
        %5915 = vmatprep.subr.mxu0 0.0
        %5916 = vmatpush1.msra.mxu0 %v5853
        %5917 = vmatprep.subr.mxu0 0.0
        %5918 = vmatpush1.msra.mxu0 %v5854
        %5919 = vmatprep.subr.mxu0 0.0
        %5920 = vmatpush1.msra.mxu0 %v5855
        %5921 = vmatprep.subr.mxu0 0.0
        %5922 = vmatpush1.msra.mxu0 %v5856
        %5923 = vmatprep.subr.mxu0 0.0
        %5924 = vmatpush1.msra.mxu0 0.0
        %5925 = vmatprep.subr.mxu0 0.0
        %5926 = vmatpush1.msra.mxu0 0.0
        %5927 = vmatprep.subr.mxu0 0.0
        %5928 = vmatpush1.msra.mxu0 0.0
        %5929 = vmatprep.subr.mxu0 0.0
        %5930 = vmatpush1.msra.mxu0 0.0
        %5931 = vmatprep.subr.mxu0 0.0
        %5932 = vmatpush1.msra.mxu0 0.0
        %5933 = vmatprep.subr.mxu0 0.0
        %5934 = vmatpush1.msra.mxu0 0.0
        %5935 = vmatprep.subr.mxu0 0.0
        %5936 = vmatpush1.msra.mxu0 0.0
        %5937 = vmatprep.subr.mxu0 0.0
        %5938 = vmatpush1.msra.mxu0 0.0
        %5939 = vmatprep.subr.mxu0 0.0
        %5940 = vmatpush1.msra.mxu0 0.0
        %5941 = vmatprep.subr.mxu0 0.0
        %5942 = vmatpush1.msra.mxu0 0.0
        %5943 = vmatprep.subr.mxu0 0.0
        %5944 = vmatpush1.msra.mxu0 0.0
        %5945 = vmatprep.subr.mxu0 0.0
        %5946 = vmatpush1.msra.mxu0 0.0
        %5947 = vmatprep.subr.mxu0 0.0
        %5948 = vmatpush1.msra.mxu0 0.0
        %5949 = vmatprep.subr.mxu0 0.0
        %5950 = vmatpush1.msra.mxu0 0.0
        %5951 = vmatprep.subr.mxu0 0.0
        %5952 = vmatpush1.msra.mxu0 0.0
        %5953 = vmatprep.subr.mxu0 0.0
        %5954 = vmatpush1.msra.mxu0 0.0
        %5955 = vmatprep.subr.mxu0 0.0
        %5956 = vmatpush1.msra.mxu0 0.0
        %5957 = vmatprep.subr.mxu0 0.0
        %5958 = vmatpush1.msra.mxu0 0.0
        %5959 = vmatprep.subr.mxu0 0.0
        %5960 = vmatpush1.msra.mxu0 0.0
        %5961 = vmatprep.subr.mxu0 0.0
        %5962 = vmatpush1.msra.mxu0 0.0
        %5963 = vmatprep.subr.mxu0 0.0
        %5964 = vmatpush1.msra.mxu0 0.0
        %5965 = vmatprep.subr.mxu0 0.0
        %5966 = vmatpush1.msra.mxu0 0.0
        %5967 = vmatprep.subr.mxu0 0.0
        %5968 = vmatpush1.msra.mxu0 0.0
        %5969 = vmatprep.subr.mxu0 0.0
        %5970 = vmatpush1.msra.mxu0 0.0
        %5971 = vmatprep.mubr.f32.mxu0 0.0
        %5972 = vmatmul.mubr.f32.gmra.mrb[0].mxu0 %v5905
        %v5973 = vpop.f32.mrb[0].mxu0
        %v5974 = vadd.f32 0.0, %v5973
        %v5975 = vpop.f32.mrb[0].mxu0
        %5976 = vdwg.mxu0
        %v5985 = vlaneseq
        %v5986 = vshrl.u32 %v5985, 7
        %v5987 = vsub.s32 0, %v5986
        %v5988 = vrot.slane %v5808, %v5987
        %v5989 = vlaneseq
        %v5990 = vshrl.u32 %v5989, 7
        %v5991 = vsub.s32 0, %v5990
        %v5992 = vrot.slane %v5812, %v5991
        %v5993 = vlaneseq
        %v5994 = vshrl.u32 %v5993, 7
        %v5995 = vsub.s32 0, %v5994
        %v5996 = vrot.slane %v5816, %v5995
        %v5997 = vlaneseq
        %v5998 = vshrl.u32 %v5997, 7
        %v5999 = vsub.s32 0, %v5998
        %v6000 = vrot.slane %v5820, %v5999
        %v6001 = vlaneseq
        %v6002 = vshrl.u32 %v6001, 7
        %v6003 = vsub.s32 0, %v6002
        %v6004 = vrot.slane %v5824, %v6003
        %v6005 = vlaneseq
        %v6006 = vshrl.u32 %v6005, 7
        %v6007 = vsub.s32 0, %v6006
        %v6008 = vrot.slane %v5828, %v6007
        %v6009 = vlaneseq
        %v6010 = vshrl.u32 %v6009, 7
        %v6011 = vsub.s32 0, %v6010
        %v6012 = vrot.slane %v5832, %v6011
        %v6013 = vlaneseq
        %v6014 = vshrl.u32 %v6013, 7
        %v6015 = vsub.s32 0, %v6014
        %v6016 = vrot.slane %v5836, %v6015
        %v6017 = vsel %vm4156, %v5992, %v5988
        %v6018 = vsel %vm4158, %v5996, %v6017
        %v6019 = vsel %vm4160, %v6000, %v6018
        %v6020 = vsel %vm4162, %v6004, %v6019
        %v6021 = vsel %vm4164, %v6008, %v6020
        %v6022 = vsel %vm4166, %v6012, %v6021
        %v6023 = vsel %vm4168, %v6016, %v6022
        %v6024 = vsel %vm5904, %v6023, 0
        %6026 = vmatprep.subr.mxu0 0.0
        %6027 = vmatpush1.msra.mxu0 %v5840
        %6028 = vmatprep.subr.mxu0 0.0
        %6029 = vmatpush1.msra.mxu0 %v5841
        %6030 = vmatprep.subr.mxu0 0.0
        %6031 = vmatpush1.msra.mxu0 %v5842
        %6032 = vmatprep.subr.mxu0 0.0
        %6033 = vmatpush1.msra.mxu0 %v5843
        %6034 = vmatprep.subr.mxu0 0.0
        %6035 = vmatpush1.msra.mxu0 %v5844
        %6036 = vmatprep.subr.mxu0 0.0
        %6037 = vmatpush1.msra.mxu0 %v5845
        %6038 = vmatprep.subr.mxu0 0.0
        %6039 = vmatpush1.msra.mxu0 %v5846
        %6040 = vmatprep.subr.mxu0 0.0
        %6041 = vmatpush1.msra.mxu0 %v5847
        %6042 = vmatprep.subr.mxu0 0.0
        %6043 = vmatpush1.msra.mxu0 0.0
        %6044 = vmatprep.subr.mxu0 0.0
        %6045 = vmatpush1.msra.mxu0 0.0
        %6046 = vmatprep.subr.mxu0 0.0
        %6047 = vmatpush1.msra.mxu0 0.0
        %6048 = vmatprep.subr.mxu0 0.0
        %6049 = vmatpush1.msra.mxu0 0.0
        %6050 = vmatprep.subr.mxu0 0.0
        %6051 = vmatpush1.msra.mxu0 0.0
        %6052 = vmatprep.subr.mxu0 0.0
        %6053 = vmatpush1.msra.mxu0 0.0
        %6054 = vmatprep.subr.mxu0 0.0
        %6055 = vmatpush1.msra.mxu0 0.0
        %6056 = vmatprep.subr.mxu0 0.0
        %6057 = vmatpush1.msra.mxu0 0.0
        %6058 = vmatprep.subr.mxu0 0.0
        %6059 = vmatpush1.msra.mxu0 0.0
        %6060 = vmatprep.subr.mxu0 0.0
        %6061 = vmatpush1.msra.mxu0 0.0
        %6062 = vmatprep.subr.mxu0 0.0
        %6063 = vmatpush1.msra.mxu0 0.0
        %6064 = vmatprep.subr.mxu0 0.0
        %6065 = vmatpush1.msra.mxu0 0.0
        %6066 = vmatprep.subr.mxu0 0.0
        %6067 = vmatpush1.msra.mxu0 0.0
        %6068 = vmatprep.subr.mxu0 0.0
        %6069 = vmatpush1.msra.mxu0 0.0
        %6070 = vmatprep.subr.mxu0 0.0
        %6071 = vmatpush1.msra.mxu0 0.0
        %6072 = vmatprep.subr.mxu0 0.0
        %6073 = vmatpush1.msra.mxu0 0.0
        %6074 = vmatprep.subr.mxu0 0.0
        %6075 = vmatpush1.msra.mxu0 0.0
        %6076 = vmatprep.subr.mxu0 0.0
        %6077 = vmatpush1.msra.mxu0 0.0
        %6078 = vmatprep.subr.mxu0 0.0
        %6079 = vmatpush1.msra.mxu0 0.0
        %6080 = vmatprep.subr.mxu0 0.0
        %6081 = vmatpush1.msra.mxu0 0.0
        %6082 = vmatprep.subr.mxu0 0.0
        %6083 = vmatpush1.msra.mxu0 0.0
        %6084 = vmatprep.subr.mxu0 0.0
        %6085 = vmatpush1.msra.mxu0 0.0
        %6086 = vmatprep.subr.mxu0 0.0
        %6087 = vmatpush1.msra.mxu0 0.0
        %6088 = vmatprep.subr.mxu0 0.0
        %6089 = vmatpush1.msra.mxu0 0.0
        %6090 = vmatprep.mubr.f32.mxu0 0.0
        %6091 = vmatmul.mubr.f32.gmra.mrb[0].mxu0 %v6024
        %v6092 = vpop.f32.mrb[0].mxu0
        %v6093 = vadd.f32 %v5974, %v6092
        %v6094 = vpop.f32.mrb[0].mxu0
        %6095 = vdwg.mxu0
        %s6096 = scalar_lea.vmem %s9, 128
        %v6097 = vld [vmem:[%s6096] sm:$0xff]
        %v6098 = vld [vmem:[%s6096 + $0x8] sm:$0xff]
        %v6099 = vld [vmem:[%s6096 + $0x10] sm:$0xff]
        %v6100 = vld [vmem:[%s6096 + $0x18] sm:$0xff]
        %v6101 = vld [vmem:[%s6096 + $0x20] sm:$0xff]
        %v6102 = vld [vmem:[%s6096 + $0x28] sm:$0xff]
        %v6103 = vld [vmem:[%s6096 + $0x30] sm:$0xff]
        %v6104 = vld [vmem:[%s6096 + $0x38] sm:$0xff]
        %v6113 = vlaneseq
        %v6114 = vshrl.u32 %v6113, 7
        %v6115 = vsub.s32 0, %v6114
        %v6116 = vrot.slane %v5810, %v6115
        %v6117 = vlaneseq
        %v6118 = vshrl.u32 %v6117, 7
        %v6119 = vsub.s32 0, %v6118
        %v6120 = vrot.slane %v5814, %v6119
        %v6121 = vlaneseq
        %v6122 = vshrl.u32 %v6121, 7
        %v6123 = vsub.s32 0, %v6122
        %v6124 = vrot.slane %v5818, %v6123
        %v6125 = vlaneseq
        %v6126 = vshrl.u32 %v6125, 7
        %v6127 = vsub.s32 0, %v6126
        %v6128 = vrot.slane %v5822, %v6127
        %v6129 = vlaneseq
        %v6130 = vshrl.u32 %v6129, 7
        %v6131 = vsub.s32 0, %v6130
        %v6132 = vrot.slane %v5826, %v6131
        %v6133 = vlaneseq
        %v6134 = vshrl.u32 %v6133, 7
        %v6135 = vsub.s32 0, %v6134
        %v6136 = vrot.slane %v5830, %v6135
        %v6137 = vlaneseq
        %v6138 = vshrl.u32 %v6137, 7
        %v6139 = vsub.s32 0, %v6138
        %v6140 = vrot.slane %v5834, %v6139
        %v6141 = vlaneseq
        %v6142 = vshrl.u32 %v6141, 7
        %v6143 = vsub.s32 0, %v6142
        %v6144 = vrot.slane %v5838, %v6143
        %v6145 = vsel %vm4156, %v6120, %v6116
        %v6146 = vsel %vm4158, %v6124, %v6145
        %v6147 = vsel %vm4160, %v6128, %v6146
        %v6148 = vsel %vm4162, %v6132, %v6147
        %v6149 = vsel %vm4164, %v6136, %v6148
        %v6150 = vsel %vm4166, %v6140, %v6149
        %v6151 = vsel %vm4168, %v6144, %v6150
        %v6152 = vsel %vm5904, %v6151, 0
        %6154 = vmatprep.subr.mxu0 0.0
        %6155 = vmatpush1.msra.mxu0 %v6097
        %6156 = vmatprep.subr.mxu0 0.0
        %6157 = vmatpush1.msra.mxu0 %v6098
        %6158 = vmatprep.subr.mxu0 0.0
        %6159 = vmatpush1.msra.mxu0 %v6099
        %6160 = vmatprep.subr.mxu0 0.0
        %6161 = vmatpush1.msra.mxu0 %v6100
        %6162 = vmatprep.subr.mxu0 0.0
        %6163 = vmatpush1.msra.mxu0 %v6101
        %6164 = vmatprep.subr.mxu0 0.0
        %6165 = vmatpush1.msra.mxu0 %v6102
        %6166 = vmatprep.subr.mxu0 0.0
        %6167 = vmatpush1.msra.mxu0 %v6103
        %6168 = vmatprep.subr.mxu0 0.0
        %6169 = vmatpush1.msra.mxu0 %v6104
        %6170 = vmatprep.subr.mxu0 0.0
        %6171 = vmatpush1.msra.mxu0 0.0
        %6172 = vmatprep.subr.mxu0 0.0
        %6173 = vmatpush1.msra.mxu0 0.0
        %6174 = vmatprep.subr.mxu0 0.0
        %6175 = vmatpush1.msra.mxu0 0.0
        %6176 = vmatprep.subr.mxu0 0.0
        %6177 = vmatpush1.msra.mxu0 0.0
        %6178 = vmatprep.subr.mxu0 0.0
        %6179 = vmatpush1.msra.mxu0 0.0
        %6180 = vmatprep.subr.mxu0 0.0
        %6181 = vmatpush1.msra.mxu0 0.0
        %6182 = vmatprep.subr.mxu0 0.0
        %6183 = vmatpush1.msra.mxu0 0.0
        %6184 = vmatprep.subr.mxu0 0.0
        %6185 = vmatpush1.msra.mxu0 0.0
        %6186 = vmatprep.subr.mxu0 0.0
        %6187 = vmatpush1.msra.mxu0 0.0
        %6188 = vmatprep.subr.mxu0 0.0
        %6189 = vmatpush1.msra.mxu0 0.0
        %6190 = vmatprep.subr.mxu0 0.0
        %6191 = vmatpush1.msra.mxu0 0.0
        %6192 = vmatprep.subr.mxu0 0.0
        %6193 = vmatpush1.msra.mxu0 0.0
        %6194 = vmatprep.subr.mxu0 0.0
        %6195 = vmatpush1.msra.mxu0 0.0
        %6196 = vmatprep.subr.mxu0 0.0
        %6197 = vmatpush1.msra.mxu0 0.0
        %6198 = vmatprep.subr.mxu0 0.0
        %6199 = vmatpush1.msra.mxu0 0.0
        %6200 = vmatprep.subr.mxu0 0.0
        %6201 = vmatpush1.msra.mxu0 0.0
        %6202 = vmatprep.subr.mxu0 0.0
        %6203 = vmatpush1.msra.mxu0 0.0
        %6204 = vmatprep.subr.mxu0 0.0
        %6205 = vmatpush1.msra.mxu0 0.0
        %6206 = vmatprep.subr.mxu0 0.0
        %6207 = vmatpush1.msra.mxu0 0.0
        %6208 = vmatprep.subr.mxu0 0.0
        %6209 = vmatpush1.msra.mxu0 0.0
        %6210 = vmatprep.subr.mxu0 0.0
        %6211 = vmatpush1.msra.mxu0 0.0
        %6212 = vmatprep.subr.mxu0 0.0
        %6213 = vmatpush1.msra.mxu0 0.0
        %6214 = vmatprep.subr.mxu0 0.0
        %6215 = vmatpush1.msra.mxu0 0.0
        %6216 = vmatprep.subr.mxu0 0.0
        %6217 = vmatpush1.msra.mxu0 0.0
        %6218 = vmatprep.mubr.f32.mxu0 0.0
        %6219 = vmatmul.mubr.f32.gmra.mrb[0].mxu0 %v6152
        %v6220 = vpop.f32.mrb[0].mxu0
        %v6221 = vadd.f32 0.0, %v6220
        %v6222 = vpop.f32.mrb[0].mxu0
        %6223 = vdwg.mxu0
        %v6224 = vadd.f32 %v6093, %v6221
        %s6225 = scalar_lea.vmem %s9, 192
        %v6226 = vld [vmem:[%s6225] sm:$0xff]
        %v6227 = vld [vmem:[%s6225 + $0x8] sm:$0xff]
        %v6228 = vld [vmem:[%s6225 + $0x10] sm:$0xff]
        %v6229 = vld [vmem:[%s6225 + $0x18] sm:$0xff]
        %v6230 = vld [vmem:[%s6225 + $0x20] sm:$0xff]
        %v6231 = vld [vmem:[%s6225 + $0x28] sm:$0xff]
        %v6232 = vld [vmem:[%s6225 + $0x30] sm:$0xff]
        %v6233 = vld [vmem:[%s6225 + $0x38] sm:$0xff]
        %v6242 = vlaneseq
        %v6243 = vshrl.u32 %v6242, 7
        %v6244 = vsub.s32 0, %v6243
        %v6245 = vrot.slane %v5811, %v6244
        %v6246 = vlaneseq
        %v6247 = vshrl.u32 %v6246, 7
        %v6248 = vsub.s32 0, %v6247
        %v6249 = vrot.slane %v5815, %v6248
        %v6250 = vlaneseq
        %v6251 = vshrl.u32 %v6250, 7
        %v6252 = vsub.s32 0, %v6251
        %v6253 = vrot.slane %v5819, %v6252
        %v6254 = vlaneseq
        %v6255 = vshrl.u32 %v6254, 7
        %v6256 = vsub.s32 0, %v6255
        %v6257 = vrot.slane %v5823, %v6256
        %v6258 = vlaneseq
        %v6259 = vshrl.u32 %v6258, 7
        %v6260 = vsub.s32 0, %v6259
        %v6261 = vrot.slane %v5827, %v6260
        %v6262 = vlaneseq
        %v6263 = vshrl.u32 %v6262, 7
        %v6264 = vsub.s32 0, %v6263
        %v6265 = vrot.slane %v5831, %v6264
        %v6266 = vlaneseq
        %v6267 = vshrl.u32 %v6266, 7
        %v6268 = vsub.s32 0, %v6267
        %v6269 = vrot.slane %v5835, %v6268
        %v6270 = vlaneseq
        %v6271 = vshrl.u32 %v6270, 7
        %v6272 = vsub.s32 0, %v6271
        %v6273 = vrot.slane %v5839, %v6272
        %v6274 = vsel %vm4156, %v6249, %v6245
        %v6275 = vsel %vm4158, %v6253, %v6274
        %v6276 = vsel %vm4160, %v6257, %v6275
        %v6277 = vsel %vm4162, %v6261, %v6276
        %v6278 = vsel %vm4164, %v6265, %v6277
        %v6279 = vsel %vm4166, %v6269, %v6278
        %v6280 = vsel %vm4168, %v6273, %v6279
        %v6281 = vsel %vm5904, %v6280, 0
        %6283 = vmatprep.subr.mxu0 0.0
        %6284 = vmatpush1.msra.mxu0 %v6226
        %6285 = vmatprep.subr.mxu0 0.0
        %6286 = vmatpush1.msra.mxu0 %v6227
        %6287 = vmatprep.subr.mxu0 0.0
        %6288 = vmatpush1.msra.mxu0 %v6228
        %6289 = vmatprep.subr.mxu0 0.0
        %6290 = vmatpush1.msra.mxu0 %v6229
        %6291 = vmatprep.subr.mxu0 0.0
        %6292 = vmatpush1.msra.mxu0 %v6230
        %6293 = vmatprep.subr.mxu0 0.0
        %6294 = vmatpush1.msra.mxu0 %v6231
        %6295 = vmatprep.subr.mxu0 0.0
        %6296 = vmatpush1.msra.mxu0 %v6232
        %6297 = vmatprep.subr.mxu0 0.0
        %6298 = vmatpush1.msra.mxu0 %v6233
        %6299 = vmatprep.subr.mxu0 0.0
        %6300 = vmatpush1.msra.mxu0 0.0
        %6301 = vmatprep.subr.mxu0 0.0
        %6302 = vmatpush1.msra.mxu0 0.0
        %6303 = vmatprep.subr.mxu0 0.0
        %6304 = vmatpush1.msra.mxu0 0.0
        %6305 = vmatprep.subr.mxu0 0.0
        %6306 = vmatpush1.msra.mxu0 0.0
        %6307 = vmatprep.subr.mxu0 0.0
        %6308 = vmatpush1.msra.mxu0 0.0
        %6309 = vmatprep.subr.mxu0 0.0
        %6310 = vmatpush1.msra.mxu0 0.0
        %6311 = vmatprep.subr.mxu0 0.0
        %6312 = vmatpush1.msra.mxu0 0.0
        %6313 = vmatprep.subr.mxu0 0.0
        %6314 = vmatpush1.msra.mxu0 0.0
        %6315 = vmatprep.subr.mxu0 0.0
        %6316 = vmatpush1.msra.mxu0 0.0
        %6317 = vmatprep.subr.mxu0 0.0
        %6318 = vmatpush1.msra.mxu0 0.0
        %6319 = vmatprep.subr.mxu0 0.0
        %6320 = vmatpush1.msra.mxu0 0.0
        %6321 = vmatprep.subr.mxu0 0.0
        %6322 = vmatpush1.msra.mxu0 0.0
        %6323 = vmatprep.subr.mxu0 0.0
        %6324 = vmatpush1.msra.mxu0 0.0
        %6325 = vmatprep.subr.mxu0 0.0
        %6326 = vmatpush1.msra.mxu0 0.0
        %6327 = vmatprep.subr.mxu0 0.0
        %6328 = vmatpush1.msra.mxu0 0.0
        %6329 = vmatprep.subr.mxu0 0.0
        %6330 = vmatpush1.msra.mxu0 0.0
        %6331 = vmatprep.subr.mxu0 0.0
        %6332 = vmatpush1.msra.mxu0 0.0
        %6333 = vmatprep.subr.mxu0 0.0
        %6334 = vmatpush1.msra.mxu0 0.0
        %6335 = vmatprep.subr.mxu0 0.0
        %6336 = vmatpush1.msra.mxu0 0.0
        %6337 = vmatprep.subr.mxu0 0.0
        %6338 = vmatpush1.msra.mxu0 0.0
        %6339 = vmatprep.subr.mxu0 0.0
        %6340 = vmatpush1.msra.mxu0 0.0
        %6341 = vmatprep.subr.mxu0 0.0
        %6342 = vmatpush1.msra.mxu0 0.0
        %6343 = vmatprep.subr.mxu0 0.0
        %6344 = vmatpush1.msra.mxu0 0.0
        %6345 = vmatprep.subr.mxu0 0.0
        %6346 = vmatpush1.msra.mxu0 0.0
        %6347 = vmatprep.mubr.f32.mxu0 0.0
        %6348 = vmatmul.mubr.f32.gmra.mrb[0].mxu0 %v6281
        %v6349 = vpop.f32.mrb[0].mxu0
        %v6350 = vadd.f32 0.0, %v6349
        %v6351 = vpop.f32.mrb[0].mxu0
        %6352 = vdwg.mxu0
        %v6353 = vadd.f32 %v6224, %v6350
        %v6354 = vld [vmem:[%s10] sm:$0x1]
        %v6356 = vlaneseq
        %v6357 = vshrl.u32 %v6356, 7
        %v6358 = vsub.s32 0, %v6357
        %v6359 = vrot.slane %v6354, %v6358
        %v6361 = vadd.f32 %v6353, %v6359
        %v6362 = vmax.f32 %v6361, 0.0
        %v6363 = vld [vmem:[%s11] sm:$0xff]
        %v6364 = vld [vmem:[%s11 + $0x8] sm:$0xff]
        %v6365 = vld [vmem:[%s11 + $0x10] sm:$0xff]
        %v6366 = vld [vmem:[%s11 + $0x18] sm:$0xff]
        %v6367 = vld [vmem:[%s11 + $0x20] sm:$0xff]
        %v6368 = vld [vmem:[%s11 + $0x28] sm:$0xff]
        %v6369 = vld [vmem:[%s11 + $0x30] sm:$0xff]
        %v6370 = vld [vmem:[%s11 + $0x38] sm:$0xff]
        %v6371 = vld [vmem:[%s11 + $0x40] sm:$0xff]
        %v6372 = vld [vmem:[%s11 + $0x48] sm:$0xff]
        %v6373 = vld [vmem:[%s11 + $0x50] sm:$0xff]
        %v6374 = vld [vmem:[%s11 + $0x58] sm:$0xff]
        %v6375 = vld [vmem:[%s11 + $0x60] sm:$0xff]
        %v6376 = vld [vmem:[%s11 + $0x68] sm:$0xff]
        %v6377 = vld [vmem:[%s11 + $0x70] sm:$0xff]
        %v6378 = vld [vmem:[%s12] sm:$0x1]
        %v6380 = vlaneseq
        %v6381 = vshrl.u32 %v6380, 7
        %v6382 = vsub.s32 0, %v6381
        %v6383 = vrot.slane %v6378, %v6382
        %vm6385 = vcmask 982016
        %v6387 = vsel %vm6385, %v6362, 0
        %6389 = vmatprep.subr.mxu0 0.0
        %6390 = vmatpush1.msra.mxu0 %v6363
        %6391 = vmatprep.subr.mxu0 0.0
        %6392 = vmatpush1.msra.mxu0 %v6364
        %6393 = vmatprep.subr.mxu0 0.0
        %6394 = vmatpush1.msra.mxu0 %v6365
        %6395 = vmatprep.subr.mxu0 0.0
        %6396 = vmatpush1.msra.mxu0 %v6366
        %6397 = vmatprep.subr.mxu0 0.0
        %6398 = vmatpush1.msra.mxu0 %v6367
        %6399 = vmatprep.subr.mxu0 0.0
        %6400 = vmatpush1.msra.mxu0 %v6368
        %6401 = vmatprep.subr.mxu0 0.0
        %6402 = vmatpush1.msra.mxu0 %v6369
        %6403 = vmatprep.subr.mxu0 0.0
        %6404 = vmatpush1.msra.mxu0 %v6370
        %6405 = vmatprep.subr.mxu0 0.0
        %6406 = vmatpush1.msra.mxu0 %v6371
        %6407 = vmatprep.subr.mxu0 0.0
        %6408 = vmatpush1.msra.mxu0 %v6372
        %6409 = vmatprep.subr.mxu0 0.0
        %6410 = vmatpush1.msra.mxu0 %v6373
        %6411 = vmatprep.subr.mxu0 0.0
        %6412 = vmatpush1.msra.mxu0 %v6374
        %6413 = vmatprep.subr.mxu0 0.0
        %6414 = vmatpush1.msra.mxu0 %v6375
        %6415 = vmatprep.subr.mxu0 0.0
        %6416 = vmatpush1.msra.mxu0 %v6376
        %6417 = vmatprep.subr.mxu0 0.0
        %6418 = vmatpush1.msra.mxu0 %v6377
        %6419 = vmatprep.subr.mxu0 0.0
        %6420 = vmatpush1.msra.mxu0 0.0
        %6421 = vmatprep.subr.mxu0 0.0
        %6422 = vmatpush1.msra.mxu0 0.0
        %6423 = vmatprep.subr.mxu0 0.0
        %6424 = vmatpush1.msra.mxu0 0.0
        %6425 = vmatprep.subr.mxu0 0.0
        %6426 = vmatpush1.msra.mxu0 0.0
        %6427 = vmatprep.subr.mxu0 0.0
        %6428 = vmatpush1.msra.mxu0 0.0
        %6429 = vmatprep.subr.mxu0 0.0
        %6430 = vmatpush1.msra.mxu0 0.0
        %6431 = vmatprep.subr.mxu0 0.0
        %6432 = vmatpush1.msra.mxu0 0.0
        %6433 = vmatprep.subr.mxu0 0.0
        %6434 = vmatpush1.msra.mxu0 0.0
        %6435 = vmatprep.subr.mxu0 0.0
        %6436 = vmatpush1.msra.mxu0 0.0
        %6437 = vmatprep.subr.mxu0 0.0
        %6438 = vmatpush1.msra.mxu0 0.0
        %6439 = vmatprep.subr.mxu0 0.0
        %6440 = vmatpush1.msra.mxu0 0.0
        %6441 = vmatprep.subr.mxu0 0.0
        %6442 = vmatpush1.msra.mxu0 0.0
        %6443 = vmatprep.subr.mxu0 0.0
        %6444 = vmatpush1.msra.mxu0 0.0
        %6445 = vmatprep.subr.mxu0 0.0
        %6446 = vmatpush1.msra.mxu0 0.0
        %6447 = vmatprep.subr.mxu0 0.0
        %6448 = vmatpush1.msra.mxu0 0.0
        %6449 = vmatprep.subr.mxu0 0.0
        %6450 = vmatpush1.msra.mxu0 0.0
        %6451 = vmatprep.subr.mxu0 0.0
        %6452 = vmatpush1.msra.mxu0 0.0
        %6453 = vmatprep.mubr.f32.mxu0 0.0
        %6454 = vmatmul.mubr.f32.gmra.mrb[0].mxu0 %v6387
        %v6455 = vpop.f32.mrb[0].mxu0
        %v6456 = vadd.f32 %v6383, %v6455
        %v6457 = vpop.f32.mrb[0].mxu0
        %6458 = vdwg.mxu0
        %v6459 = vmax.f32 %v6456, 0.0
        %v6460 = vld [vmem:[%s13] sm:$0xff]
        %v6461 = vld [vmem:[%s13 + $0x8] sm:$0xff]
        %v6462 = vld [vmem:[%s13 + $0x10] sm:$0xff]
        %v6463 = vld [vmem:[%s13 + $0x18] sm:$0xff]
        %v6464 = vld [vmem:[%s13 + $0x20] sm:$0xff]
        %v6465 = vld [vmem:[%s13 + $0x28] sm:$0xff]
        %v6466 = vld [vmem:[%s13 + $0x30] sm:$0xff]
        %v6467 = vld [vmem:[%s13 + $0x38] sm:$0xff]
        %v6468 = vld [vmem:[%s13 + $0x40] sm:$0xff]
        %v6469 = vld [vmem:[%s13 + $0x48] sm:$0xff]
        %v6470 = vld [vmem:[%s13 + $0x50] sm:$0xf]
        %v6471 = vld [vmem:[%s14] sm:$0x1]
        %v6473 = vlaneseq
        %v6474 = vshrl.u32 %v6473, 7
        %v6475 = vsub.s32 0, %v6474
        %v6476 = vrot.slane %v6471, %v6475
        %vm6478 = vcmask 687104
        %v6480 = vsel %vm6478, %v6459, 0
        %v6483 = vsel %vm685, %v6470, 0
        %6485 = vmatprep.subr.mxu0 0.0
        %6486 = vmatpush1.msra.mxu0 %v6460
        %6487 = vmatprep.subr.mxu0 0.0
        %6488 = vmatpush1.msra.mxu0 %v6461
        %6489 = vmatprep.subr.mxu0 0.0
        %6490 = vmatpush1.msra.mxu0 %v6462
        %6491 = vmatprep.subr.mxu0 0.0
        %6492 = vmatpush1.msra.mxu0 %v6463
        %6493 = vmatprep.subr.mxu0 0.0
        %6494 = vmatpush1.msra.mxu0 %v6464
        %6495 = vmatprep.subr.mxu0 0.0
        %6496 = vmatpush1.msra.mxu0 %v6465
        %6497 = vmatprep.subr.mxu0 0.0
        %6498 = vmatpush1.msra.mxu0 %v6466
        %6499 = vmatprep.subr.mxu0 0.0
        %6500 = vmatpush1.msra.mxu0 %v6467
        %6501 = vmatprep.subr.mxu0 0.0
        %6502 = vmatpush1.msra.mxu0 %v6468
        %6503 = vmatprep.subr.mxu0 0.0
        %6504 = vmatpush1.msra.mxu0 %v6469
        %6505 = vmatprep.subr.mxu0 0.0
        %6506 = vmatpush1.msra.mxu0 %v6483
        %6507 = vmatprep.subr.mxu0 0.0
        %6508 = vmatpush1.msra.mxu0 0.0
        %6509 = vmatprep.subr.mxu0 0.0
        %6510 = vmatpush1.msra.mxu0 0.0
        %6511 = vmatprep.subr.mxu0 0.0
        %6512 = vmatpush1.msra.mxu0 0.0
        %6513 = vmatprep.subr.mxu0 0.0
        %6514 = vmatpush1.msra.mxu0 0.0
        %6515 = vmatprep.subr.mxu0 0.0
        %6516 = vmatpush1.msra.mxu0 0.0
        %6517 = vmatprep.subr.mxu0 0.0
        %6518 = vmatpush1.msra.mxu0 0.0
        %6519 = vmatprep.subr.mxu0 0.0
        %6520 = vmatpush1.msra.mxu0 0.0
        %6521 = vmatprep.subr.mxu0 0.0
        %6522 = vmatpush1.msra.mxu0 0.0
        %6523 = vmatprep.subr.mxu0 0.0
        %6524 = vmatpush1.msra.mxu0 0.0
        %6525 = vmatprep.subr.mxu0 0.0
        %6526 = vmatpush1.msra.mxu0 0.0
        %6527 = vmatprep.subr.mxu0 0.0
        %6528 = vmatpush1.msra.mxu0 0.0
        %6529 = vmatprep.subr.mxu0 0.0
        %6530 = vmatpush1.msra.mxu0 0.0
        %6531 = vmatprep.subr.mxu0 0.0
        %6532 = vmatpush1.msra.mxu0 0.0
        %6533 = vmatprep.subr.mxu0 0.0
        %6534 = vmatpush1.msra.mxu0 0.0
        %6535 = vmatprep.subr.mxu0 0.0
        %6536 = vmatpush1.msra.mxu0 0.0
        %6537 = vmatprep.subr.mxu0 0.0
        %6538 = vmatpush1.msra.mxu0 0.0
        %6539 = vmatprep.subr.mxu0 0.0
        %6540 = vmatpush1.msra.mxu0 0.0
        %6541 = vmatprep.subr.mxu0 0.0
        %6542 = vmatpush1.msra.mxu0 0.0
        %6543 = vmatprep.subr.mxu0 0.0
        %6544 = vmatpush1.msra.mxu0 0.0
        %6545 = vmatprep.subr.mxu0 0.0
        %6546 = vmatpush1.msra.mxu0 0.0
        %6547 = vmatprep.subr.mxu0 0.0
        %6548 = vmatpush1.msra.mxu0 0.0
        %6549 = vmatprep.mubr.f32.mxu0 0.0
        %6550 = vmatmul.mubr.f32.gmra.mrb[0].mxu0 %v6480
        %v6551 = vpop.f32.mrb[0].mxu0
        %v6552 = vadd.f32 %v6476, %v6551
        %v6553 = vpop.f32.mrb[0].mxu0
        %6554 = vdwg.mxu0
        %6555 = vst [vmem:[%s490] sm:$0xff] %v6552
        %s6556 = sand.u32 %s357, 1
        %s6557 = scalar_lea.sflag [#allocation3], %s6556
        %s6558 = sand.u32 %s357, 1
        %s6559 = smul.addr %s6558, 8
        %s6560 = scalar_lea.vmem [#allocation2], %s6559
        // Predicated region
        $region81: #{lenet_forward.1} parent=79 // pred_check
          %p6561 = pneg %p367
        $region82: #{lenet_forward.1} parent=79 // pred_check_branch
          %6563 = sbr.rel (%p6561) target = $region84
        $region83: #{lenet_forward.1} parent=79 // pred_region
          %s6565 = ssub.s32 128, 128
          %6566 = vsyncadd %s6557, %s6565
          %s6567 = smul.addr %s29, 128
          %s6568 = scalar_lea.hbm %s15, %s6567
          %s6570 = sshll.u32 %s6560, 4
          %s6571 = int_to_ptr.vmem [resolvable:$true] %s6570
          %6573 = dma.vmem_to_hbm [thread:$0]  %s6571, 128, %s6568, %s6557
        $region84: #{lenet_forward.1} parent=79 // pred_fallthru
          _
      $region80: #{lenet_forward.1} parent=5 // pred_fallthru
        _
      %p6574 = scmp.le.s32.totalorder 2, %s24
      // Predicated region
      $region85: #{lenet_forward.1} parent=5 // pred_check
        %p6575 = pneg %p6574
      $region86: #{lenet_forward.1} parent=5 // pred_check_branch
        %6577 = sbr.rel (%p6575) target = $region88
      $region87: #{lenet_forward.1} parent=5 // pred_region
        %s6578 = ssub.s32 %s24, 2
        // Predicated region
        $region89: #{lenet_forward.1} parent=87 // pred_check
          %p6579 = pneg %p373
        $region90: #{lenet_forward.1} parent=87 // pred_check_branch
          %6581 = sbr.rel (%p6579) target = $region92
        $region91: #{lenet_forward.1} parent=87 // pred_region
          %s6582 = sand.u32 %s358, 1
          %s6583 = scalar_lea.sflag [#allocation3], %s6582
          %s6584 = sand.u32 %s358, 1
          %s6585 = smul.addr %s6584, 8
          %s6586 = scalar_lea.vmem [#allocation2], %s6585
          %6587 = dma.done %s6583, 128
        $region92: #{lenet_forward.1} parent=87 // pred_fallthru
          _
      $region88: #{lenet_forward.1} parent=5 // pred_fallthru
        _
    $region6: #{lenet_forward.1} parent=1 // loop_footer
      %s28 = sadd.s32 1, %s24
    $region7: #{lenet_forward.1} parent=1 // loop_footer_branch
      %23 = sbr.rel target = $region3
    $region8: #{lenet_forward.1} parent=1 // loop_exit
      _
    %6588 = vsyncpa [#allocation3], 1
    %s6589 = scalar_lea.sflag [#allocation3], 1
    %6590 = vsyncpa %s6589, 1

</llo_original>
